<compile_context>
chip_gen: v7x
topology: tpu7x:2x2x1
jax: 0.10.0
libtpu: 0.0.40
codegen_flags: <defaults>
</compile_context>

<pallas_src>
import functools
import math

import jax
import jax.numpy as jnp
from jax.experimental import pallas as pl
from jax.experimental.pallas import tpu as pltpu


def _round_up(x, m):
  return -(-x // m) * m


def _transformer_conv_layer_kernel(
    x_ref, kt_ref, v_ref, adj_ref, w_ref, b_ref, ln_ref, out_ref, *,
    num_heads: int, head_dim: int, out_size: int, out_lane: int,
    eps: float, bf16_tail: bool, approx_recip: bool):
  f32 = jnp.float32
  bf16 = jnp.bfloat16

  xt = x_ref[...]                                    # [TM, F_in] bf16 (target rows)
  kt = kt_ref[...]                                   # [out, N]   bf16 (all keys, pre-transposed)
  v = v_ref[...]                                     # [N, out]   bf16 (all values)

  # One fused matmul: [ q * (1/sqrt(C)) | skip + residual ]  (scale & bq folded host-side).
  qsr = jnp.dot(xt, w_ref[...], preferred_element_type=f32) + b_ref[...]
  q = qsr[:, :out_size].astype(bf16)                 # [TM, out]  already scaled
  sr = qsr[:, out_size:]                             # [TM, out]  f32

  # Edge multiplicity counts (0 = no edge).  int8 -> f32 -> compute dtype.
  cnt_dtype = bf16 if bf16_tail else f32
  cnt = adj_ref[...].astype(f32).astype(cnt_dtype)   # [TM, N]

  head_outs = []
  for h in range(num_heads):                         # static unroll; no relayouts
    lo = h * head_dim
    q_h = q[:, lo:lo + head_dim]                     # [TM, C] bf16
    kt_h = kt[lo:lo + head_dim, :]                   # [C, N]  bf16
    v_h = v[:, lo:lo + head_dim]                     # [N, C]  bf16

    s = jnp.dot(q_h, kt_h, preferred_element_type=f32)   # [TM, N] scores
    m = jnp.max(s, axis=-1, keepdims=True)                # global row max (shift-invariant)
    z = s - m
    if bf16_tail:
      p = cnt * jnp.exp(z.astype(bf16))                   # bf16 EUP/VPU tail (v6e / v7x)
    else:
      p = cnt * jnp.exp(z)                                # f32 tail (v5e and older)
    denom = jnp.sum(p.astype(f32), axis=-1, keepdims=True)
    # Isolated targets (no incoming edges): zero message, matching PyG scatter-softmax.
    safe = jnp.where(denom > 0, denom, f32(1.0))
    inv = pl.reciprocal(safe, approx=True) if approx_recip else f32(1.0) / safe
    agg = jnp.dot(p.astype(bf16), v_h, preferred_element_type=f32)   # [TM, C]
    head_outs.append(agg * inv)                      # normalize after aggregation

  agg = head_outs[0] if num_heads == 1 else jnp.concatenate(head_outs, axis=-1)
  y = agg + sr

  # LayerNorm over features (torch eps default 1e-5), then ReLU.
  # TODO(synk): dropout / attention-dropout only implemented for p=0 (eval semantics).
  mean = jnp.mean(y, axis=-1, keepdims=True)
  var = jnp.mean(jnp.square(y - mean), axis=-1, keepdims=True)
  y = (y - mean) * jax.lax.rsqrt(var + eps)
  y = y * ln_ref[0:1, :] + ln_ref[1:2, :]
  y = jnp.maximum(y, f32(0.0))

  if out_lane > out_size:                            # lane-dense 128-wide unmasked store
    y = jnp.concatenate(
        [y, jnp.zeros((y.shape[0], out_lane - out_size), f32)], axis=-1)
  out_ref[...] = y


def _vmem_budget_bytes():
  """Generation-aware VMEM budget (leave headroom for compiler scratch)."""
  cap = None
  try:
    cap = int(pltpu.get_tpu_info().vmem_capacity_bytes)
  except Exception:
    cap = None
  if not cap:
    try:
      kind = jax.devices()[0].device_kind.lower()
      cap = (64 << 20) if "7" in kind else (128 << 20)
    except Exception:
      cap = 64 << 20                      # conservative: v7x per-TensorCore size
  return int(min(cap * 3 // 4, 96 << 20))  # ~96 MiB on v5e/v6e, ~48 MiB on v7x


def _use_bf16_softmax_tail():
  """bf16 exp / probs only where the VPU/EUP have bf16 paths (v6e and newer)."""
  try:
    kind = jax.devices()[0].device_kind.lower()
  except Exception:
    return True
  return not any(v in kind for v in ("v2", "v3", "v4", "v5"))


def _working_set_bytes(tm, n_pad, f_in, out_size, out_lane):
  """VMEM working set for one grid step (real dtypes, default double-buffering)."""
  streamed = 2 * (tm * f_in * 2            # x target tile (bf16), double-buffered
                  + tm * n_pad * 1         # adjacency counts tile (int8)
                  + tm * out_lane * 4)     # output tile (f32)
  resident = 2 * (2 * n_pad * out_size * 2     # K^T + V (bf16), double-buffered by default
                  + f_in * 2 * out_size * 2    # fused weight (bf16)
                  + 2 * out_size * 4           # fused bias (f32)
                  + 2 * out_size * 4)          # LayerNorm gamma/beta (f32)
  temps = (tm * 2 * out_size * 4           # qsr (f32)
           + tm * n_pad * 4                # scores (f32, one head live at a time)
           + tm * n_pad * 2                # p (bf16)
           + tm * n_pad * 4                # cnt (worst case f32 on v5e)
           + 4 * tm * out_size * 4         # agg / sr / y temporaries (f32)
           + tm * out_lane * 4)            # padded store value
  return streamed + resident + temps


def _choose_row_tile(n, f_in, out_size, out_lane, budget_bytes):
  """Largest row tile (multiple of 32 for the int8 adjacency tile) fitting the VMEM budget,
  capped so the grid keeps >= 4 steps when N allows (>= 2 per v7x TensorCore)."""
  n_128 = _round_up(max(n, 1), 128)
  cap = max(32, min(256, n_128 // 4))
  best = 32
  for tm in (32, 64, 128, 256):
    if tm > cap:
      break
    n_pad = _round_up(n_128, tm * 128 // math.gcd(tm, 128))
    if _working_set_bytes(tm, n_pad, f_in, out_size, out_lane) <= budget_bytes:
      best = tm
  return best


def transformer_conv_layer(x, edge_index, params, *, num_heads: int, eps: float = 1e-5,
                           approx_reciprocal: bool = True):
  """x: [N, F_in] f32; edge_index: [2, E] int32 (row 0 = source j, row 1 = target i)."""
  n, f_in = x.shape
  out_size = params["wres"].shape[1]
  assert out_size % num_heads == 0
  head_dim = out_size // num_heads
  out_lane = _round_up(out_size, 128)

  budget = _vmem_budget_bytes()
  bf16_tail = _use_bf16_softmax_tail()
  tm = _choose_row_tile(n, f_in, out_size, out_lane, budget)
  n_pad = _round_up(n, tm * 128 // math.gcd(tm, 128))

  # --- Host/XLA-side prep (glue) -----------------------------------------------------
  # Dense adjacency with edge multiplicities: adj[i, j] = #edges j -> i (so the softmax
  # matches PyG over the edge multiset).  int8 halves streamed bytes; >127 dupes would wrap.
  # NOTE: for graphs far beyond this toy size, a source-tile grid axis with online softmax
  # (flash-style) would replace this dense O(N^2) adjacency.
  src, dst = edge_index[0], edge_index[1]
  adj_i8 = (jnp.zeros((n_pad, n_pad), jnp.int32)
            .at[dst, src].add(1).astype(jnp.int8))

  x_pad = jnp.pad(x, ((0, n_pad - n), (0, 0)))
  x_bf = x_pad.astype(jnp.bfloat16)

  # K / V hoisted out of the grid loop: computed once (f32 XLA matmul), grid-resident bf16.
  k = x_pad @ params["wk"] + params["bk"]
  v = x_pad @ params["wv"] + params["bv"]
  kt_bf = k.T.astype(jnp.bfloat16)                    # [out, N_pad] pre-transposed keys
  v_bf = v.astype(jnp.bfloat16)                       # [N_pad, out]

  # Fused target-side projection:  [ wq / sqrt(C) | wskip + wres ]  (+ fused biases).
  scale = 1.0 / math.sqrt(head_dim)
  w_qsr = jnp.concatenate([params["wq"] * scale, params["wskip"] + params["wres"]],
                          axis=1).astype(jnp.bfloat16)            # [F_in, 2*out] bf16
  b_qsr = jnp.concatenate([params["bq"] * scale, params["bskip"] + params["bres"]],
                          axis=1)                                 # [1, 2*out] f32
  ln = jnp.concatenate([params["gamma"], params["beta"]], axis=0)  # [2, out] f32

  kernel = functools.partial(
      _transformer_conv_layer_kernel,
      num_heads=num_heads, head_dim=head_dim, out_size=out_size, out_lane=out_lane,
      eps=eps, bf16_tail=bf16_tail, approx_recip=approx_reciprocal)

  grid = (n_pad // tm,)
  row = lambda i: (i, 0)
  whole = lambda i: (0, 0)

  in_specs = [
      pl.BlockSpec((tm, f_in), row),                 # x target tile (bf16)
      pl.BlockSpec((out_size, n_pad), whole),        # K^T, grid-resident (bf16)
      pl.BlockSpec((n_pad, out_size), whole),        # V,   grid-resident (bf16)
      pl.BlockSpec((tm, n_pad), row),                # adjacency counts tile (int8)
      pl.BlockSpec((f_in, 2 * out_size), whole),     # fused weight (bf16)
      pl.BlockSpec((1, 2 * out_size), whole),        # fused bias (f32)
      pl.BlockSpec((2, out_size), whole),            # LayerNorm gamma/beta (f32)
  ]
  out_spec = pl.BlockSpec((tm, out_lane), row)

  working = _working_set_bytes(tm, n_pad, f_in, out_size, out_lane)
  vmem_limit = int(min(max(2 * working, 32 << 20), budget))

  flops = int(2 * n_pad * f_in * 2 * out_size             # fused q / skip+res projection
              + 2 * 2 * n_pad * n_pad * out_size)         # scores + aggregation
  transcendentals = int(num_heads * n_pad * n_pad + 2 * n_pad)
  bytes_accessed = int(x_bf.size * 2 + adj_i8.size + kt_bf.size * 2 + v_bf.size * 2
                       + w_qsr.size * 2 + (b_qsr.size + ln.size) * 4
                       + n_pad * out_lane * 4)

  out = pl.pallas_call(
      kernel,
      out_shape=jax.ShapeDtypeStruct((n_pad, out_lane), jnp.float32),
      grid_spec=pltpu.PrefetchScalarGridSpec(
          num_scalar_prefetch=0, grid=grid, in_specs=in_specs, out_specs=out_spec),
      compiler_params=pltpu.CompilerParams(
          dimension_semantics=("parallel",),
          vmem_limit_bytes=vmem_limit),
      cost_estimate=pl.CostEstimate(
          flops=flops, transcendentals=transcendentals, bytes_accessed=bytes_accessed),
  )(x_bf, kt_bf, v_bf, adj_i8, w_qsr, b_qsr, ln)
  return out[:n, :out_size]


def init_params(key, input_size: int, output_size: int):
  """Deterministic synthetic parameters matching the module's shapes (torch-like init)."""
  ks = jax.random.split(key, 10)
  s = 1.0 / math.sqrt(input_size)
  def lin_w(k):
    return jax.random.uniform(k, (input_size, output_size), jnp.float32, -s, s)
  def lin_b(k):
    return jax.random.uniform(k, (1, output_size), jnp.float32, -s, s)
  return {
      # TransformerConv: lin_query / lin_key / lin_value / lin_skip (all bias=True)
      "wq": lin_w(ks[0]), "bq": lin_b(ks[1]),
      "wk": lin_w(ks[2]), "bk": lin_b(ks[3]),
      "wv": lin_w(ks[4]), "bv": lin_b(ks[5]),
      "wskip": lin_w(ks[6]), "bskip": lin_b(ks[7]),
      # res_connection Linear(input_size, output_size)
      "wres": lin_w(ks[8]), "bres": lin_b(ks[9]),
      # LayerNorm(output_size)
      "gamma": jnp.ones((1, output_size), jnp.float32),
      "beta": jnp.zeros((1, output_size), jnp.float32),
  }


def _reference(x, adj_counts, params, num_heads, eps=1e-5):
  """Pure-JAX f32 reference of the same forward pass (for a loose sanity check)."""
  n, _ = x.shape
  out_size = params["wres"].shape[1]
  c = out_size // num_heads
  q = (x @ params["wq"] + params["bq"]).reshape(n, num_heads, c)
  k = (x @ params["wk"] + params["bk"]).reshape(n, num_heads, c)
  v = (x @ params["wv"] + params["bv"]).reshape(n, num_heads, c)
  s = jnp.einsum('ihc,jhc->hij', q, k) / math.sqrt(c)
  cnt = adj_counts[None].astype(jnp.float32)
  p = cnt * jnp.exp(s - s.max(-1, keepdims=True))
  denom = p.sum(-1, keepdims=True)
  alpha = p / jnp.where(denom > 0, denom, 1.0)
  agg = jnp.einsum('hij,jhc->ihc', alpha, v).reshape(n, out_size)
  y = agg + x @ params["wskip"] + params["bskip"] + x @ params["wres"] + params["bres"]
  mu = y.mean(-1, keepdims=True)
  var = ((y - mu) ** 2).mean(-1, keepdims=True)
  y = (y - mu) / jnp.sqrt(var + eps) * params["gamma"] + params["beta"]
  return jnp.maximum(y, 0.0)


if __name__ == "__main__":
  N = 512            # number of graph nodes
  INPUT_SIZE = 16
  OUTPUT_SIZE = 32
  NUM_HEADS = 2      # OUTPUT_SIZE // NUM_HEADS channels per head

  key = jax.random.PRNGKey(0)
  k_x, k_p = jax.random.split(key)

  x = jax.random.normal(k_x, (N, INPUT_SIZE), jnp.float32)

  # Deterministic ring-style edge list: i -> (i+1)%N and (i+2)%N -> i.
  idx = jnp.arange(N, dtype=jnp.int32)
  src = jnp.concatenate([idx, (idx + 2) % N])
  dst = jnp.concatenate([(idx + 1) % N, idx])
  edge_index = jnp.stack([src, dst], axis=0).astype(jnp.int32)   # [2, 2N]

  params = init_params(k_p, INPUT_SIZE, OUTPUT_SIZE)

  out = transformer_conv_layer(x, edge_index, params, num_heads=NUM_HEADS)
  out = jax.block_until_ready(out)

  assert out.shape == (N, OUTPUT_SIZE)
  assert bool(jnp.all(jnp.isfinite(out)))

  # Loose sanity check vs. an f32 pure-JAX reference (kernel matmuls/softmax run in bf16).
  adj_counts = jnp.zeros((N, N), jnp.float32).at[edge_index[1], edge_index[0]].add(1.0)
  ref = _reference(x, adj_counts, params, NUM_HEADS)
  max_err = float(jnp.max(jnp.abs(out - ref)))
  assert max_err < 0.25, f"max abs error vs f32 reference too large: {max_err}"

  print("KERNEL_OK")
</pallas_src>

<mosaic_0001>
module attributes {stable_mosaic.version = 11 : i64} {
  func.func @_transformer_conv_layer_kernel(%arg0: i32, %arg1: memref<128x16xbf16, #tpu.memory_space<vmem>>, %arg2: memref<32x512xbf16, #tpu.memory_space<vmem>>, %arg3: memref<512x32xbf16, #tpu.memory_space<vmem>>, %arg4: memref<128x512xi8, #tpu.memory_space<vmem>>, %arg5: memref<16x64xbf16, #tpu.memory_space<vmem>>, %arg6: memref<1x64xf32, #tpu.memory_space<vmem>>, %arg7: memref<2x32xf32, #tpu.memory_space<vmem>>, %arg8: memref<128x128xf32, #tpu.memory_space<vmem>>) attributes {dimension_semantics = [#tpu.dimension_semantics<parallel>], iteration_bounds = array<i64: 4>, scalar_prefetch = 0 : i64, scratch_operands = 0 : i64, tpu.core_type = #tpu.core_type<tc>, window_params = [{transform_indices = @transform_0, window_bounds = array<i64: 128, 16>}, {pipeline_mode = #tpu.pipeline_mode<synchronous>, transform_indices = @transform_1, window_bounds = array<i64: 32, 512>}, {pipeline_mode = #tpu.pipeline_mode<synchronous>, transform_indices = @transform_2, window_bounds = array<i64: 512, 32>}, {transform_indices = @transform_3, window_bounds = array<i64: 128, 512>}, {pipeline_mode = #tpu.pipeline_mode<synchronous>, transform_indices = @transform_4, window_bounds = array<i64: 16, 64>}, {pipeline_mode = #tpu.pipeline_mode<synchronous>, transform_indices = @transform_5, window_bounds = array<i64: 1, 64>}, {pipeline_mode = #tpu.pipeline_mode<synchronous>, transform_indices = @transform_6, window_bounds = array<i64: 2, 32>}, {transform_indices = @transform_7, window_bounds = array<i64: 128, 128>}]} {
    %c0 = arith.constant 0 : index
    %c0_0 = arith.constant 0 : index
    %0 = vector.load %arg1[%c0, %c0_0] : memref<128x16xbf16, #tpu.memory_space<vmem>>, vector<128x16xbf16>
    %c0_1 = arith.constant 0 : index
    %c0_2 = arith.constant 0 : index
    %1 = vector.load %arg2[%c0_1, %c0_2] : memref<32x512xbf16, #tpu.memory_space<vmem>>, vector<32x512xbf16>
    %c0_3 = arith.constant 0 : index
    %c0_4 = arith.constant 0 : index
    %2 = vector.load %arg3[%c0_3, %c0_4] : memref<512x32xbf16, #tpu.memory_space<vmem>>, vector<512x32xbf16>
    %c0_5 = arith.constant 0 : index
    %c0_6 = arith.constant 0 : index
    %3 = vector.load %arg5[%c0_5, %c0_6] : memref<16x64xbf16, #tpu.memory_space<vmem>>, vector<16x64xbf16>
    %cst = arith.constant dense<0.000000e+00> : vector<128x64xf32>
    %4 = tpu.matmul %0, %3, %cst {dimension_numbers = #tpu.dot_dimension_numbers<[1], [0], [0], [1], [0, 0, 1, 1], [], []>} : vector<128x16xbf16>, vector<16x64xbf16>, vector<128x64xf32> -> vector<128x64xf32>
    %c0_7 = arith.constant 0 : index
    %c0_8 = arith.constant 0 : index
    %5 = vector.load %arg6[%c0_7, %c0_8] : memref<1x64xf32, #tpu.memory_space<vmem>>, vector<1x64xf32>
    %6 = vector.broadcast %5 : vector<1x64xf32> to vector<128x64xf32>
    %7 = arith.addf %4, %6 : vector<128x64xf32>
    %8 = vector.extract_strided_slice %7 {offsets = [0, 0], sizes = [128, 32], strides = [1, 1]} : vector<128x64xf32> to vector<128x32xf32>
    %9 = arith.truncf %8 : vector<128x32xf32> to vector<128x32xbf16>
    %10 = vector.extract_strided_slice %7 {offsets = [0, 32], sizes = [128, 32], strides = [1, 1]} : vector<128x64xf32> to vector<128x32xf32>
    %c0_9 = arith.constant 0 : index
    %c0_10 = arith.constant 0 : index
    %11 = vector.load %arg4[%c0_9, %c0_10] : memref<128x512xi8, #tpu.memory_space<vmem>>, vector<128x512xi8>
    %12 = arith.sitofp %11 : vector<128x512xi8> to vector<128x512xf32>
    %13 = arith.truncf %12 : vector<128x512xf32> to vector<128x512xbf16>
    %14 = vector.extract_strided_slice %9 {offsets = [0, 0], sizes = [128, 16], strides = [1, 1]} : vector<128x32xbf16> to vector<128x16xbf16>
    %15 = vector.extract_strided_slice %1 {offsets = [0, 0], sizes = [16, 512], strides = [1, 1]} : vector<32x512xbf16> to vector<16x512xbf16>
    %16 = vector.extract_strided_slice %2 {offsets = [0, 0], sizes = [512, 16], strides = [1, 1]} : vector<512x32xbf16> to vector<512x16xbf16>
    %cst_11 = arith.constant dense<0.000000e+00> : vector<128x512xf32>
    %17 = tpu.matmul %14, %15, %cst_11 {dimension_numbers = #tpu.dot_dimension_numbers<[1], [0], [0], [1], [0, 0, 1, 1], [], []>} : vector<128x16xbf16>, vector<16x512xbf16>, vector<128x512xf32> -> vector<128x512xf32>
    %cst_12 = arith.constant dense<0xFF800000> : vector<128xf32>
    %18 = vector.multi_reduction <maximumf>, %17, %cst_12 [1] : vector<128x512xf32> to vector<128xf32>
    %19 = vector.shape_cast %18 : vector<128xf32> to vector<128x1xf32>
    %20 = vector.broadcast %19 : vector<128x1xf32> to vector<128x512xf32>
    %21 = arith.subf %17, %20 : vector<128x512xf32>
    %22 = arith.truncf %21 : vector<128x512xf32> to vector<128x512xbf16>
    %23 = math.exp %22 : vector<128x512xbf16>
    %24 = arith.mulf %13, %23 : vector<128x512xbf16>
    %25 = arith.extf %24 : vector<128x512xbf16> to vector<128x512xf32>
    %cst_13 = arith.constant dense<0.000000e+00> : vector<128xf32>
    %26 = vector.multi_reduction <add>, %25, %cst_13 [1] : vector<128x512xf32> to vector<128xf32>
    %27 = vector.shape_cast %26 : vector<128xf32> to vector<128x1xf32>
    %cst_14 = arith.constant 0.000000e+00 : f32
    %28 = vector.broadcast %cst_14 : f32 to vector<128x1xf32>
    %29 = arith.cmpf ogt, %27, %28 : vector<128x1xf32>
    %cst_15 = arith.constant 1.000000e+00 : f32
    %30 = vector.broadcast %cst_15 : f32 to vector<128x1xf32>
    %31 = arith.select %29, %27, %30 : vector<128x1xi1>, vector<128x1xf32>
    %32 = tpu.reciprocal %31 {approx = true} : vector<128x1xf32> -> vector<128x1xf32>
    %cst_16 = arith.constant dense<0.000000e+00> : vector<128x16xf32>
    %33 = tpu.matmul %24, %16, %cst_16 {dimension_numbers = #tpu.dot_dimension_numbers<[1], [0], [0], [1], [0, 0, 1, 1], [], []>} : vector<128x512xbf16>, vector<512x16xbf16>, vector<128x16xf32> -> vector<128x16xf32>
    %34 = vector.broadcast %32 : vector<128x1xf32> to vector<128x16xf32>
    %35 = arith.mulf %33, %34 : vector<128x16xf32>
    %36 = vector.extract_strided_slice %9 {offsets = [0, 16], sizes = [128, 16], strides = [1, 1]} : vector<128x32xbf16> to vector<128x16xbf16>
    %37 = vector.extract_strided_slice %1 {offsets = [16, 0], sizes = [16, 512], strides = [1, 1]} : vector<32x512xbf16> to vector<16x512xbf16>
    %38 = vector.extract_strided_slice %2 {offsets = [0, 16], sizes = [512, 16], strides = [1, 1]} : vector<512x32xbf16> to vector<512x16xbf16>
    %cst_17 = arith.constant dense<0.000000e+00> : vector<128x512xf32>
    %39 = tpu.matmul %36, %37, %cst_17 {dimension_numbers = #tpu.dot_dimension_numbers<[1], [0], [0], [1], [0, 0, 1, 1], [], []>} : vector<128x16xbf16>, vector<16x512xbf16>, vector<128x512xf32> -> vector<128x512xf32>
    %cst_18 = arith.constant dense<0xFF800000> : vector<128xf32>
    %40 = vector.multi_reduction <maximumf>, %39, %cst_18 [1] : vector<128x512xf32> to vector<128xf32>
    %41 = vector.shape_cast %40 : vector<128xf32> to vector<128x1xf32>
    %42 = vector.broadcast %41 : vector<128x1xf32> to vector<128x512xf32>
    %43 = arith.subf %39, %42 : vector<128x512xf32>
    %44 = arith.truncf %43 : vector<128x512xf32> to vector<128x512xbf16>
    %45 = math.exp %44 : vector<128x512xbf16>
    %46 = arith.mulf %13, %45 : vector<128x512xbf16>
    %47 = arith.extf %46 : vector<128x512xbf16> to vector<128x512xf32>
    %cst_19 = arith.constant dense<0.000000e+00> : vector<128xf32>
    %48 = vector.multi_reduction <add>, %47, %cst_19 [1] : vector<128x512xf32> to vector<128xf32>
    %49 = vector.shape_cast %48 : vector<128xf32> to vector<128x1xf32>
    %cst_20 = arith.constant 0.000000e+00 : f32
    %50 = vector.broadcast %cst_20 : f32 to vector<128x1xf32>
    %51 = arith.cmpf ogt, %49, %50 : vector<128x1xf32>
    %cst_21 = arith.constant 1.000000e+00 : f32
    %52 = vector.broadcast %cst_21 : f32 to vector<128x1xf32>
    %53 = arith.select %51, %49, %52 : vector<128x1xi1>, vector<128x1xf32>
    %54 = tpu.reciprocal %53 {approx = true} : vector<128x1xf32> -> vector<128x1xf32>
    %cst_22 = arith.constant dense<0.000000e+00> : vector<128x16xf32>
    %55 = tpu.matmul %46, %38, %cst_22 {dimension_numbers = #tpu.dot_dimension_numbers<[1], [0], [0], [1], [0, 0, 1, 1], [], []>} : vector<128x512xbf16>, vector<512x16xbf16>, vector<128x16xf32> -> vector<128x16xf32>
    %56 = vector.broadcast %54 : vector<128x1xf32> to vector<128x16xf32>
    %57 = arith.mulf %55, %56 : vector<128x16xf32>
    %58 = tpu.concatenate %35, %57 in 1 : vector<128x16xf32>, vector<128x16xf32> -> vector<128x32xf32>
    %59 = arith.addf %58, %10 : vector<128x32xf32>
    %cst_23 = arith.constant dense<0.000000e+00> : vector<128xf32>
    %60 = vector.multi_reduction <add>, %59, %cst_23 [1] : vector<128x32xf32> to vector<128xf32>
    %61 = vector.shape_cast %60 : vector<128xf32> to vector<128x1xf32>
    %cst_24 = arith.constant 3.200000e+01 : f32
    %62 = vector.broadcast %cst_24 : f32 to vector<128x1xf32>
    %63 = arith.divf %61, %62 : vector<128x1xf32>
    %64 = vector.broadcast %63 : vector<128x1xf32> to vector<128x32xf32>
    %65 = arith.subf %59, %64 : vector<128x32xf32>
    %66 = arith.mulf %65, %65 : vector<128x32xf32>
    %cst_25 = arith.constant dense<0.000000e+00> : vector<128xf32>
    %67 = vector.multi_reduction <add>, %66, %cst_25 [1] : vector<128x32xf32> to vector<128xf32>
    %68 = vector.shape_cast %67 : vector<128xf32> to vector<128x1xf32>
    %cst_26 = arith.constant 3.200000e+01 : f32
    %69 = vector.broadcast %cst_26 : f32 to vector<128x1xf32>
    %70 = arith.divf %68, %69 : vector<128x1xf32>
    %71 = vector.broadcast %63 : vector<128x1xf32> to vector<128x32xf32>
    %72 = arith.subf %59, %71 : vector<128x32xf32>
    %cst_27 = arith.constant 9.99999974E-6 : f32
    %73 = vector.broadcast %cst_27 : f32 to vector<128x1xf32>
    %74 = arith.addf %70, %73 : vector<128x1xf32>
    %75 = math.rsqrt %74 : vector<128x1xf32>
    %76 = vector.broadcast %75 : vector<128x1xf32> to vector<128x32xf32>
    %77 = arith.mulf %72, %76 : vector<128x32xf32>
    %c0_28 = arith.constant 0 : index
    %c0_29 = arith.constant 0 : index
    %78 = vector.load %arg7[%c0_28, %c0_29] : memref<2x32xf32, #tpu.memory_space<vmem>>, vector<1x32xf32>
    %79 = vector.broadcast %78 : vector<1x32xf32> to vector<128x32xf32>
    %80 = arith.mulf %77, %79 : vector<128x32xf32>
    %c1 = arith.constant 1 : index
    %c0_30 = arith.constant 0 : index
    %81 = vector.load %arg7[%c1, %c0_30] : memref<2x32xf32, #tpu.memory_space<vmem>>, vector<1x32xf32>
    %82 = vector.broadcast %81 : vector<1x32xf32> to vector<128x32xf32>
    %83 = arith.addf %80, %82 : vector<128x32xf32>
    %cst_31 = arith.constant 0.000000e+00 : f32
    %84 = vector.broadcast %cst_31 : f32 to vector<128x32xf32>
    %85 = arith.maximumf %83, %84 : vector<128x32xf32>
    %cst_32 = arith.constant 0.000000e+00 : f32
    %86 = vector.broadcast %cst_32 : f32 to vector<128x96xf32>
    %87 = tpu.concatenate %85, %86 in 1 : vector<128x32xf32>, vector<128x96xf32> -> vector<128x128xf32>
    %c0_33 = arith.constant 0 : index
    %c0_34 = arith.constant 0 : index
    %88 = vector.load %arg8[%c0_33, %c0_34] : memref<128x128xf32, #tpu.memory_space<vmem>>, vector<128x128xf32>
    tpu.vector_store %arg8[%c0_33, %c0_34], %87 {strides = array<i32>} : memref<128x128xf32, #tpu.memory_space<vmem>>, vector<128x128xf32>,
    return
  }
  func.func @transform_0(%arg0: i32) -> (i32, i32) {
    %c0_i32 = arith.constant 0 : i32
    %c0_i32_0 = arith.constant 0 : i32
    return %arg0, %c0_i32 : i32, i32
  }
  func.func @transform_1(%arg0: i32) -> (i32, i32) {
    %c0_i32 = arith.constant 0 : i32
    %c0_i32_0 = arith.constant 0 : i32
    %c0_i32_1 = arith.constant 0 : i32
    return %c0_i32, %c0_i32_0 : i32, i32
  }
  func.func @transform_2(%arg0: i32) -> (i32, i32) {
    %c0_i32 = arith.constant 0 : i32
    %c0_i32_0 = arith.constant 0 : i32
    %c0_i32_1 = arith.constant 0 : i32
    return %c0_i32, %c0_i32_0 : i32, i32
  }
  func.func @transform_3(%arg0: i32) -> (i32, i32) {
    %c0_i32 = arith.constant 0 : i32
    %c0_i32_0 = arith.constant 0 : i32
    return %arg0, %c0_i32 : i32, i32
  }
  func.func @transform_4(%arg0: i32) -> (i32, i32) {
    %c0_i32 = arith.constant 0 : i32
    %c0_i32_0 = arith.constant 0 : i32
    %c0_i32_1 = arith.constant 0 : i32
    return %c0_i32, %c0_i32_0 : i32, i32
  }
  func.func @transform_5(%arg0: i32) -> (i32, i32) {
    %c0_i32 = arith.constant 0 : i32
    %c0_i32_0 = arith.constant 0 : i32
    %c0_i32_1 = arith.constant 0 : i32
    return %c0_i32, %c0_i32_0 : i32, i32
  }
  func.func @transform_6(%arg0: i32) -> (i32, i32) {
    %c0_i32 = arith.constant 0 : i32
    %c0_i32_0 = arith.constant 0 : i32
    %c0_i32_1 = arith.constant 0 : i32
    return %c0_i32, %c0_i32_0 : i32, i32
  }
  func.func @transform_7(%arg0: i32) -> (i32, i32) {
    %c0_i32 = arith.constant 0 : i32
    %c0_i32_0 = arith.constant 0 : i32
    return %arg0, %c0_i32 : i32, i32
  }
}

</mosaic_0001>

<llo_original>
// kernel: tpu_custom_call.1
$region0: #{tpu_custom_call.1}
  #allocation0 [shape = 'u32[]', space=smem, size = 0x4, offset = 0x4, fixed_abs, tag = 'smem constant byte address 0x4 - core index']
  #allocation1 [shape = 'u32[144,128]{1,0:T(1,128)}', space=vmem, size = 0x12000, scoped, tag = 'internal scratch']
  %s0 = inlined_call_operand.vmem [shape: bf16[512,16], index: 0, kind: input, shape index: {}]
  %s1 = inlined_call_operand.hbm [shape: bf16[32,512], index: 1, kind: input, shape index: {}]
  %s2 = inlined_call_operand.vmem [shape: bf16[512,32], index: 2, kind: input, shape index: {}]
  %s3 = inlined_call_operand.vmem [shape: s8[512,512], index: 3, kind: input, shape index: {}]
  %s4 = inlined_call_operand.vmem [shape: bf16[16,64], index: 4, kind: input, shape index: {}]
  %s5 = inlined_call_operand.vmem [shape: f32[1,64], index: 5, kind: input, shape index: {}]
  %s6 = inlined_call_operand.vmem [shape: f32[2,32], index: 6, kind: input, shape index: {}]
  %s7 = inlined_call_operand.hbm [shape: f32[512,128], index: 7, kind: output, shape index: {}]
  %s8 = sld [smem:[#allocation0]]
  $region65: #{tpu_custom_call.1} parent=0
    _
  %s10 = ssub.s32 1, %s8
  %s11 = scalar_select 0, %s10, %s8
  $region1: #{tpu_custom_call.1} parent=0
    #allocation2 [shape = 'u8[32768]{0}', space=vmem, size = 0x8000, scoped, tag = 'input window, operand 1, single buffered']
    #allocation3 [shape = 's32[2]{0}', space=sflag, size = 0x8, scoped, tag = 'scoped memory for tpu_custom_call.1']
    #allocation4 [shape = 's32[2]{0}', space=sflag, size = 0x8, scoped, tag = 'scoped memory for tpu_custom_call.1']
    #allocation5 [shape = 'u8[131072]{0}', space=vmem, size = 0x20000, scoped, tag = 'output window, operand 0']
    %12 = vsyncpa [#allocation3], 0
    %13 = vsyncpa [#allocation4], 0
    %s14 = scalar_lea.sflag [#allocation4], 1
    %15 = vsyncpa %s14, 0
    loop: start=0, step=1, limit=6
    $region2: #{tpu_custom_call.1} parent=1 // loop_pre_header
      _
    $region3: #{tpu_custom_call.1} parent=1 // loop_header
      %s17 = sphi 0, %s21
      %p18 = scmp.ge.s32.totalorder %s17, 6
      %s27 = sphi 0, %s29
      %s30 = sphi 0, %s27
      %s31 = sphi 0, %s30
      %s47 = sphi 0, %s31
      %s51 = sphi 0, %s51
      %s53 = sphi 0, %s51
      %s54 = sphi 0, %s53
      %s68 = sphi 0, %s54
      %s72 = sphi 0, %s72
      %s74 = sphi 0, %s72
      %s75 = sphi 0, %s74
      %s89 = sphi 0, %s75
      %s95 = sphi 0, %s97
      %s98 = sphi 0, %s95
      %s99 = sphi 0, %s98
      %s115 = sphi 0, %s99
      %s119 = sphi 0, %s119
      %s121 = sphi 0, %s119
      %s122 = sphi 0, %s121
      %s136 = sphi 0, %s122
      %s140 = sphi 0, %s140
      %s142 = sphi 0, %s140
      %s143 = sphi 0, %s142
      %s157 = sphi 0, %s143
      %s161 = sphi 0, %s161
      %s163 = sphi 0, %s161
      %s164 = sphi 0, %s163
      %s178 = sphi 0, %s164
      %s184 = sphi 0, %s186
      %s187 = sphi 0, %s184
      %s188 = sphi 0, %s187
      %s204 = sphi 0, %s188
    $region4: #{tpu_custom_call.1} parent=1 // loop_header_branch
      %20 = sbr.rel (%p18) target = $region8
    $region5: #{tpu_custom_call.1} parent=1 // loop_body
      %s22 = ssub.s32 %s17, 1
      %s23 = ssub.s32 %s17, 2
      %s24 = sadd.s32 %s17, 1
      %s25 = ssub.s32 %s17, %s24
      %p26 = scmp.eq.s32.totalorder %s25, 0
      %s28 = sadd.s32 %s27, 1
      %s29 = scalar_select %p26, %s27, %s28
      %p32 = pneg %p26
      %p33 = scmp.eq.s32.totalorder %s17, 3
      %p34 = por %p32, %p33
      %p35 = scmp.ne.s32.totalorder %s27, %s30
      %p36 = scmp.eq.s32.totalorder %s17, 0
      %p37 = por %p35, %p36
      %p38 = scmp.ne.s32.totalorder %s27, %s30
      %p39 = scmp.eq.s32.totalorder %s22, 3
      %p40 = por %p38, %p39
      %p41 = scmp.ne.s32.totalorder %s30, %s31
      %p42 = scmp.eq.s32.totalorder %s22, 0
      %p43 = por %p41, %p42
      %p44 = scmp.ne.s32.totalorder %s30, %s31
      %p45 = scmp.eq.s32.totalorder %s23, 3
      %p46 = por %p44, %p45
      %p48 = scmp.ne.s32.totalorder %s31, %s47
      %p49 = scmp.eq.s32.totalorder %s23, 0
      %p50 = por %p48, %p49
      %s52 = sadd.s32 %s51, 1
      %p55 = scmp.eq.s32.totalorder %s17, 3
      %p56 = scmp.ne.s32.totalorder %s51, %s53
      %p57 = scmp.eq.s32.totalorder %s17, 0
      %p58 = por %p56, %p57
      %p59 = scmp.ne.s32.totalorder %s51, %s53
      %p60 = scmp.eq.s32.totalorder %s22, 3
      %p61 = por %p59, %p60
      %p62 = scmp.ne.s32.totalorder %s53, %s54
      %p63 = scmp.eq.s32.totalorder %s22, 0
      %p64 = por %p62, %p63
      %p65 = scmp.ne.s32.totalorder %s53, %s54
      %p66 = scmp.eq.s32.totalorder %s23, 3
      %p67 = por %p65, %p66
      %p69 = scmp.ne.s32.totalorder %s54, %s68
      %p70 = scmp.eq.s32.totalorder %s23, 0
      %p71 = por %p69, %p70
      %s73 = sadd.s32 %s72, 1
      %p76 = scmp.eq.s32.totalorder %s17, 3
      %p77 = scmp.ne.s32.totalorder %s72, %s74
      %p78 = scmp.eq.s32.totalorder %s17, 0
      %p79 = por %p77, %p78
      %p80 = scmp.ne.s32.totalorder %s72, %s74
      %p81 = scmp.eq.s32.totalorder %s22, 3
      %p82 = por %p80, %p81
      %p83 = scmp.ne.s32.totalorder %s74, %s75
      %p84 = scmp.eq.s32.totalorder %s22, 0
      %p85 = por %p83, %p84
      %p86 = scmp.ne.s32.totalorder %s74, %s75
      %p87 = scmp.eq.s32.totalorder %s23, 3
      %p88 = por %p86, %p87
      %p90 = scmp.ne.s32.totalorder %s75, %s89
      %p91 = scmp.eq.s32.totalorder %s23, 0
      %p92 = por %p90, %p91
      %s93 = ssub.s32 %s17, %s24
      %p94 = scmp.eq.s32.totalorder %s93, 0
      %s96 = sadd.s32 %s95, 1
      %s97 = scalar_select %p94, %s95, %s96
      %p100 = pneg %p94
      %p101 = scmp.eq.s32.totalorder %s17, 3
      %p102 = por %p100, %p101
      %p103 = scmp.ne.s32.totalorder %s95, %s98
      %p104 = scmp.eq.s32.totalorder %s17, 0
      %p105 = por %p103, %p104
      %p106 = scmp.ne.s32.totalorder %s95, %s98
      %p107 = scmp.eq.s32.totalorder %s22, 3
      %p108 = por %p106, %p107
      %p109 = scmp.ne.s32.totalorder %s98, %s99
      %p110 = scmp.eq.s32.totalorder %s22, 0
      %p111 = por %p109, %p110
      %p112 = scmp.ne.s32.totalorder %s98, %s99
      %p113 = scmp.eq.s32.totalorder %s23, 3
      %p114 = por %p112, %p113
      %p116 = scmp.ne.s32.totalorder %s99, %s115
      %p117 = scmp.eq.s32.totalorder %s23, 0
      %p118 = por %p116, %p117
      %s120 = sadd.s32 %s119, 1
      %p123 = scmp.eq.s32.totalorder %s17, 3
      %p124 = scmp.ne.s32.totalorder %s119, %s121
      %p125 = scmp.eq.s32.totalorder %s17, 0
      %p126 = por %p124, %p125
      %p127 = scmp.ne.s32.totalorder %s119, %s121
      %p128 = scmp.eq.s32.totalorder %s22, 3
      %p129 = por %p127, %p128
      %p130 = scmp.ne.s32.totalorder %s121, %s122
      %p131 = scmp.eq.s32.totalorder %s22, 0
      %p132 = por %p130, %p131
      %p133 = scmp.ne.s32.totalorder %s121, %s122
      %p134 = scmp.eq.s32.totalorder %s23, 3
      %p135 = por %p133, %p134
      %p137 = scmp.ne.s32.totalorder %s122, %s136
      %p138 = scmp.eq.s32.totalorder %s23, 0
      %p139 = por %p137, %p138
      %s141 = sadd.s32 %s140, 1
      %p144 = scmp.eq.s32.totalorder %s17, 3
      %p145 = scmp.ne.s32.totalorder %s140, %s142
      %p146 = scmp.eq.s32.totalorder %s17, 0
      %p147 = por %p145, %p146
      %p148 = scmp.ne.s32.totalorder %s140, %s142
      %p149 = scmp.eq.s32.totalorder %s22, 3
      %p150 = por %p148, %p149
      %p151 = scmp.ne.s32.totalorder %s142, %s143
      %p152 = scmp.eq.s32.totalorder %s22, 0
      %p153 = por %p151, %p152
      %p154 = scmp.ne.s32.totalorder %s142, %s143
      %p155 = scmp.eq.s32.totalorder %s23, 3
      %p156 = por %p154, %p155
      %p158 = scmp.ne.s32.totalorder %s143, %s157
      %p159 = scmp.eq.s32.totalorder %s23, 0
      %p160 = por %p158, %p159
      %s162 = sadd.s32 %s161, 1
      %p165 = scmp.eq.s32.totalorder %s17, 3
      %p166 = scmp.ne.s32.totalorder %s161, %s163
      %p167 = scmp.eq.s32.totalorder %s17, 0
      %p168 = por %p166, %p167
      %p169 = scmp.ne.s32.totalorder %s161, %s163
      %p170 = scmp.eq.s32.totalorder %s22, 3
      %p171 = por %p169, %p170
      %p172 = scmp.ne.s32.totalorder %s163, %s164
      %p173 = scmp.eq.s32.totalorder %s22, 0
      %p174 = por %p172, %p173
      %p175 = scmp.ne.s32.totalorder %s163, %s164
      %p176 = scmp.eq.s32.totalorder %s23, 3
      %p177 = por %p175, %p176
      %p179 = scmp.ne.s32.totalorder %s164, %s178
      %p180 = scmp.eq.s32.totalorder %s23, 0
      %p181 = por %p179, %p180
      %s182 = ssub.s32 %s17, %s24
      %p183 = scmp.eq.s32.totalorder %s182, 0
      %s185 = sadd.s32 %s184, 1
      %s186 = scalar_select %p183, %s184, %s185
      %p189 = pneg %p183
      %p190 = scmp.eq.s32.totalorder %s17, 3
      %p191 = por %p189, %p190
      %p192 = scmp.ne.s32.totalorder %s184, %s187
      %p193 = scmp.eq.s32.totalorder %s17, 0
      %p194 = por %p192, %p193
      %p195 = scmp.ne.s32.totalorder %s184, %s187
      %p196 = scmp.eq.s32.totalorder %s22, 3
      %p197 = por %p195, %p196
      %p198 = scmp.ne.s32.totalorder %s187, %s188
      %p199 = scmp.eq.s32.totalorder %s22, 0
      %p200 = por %p198, %p199
      %p201 = scmp.ne.s32.totalorder %s187, %s188
      %p202 = scmp.eq.s32.totalorder %s23, 3
      %p203 = por %p201, %p202
      %p205 = scmp.ne.s32.totalorder %s188, %s204
      %p206 = scmp.eq.s32.totalorder %s23, 0
      %p207 = por %p205, %p206
      %p208 = scmp.le.s32.totalorder 1, %s17
      %p209 = scmp.lt.s32.totalorder %s17, 5
      %p210 = pnand %p208, %p209
      %p211 = pneg %p210
      // Predicated region
      $region9: #{tpu_custom_call.1} parent=5 // pred_check
        _
      $region10: #{tpu_custom_call.1} parent=5 // pred_check_branch
        %213 = sbr.rel (%p210) target = $region12
      $region11: #{tpu_custom_call.1} parent=5 // pred_region
        %s214 = ssub.s32 %s17, 1
        // Predicated region
        $region13: #{tpu_custom_call.1} parent=11 // pred_check
          %p215 = pneg %p64
        $region14: #{tpu_custom_call.1} parent=11 // pred_check_branch
          %217 = sbr.rel (%p215) target = $region16
        $region15: #{tpu_custom_call.1} parent=11 // pred_region
          %s219 = ssub.s32 1024, 1024
          %220 = vsyncadd [#allocation3], %s219
          %s221 = sshll.u32 [#allocation2], 4
          %s222 = int_to_ptr.vmem [resolvable:$true] %s221
          %227 = dma.hbm_to_vmem [thread:$0]  %s1, 1024, %s222, [#allocation3], 256, 256, 16
        $region16: #{tpu_custom_call.1} parent=11 // pred_fallthru
          _
        // Predicated region
        $region17: #{tpu_custom_call.1} parent=11 // pred_check
          %p228 = pneg %p85
        $region18: #{tpu_custom_call.1} parent=11 // pred_check_branch
          %230 = sbr.rel (%p228) target = $region20
        $region19: #{tpu_custom_call.1} parent=11 // pred_region
          _
        $region20: #{tpu_custom_call.1} parent=11 // pred_fallthru
          _
        // Predicated region
        $region21: #{tpu_custom_call.1} parent=11 // pred_check
          %p231 = pneg %p132
        $region22: #{tpu_custom_call.1} parent=11 // pred_check_branch
          %233 = sbr.rel (%p231) target = $region24
        $region23: #{tpu_custom_call.1} parent=11 // pred_region
          _
        $region24: #{tpu_custom_call.1} parent=11 // pred_fallthru
          _
        // Predicated region
        $region25: #{tpu_custom_call.1} parent=11 // pred_check
          %p234 = pneg %p153
        $region26: #{tpu_custom_call.1} parent=11 // pred_check_branch
          %236 = sbr.rel (%p234) target = $region28
        $region27: #{tpu_custom_call.1} parent=11 // pred_region
          _
        $region28: #{tpu_custom_call.1} parent=11 // pred_fallthru
          _
        // Predicated region
        $region29: #{tpu_custom_call.1} parent=11 // pred_check
          %p237 = pneg %p174
        $region30: #{tpu_custom_call.1} parent=11 // pred_check_branch
          %239 = sbr.rel (%p237) target = $region32
        $region31: #{tpu_custom_call.1} parent=11 // pred_region
          _
        $region32: #{tpu_custom_call.1} parent=11 // pred_fallthru
          _
      $region12: #{tpu_custom_call.1} parent=5 // pred_fallthru
        _
      %p240 = scmp.lt.s32.totalorder %s17, 4
      // Predicated region
      $region33: #{tpu_custom_call.1} parent=5 // pred_check
        %p241 = pneg %p240
      $region34: #{tpu_custom_call.1} parent=5 // pred_check_branch
        %243 = sbr.rel (%p241) target = $region36
      $region35: #{tpu_custom_call.1} parent=5 // pred_region
        // Predicated region
        $region37: #{tpu_custom_call.1} parent=35 // pred_check
          %p244 = pneg %p37
        $region38: #{tpu_custom_call.1} parent=35 // pred_check_branch
          %246 = sbr.rel (%p244) target = $region40
        $region39: #{tpu_custom_call.1} parent=35 // pred_region
          %s247 = smul.u32 16, %s17
          %p248 = scmp.lt.s32.totalorder %s247, 63
          %s249 = scalar_select %p248, %s247, 63
          %s250 = smul.addr %s249, 4
          %s251 = scalar_lea.vmem %s0, %s250
          %s252 = smul.u32 16, %s17
        $region40: #{tpu_custom_call.1} parent=35 // pred_fallthru
          _
        // Predicated region
        $region41: #{tpu_custom_call.1} parent=35 // pred_check
          %p253 = pneg %p105
        $region42: #{tpu_custom_call.1} parent=35 // pred_check_branch
          %255 = sbr.rel (%p253) target = $region44
        $region43: #{tpu_custom_call.1} parent=35 // pred_region
          %s256 = smul.u32 4, %s17
          %p257 = scmp.lt.s32.totalorder %s256, 15
          %s258 = scalar_select %p257, %s256, 15
          %s259 = smul.addr %s258, 4
          %s260 = smul.addr %s259, 8
          %s261 = scalar_lea.vmem %s3, %s260
          %s262 = smul.u32 4, %s17
        $region44: #{tpu_custom_call.1} parent=35 // pred_fallthru
          _
      $region36: #{tpu_custom_call.1} parent=5 // pred_fallthru
        _
      %p263 = scmp.le.s32.totalorder 1, %s17
      %p264 = scmp.lt.s32.totalorder %s17, 5
      %p265 = pnand %p263, %p264
      %p266 = pneg %p265
      // Predicated region
      $region45: #{tpu_custom_call.1} parent=5 // pred_check
        _
      $region46: #{tpu_custom_call.1} parent=5 // pred_check_branch
        %268 = sbr.rel (%p265) target = $region48
      $region47: #{tpu_custom_call.1} parent=5 // pred_region
        %s269 = ssub.s32 %s17, 1
        // Predicated region
        $region49: #{tpu_custom_call.1} parent=47 // pred_check
          %p270 = pneg %p64
        $region50: #{tpu_custom_call.1} parent=47 // pred_check_branch
          %272 = sbr.rel (%p270) target = $region52
        $region51: #{tpu_custom_call.1} parent=47 // pred_region
          %273 = dma.done [#allocation3], 1024
        $region52: #{tpu_custom_call.1} parent=47 // pred_fallthru
          _
        %s274 = smul.u32 16, %s22
        %p275 = scmp.lt.s32.totalorder %s274, 63
        %s276 = scalar_select %p275, %s274, 63
        %s277 = smul.addr %s276, 4
        %s278 = scalar_lea.vmem %s0, %s277
        %p279 = pneg %p43
        %p280 = pneg %p40
        %p281 = pneg %p64
        %p282 = pneg %p61
        %p283 = pneg %p85
        %p284 = pneg %p82
        %s285 = smul.u32 4, %s22
        %p286 = scmp.lt.s32.totalorder %s285, 15
        %s287 = scalar_select %p286, %s285, 15
        %s288 = smul.addr %s287, 4
        %s289 = smul.addr %s288, 8
        %s290 = scalar_lea.vmem %s3, %s289
        %p291 = pneg %p111
        %p292 = pneg %p108
        %p293 = pneg %p132
        %p294 = pneg %p129
        %p295 = pneg %p153
        %p296 = pneg %p150
        %p297 = pneg %p174
        %p298 = pneg %p171
        %p299 = pneg %p200
        %p300 = pneg %p197
        %s301 = sand.u32 %s187, 1
        %s302 = scalar_lea.sflag [#allocation4], %s301
        %s303 = sand.u32 %s187, 1
        %s304 = smul.addr %s303, 128
        %s305 = scalar_lea.vmem [#allocation5], %s304
        %s306 = smul.u32 16, %s22
        %p307 = scmp.lt.s32.totalorder %s306, 63
        %s308 = scalar_select %p307, %s306, 63
        %s309 = smul.addr %s308, 4
        %s310 = scalar_lea.vmem %s0, %s309
        %s311 = smul.u32 16, %s22
        %s312 = smul.u32 4, %s22
        %p313 = scmp.lt.s32.totalorder %s312, 15
        %s314 = scalar_select %p313, %s312, 15
        %s315 = smul.addr %s314, 4
        %s316 = smul.addr %s315, 8
        %s317 = scalar_lea.vmem %s3, %s316
        %s318 = smul.u32 4, %s22
        %s319 = smul.u32 16, %s22
        %v321 = vld [vmem:[%s310] sm:$0xf]
        %v322 = vld [vmem:[%s310 + $0x4] sm:$0xf]
        %v323 = vld [vmem:[%s310 + $0x8] sm:$0xf]
        %v324 = vld [vmem:[%s310 + $0xc] sm:$0xf]
        %v325 = vld [vmem:[%s310 + $0x10] sm:$0xf]
        %v326 = vld [vmem:[%s310 + $0x14] sm:$0xf]
        %v327 = vld [vmem:[%s310 + $0x18] sm:$0xf]
        %v328 = vld [vmem:[%s310 + $0x1c] sm:$0xf]
        %v329 = vld [vmem:[%s310 + $0x20] sm:$0xf]
        %v330 = vld [vmem:[%s310 + $0x24] sm:$0xf]
        %v331 = vld [vmem:[%s310 + $0x28] sm:$0xf]
        %v332 = vld [vmem:[%s310 + $0x2c] sm:$0xf]
        %v333 = vld [vmem:[%s310 + $0x30] sm:$0xf]
        %v334 = vld [vmem:[%s310 + $0x34] sm:$0xf]
        %v335 = vld [vmem:[%s310 + $0x38] sm:$0xf]
        %v336 = vld [vmem:[%s310 + $0x3c] sm:$0xf]
        %v337 = vld [vmem:[#allocation2] sm:$0xff]
        %v338 = vld [vmem:[#allocation2 + $0x8] sm:$0xff]
        %v339 = vld [vmem:[#allocation2 + $0x10] sm:$0xff]
        %v340 = vld [vmem:[#allocation2 + $0x18] sm:$0xff]
        %v341 = vld [vmem:[#allocation2 + $0x20] sm:$0xff]
        %v342 = vld [vmem:[#allocation2 + $0x28] sm:$0xff]
        %v343 = vld [vmem:[#allocation2 + $0x30] sm:$0xff]
        %v344 = vld [vmem:[#allocation2 + $0x38] sm:$0xff]
        %v345 = vld [vmem:[%s2] sm:$0xf]
        %v346 = vld [vmem:[%s2 + $0x4] sm:$0xf]
        %v347 = vld [vmem:[%s2 + $0x8] sm:$0xf]
        %v348 = vld [vmem:[%s2 + $0xc] sm:$0xf]
        %v349 = vld [vmem:[%s2 + $0x10] sm:$0xf]
        %v350 = vld [vmem:[%s2 + $0x14] sm:$0xf]
        %v351 = vld [vmem:[%s2 + $0x18] sm:$0xf]
        %v352 = vld [vmem:[%s2 + $0x1c] sm:$0xf]
        %v353 = vld [vmem:[%s2 + $0x20] sm:$0xf]
        %v354 = vld [vmem:[%s2 + $0x24] sm:$0xf]
        %v355 = vld [vmem:[%s2 + $0x28] sm:$0xf]
        %v356 = vld [vmem:[%s2 + $0x2c] sm:$0xf]
        %v357 = vld [vmem:[%s2 + $0x30] sm:$0xf]
        %v358 = vld [vmem:[%s2 + $0x34] sm:$0xf]
        %v359 = vld [vmem:[%s2 + $0x38] sm:$0xf]
        %v360 = vld [vmem:[%s2 + $0x3c] sm:$0xf]
        %v361 = vld [vmem:[%s2 + $0x40] sm:$0xf]
        %v362 = vld [vmem:[%s2 + $0x44] sm:$0xf]
        %v363 = vld [vmem:[%s2 + $0x48] sm:$0xf]
        %v364 = vld [vmem:[%s2 + $0x4c] sm:$0xf]
        %v365 = vld [vmem:[%s2 + $0x50] sm:$0xf]
        %v366 = vld [vmem:[%s2 + $0x54] sm:$0xf]
        %v367 = vld [vmem:[%s2 + $0x58] sm:$0xf]
        %v368 = vld [vmem:[%s2 + $0x5c] sm:$0xf]
        %v369 = vld [vmem:[%s2 + $0x60] sm:$0xf]
        %v370 = vld [vmem:[%s2 + $0x64] sm:$0xf]
        %v371 = vld [vmem:[%s2 + $0x68] sm:$0xf]
        %v372 = vld [vmem:[%s2 + $0x6c] sm:$0xf]
        %v373 = vld [vmem:[%s2 + $0x70] sm:$0xf]
        %v374 = vld [vmem:[%s2 + $0x74] sm:$0xf]
        %v375 = vld [vmem:[%s2 + $0x78] sm:$0xf]
        %v376 = vld [vmem:[%s2 + $0x7c] sm:$0xf]
        %v377 = vld [vmem:[%s2 + $0x80] sm:$0xf]
        %v378 = vld [vmem:[%s2 + $0x84] sm:$0xf]
        %v379 = vld [vmem:[%s2 + $0x88] sm:$0xf]
        %v380 = vld [vmem:[%s2 + $0x8c] sm:$0xf]
        %v381 = vld [vmem:[%s2 + $0x90] sm:$0xf]
        %v382 = vld [vmem:[%s2 + $0x94] sm:$0xf]
        %v383 = vld [vmem:[%s2 + $0x98] sm:$0xf]
        %v384 = vld [vmem:[%s2 + $0x9c] sm:$0xf]
        %v385 = vld [vmem:[%s2 + $0xa0] sm:$0xf]
        %v386 = vld [vmem:[%s2 + $0xa4] sm:$0xf]
        %v387 = vld [vmem:[%s2 + $0xa8] sm:$0xf]
        %v388 = vld [vmem:[%s2 + $0xac] sm:$0xf]
        %v389 = vld [vmem:[%s2 + $0xb0] sm:$0xf]
        %v390 = vld [vmem:[%s2 + $0xb4] sm:$0xf]
        %v391 = vld [vmem:[%s2 + $0xb8] sm:$0xf]
        %v392 = vld [vmem:[%s2 + $0xbc] sm:$0xf]
        %v393 = vld [vmem:[%s2 + $0xc0] sm:$0xf]
        %v394 = vld [vmem:[%s2 + $0xc4] sm:$0xf]
        %v395 = vld [vmem:[%s2 + $0xc8] sm:$0xf]
        %v396 = vld [vmem:[%s2 + $0xcc] sm:$0xf]
        %v397 = vld [vmem:[%s2 + $0xd0] sm:$0xf]
        %v398 = vld [vmem:[%s2 + $0xd4] sm:$0xf]
        %v399 = vld [vmem:[%s2 + $0xd8] sm:$0xf]
        %v400 = vld [vmem:[%s2 + $0xdc] sm:$0xf]
        %v401 = vld [vmem:[%s2 + $0xe0] sm:$0xf]
        %v402 = vld [vmem:[%s2 + $0xe4] sm:$0xf]
        %v403 = vld [vmem:[%s2 + $0xe8] sm:$0xf]
        %v404 = vld [vmem:[%s2 + $0xec] sm:$0xf]
        %v405 = vld [vmem:[%s2 + $0xf0] sm:$0xf]
        %v406 = vld [vmem:[%s2 + $0xf4] sm:$0xf]
        %v407 = vld [vmem:[%s2 + $0xf8] sm:$0xf]
        %v408 = vld [vmem:[%s2 + $0xfc] sm:$0xf]
        %v409 = vld [vmem:[%s4] sm:$0xf]
        %v410 = vld [vmem:[%s4 + $0x4] sm:$0xf]
        %v411 = vld [vmem:[%s5] sm:$0x1]
        %v413 = vlaneseq
        %v414 = vshrl.u32 %v413, 7
        %v415 = vsub.s32 0, %v414
        %v416 = vrot.slane %v411, %v415
        %v434 = vunpack.c.l.b16 %v321
        %v435 = vunpack.c.l.b16 %v322
        %v436 = vunpack.c.l.b16 %v323
        %v437 = vunpack.c.l.b16 %v324
        %v438 = vunpack.c.l.b16 %v325
        %v439 = vunpack.c.l.b16 %v326
        %v440 = vunpack.c.l.b16 %v327
        %v441 = vunpack.c.l.b16 %v328
        %v442 = vunpack.c.l.b16 %v329
        %v443 = vunpack.c.l.b16 %v330
        %v444 = vunpack.c.l.b16 %v331
        %v445 = vunpack.c.l.b16 %v332
        %v446 = vunpack.c.l.b16 %v333
        %v447 = vunpack.c.l.b16 %v334
        %v448 = vunpack.c.l.b16 %v335
        %v449 = vunpack.c.l.b16 %v336
        %v450 = vpack.c.b16 %v435, %v434
        %v451 = vpack.c.b16 %v437, %v436
        %v452 = vpack.c.b16 %v439, %v438
        %v453 = vpack.c.b16 %v441, %v440
        %v454 = vpack.c.b16 %v443, %v442
        %v455 = vpack.c.b16 %v445, %v444
        %v456 = vpack.c.b16 %v447, %v446
        %v457 = vpack.c.b16 %v449, %v448
        %v460 = vunpack.c.l.b16 %v409
        %v461 = vunpack.c.l.b16 %v410
        %v462 = vpack.c.b16 %v461, %v460
        %vm464 = vcmask 130048
        %v466 = vsel %vm464, %v450, 0
        %v469 = vsel %vm464, %v451, 0
        %v472 = vsel %vm464, %v452, 0
        %v475 = vsel %vm464, %v453, 0
        %v478 = vsel %vm464, %v454, 0
        %v481 = vsel %vm464, %v455, 0
        %v484 = vsel %vm464, %v456, 0
        %v487 = vsel %vm464, %v457, 0
        %489 = vmatprep.subr.bf16.mxu0 0
        %490 = vmatpush1.bf16.msra.mxu0 %v462
        %491 = vmatprep.subr.bf16.mxu0 0
        %492 = vmatpush1.bf16.msra.mxu0 0
        %493 = vmatprep.subr.bf16.mxu0 0
        %494 = vmatpush1.bf16.msra.mxu0 0
        %495 = vmatprep.subr.bf16.mxu0 0
        %496 = vmatpush1.bf16.msra.mxu0 0
        %497 = vmatprep.subr.bf16.mxu0 0
        %498 = vmatpush1.bf16.msra.mxu0 0
        %499 = vmatprep.subr.bf16.mxu0 0
        %500 = vmatpush1.bf16.msra.mxu0 0
        %501 = vmatprep.subr.bf16.mxu0 0
        %502 = vmatpush1.bf16.msra.mxu0 0
        %503 = vmatprep.subr.bf16.mxu0 0
        %504 = vmatpush1.bf16.msra.mxu0 0
        %505 = vmatprep.subr.bf16.mxu0 0
        %506 = vmatpush1.bf16.msra.mxu0 0
        %507 = vmatprep.subr.bf16.mxu0 0
        %508 = vmatpush1.bf16.msra.mxu0 0
        %509 = vmatprep.subr.bf16.mxu0 0
        %510 = vmatpush1.bf16.msra.mxu0 0
        %511 = vmatprep.subr.bf16.mxu0 0
        %512 = vmatpush1.bf16.msra.mxu0 0
        %513 = vmatprep.subr.bf16.mxu0 0
        %514 = vmatpush1.bf16.msra.mxu0 0
        %515 = vmatprep.subr.bf16.mxu0 0
        %516 = vmatpush1.bf16.msra.mxu0 0
        %517 = vmatprep.subr.bf16.mxu0 0
        %518 = vmatpush1.bf16.msra.mxu0 0
        %519 = vmatprep.subr.bf16.mxu0 0
        %520 = vmatpush1.bf16.msra.mxu0 0
        %521 = vmatprep.mubr.bf16.mxu0 0
        %522 = vmatmul.mubr.bf16.gmra.mrb[0].mxu0 %v466
        %v523 = vpop.f32.mrb[0].mxu0
        %v524 = vadd.f32 %v416, %v523
        %v525 = vpop.f32.mrb[0].mxu0
        %v526 = vpop.f32.mrb[0].mxu0
        %v527 = vadd.f32 %v416, %v526
        %v528 = vpop.f32.mrb[0].mxu0
        %529 = vmatprep.mubr.bf16.mxu0 0
        %530 = vmatmul.mubr.bf16.gmra.mrb[0].mxu0 %v469
        %v531 = vpop.f32.mrb[0].mxu0
        %v532 = vadd.f32 %v416, %v531
        %v533 = vpop.f32.mrb[0].mxu0
        %v534 = vpop.f32.mrb[0].mxu0
        %v535 = vadd.f32 %v416, %v534
        %v536 = vpop.f32.mrb[0].mxu0
        %537 = vmatprep.mubr.bf16.mxu0 0
        %538 = vmatmul.mubr.bf16.gmra.mrb[0].mxu0 %v472
        %v539 = vpop.f32.mrb[0].mxu0
        %v540 = vadd.f32 %v416, %v539
        %v541 = vpop.f32.mrb[0].mxu0
        %v542 = vpop.f32.mrb[0].mxu0
        %v543 = vadd.f32 %v416, %v542
        %v544 = vpop.f32.mrb[0].mxu0
        %545 = vmatprep.mubr.bf16.mxu0 0
        %546 = vmatmul.mubr.bf16.gmra.mrb[0].mxu0 %v475
        %v547 = vpop.f32.mrb[0].mxu0
        %v548 = vadd.f32 %v416, %v547
        %v549 = vpop.f32.mrb[0].mxu0
        %v550 = vpop.f32.mrb[0].mxu0
        %v551 = vadd.f32 %v416, %v550
        %v552 = vpop.f32.mrb[0].mxu0
        %553 = vmatprep.mubr.bf16.mxu0 0
        %554 = vmatmul.mubr.bf16.gmra.mrb[0].mxu0 %v478
        %v555 = vpop.f32.mrb[0].mxu0
        %v556 = vadd.f32 %v416, %v555
        %v557 = vpop.f32.mrb[0].mxu0
        %v558 = vpop.f32.mrb[0].mxu0
        %v559 = vadd.f32 %v416, %v558
        %v560 = vpop.f32.mrb[0].mxu0
        %561 = vmatprep.mubr.bf16.mxu0 0
        %562 = vmatmul.mubr.bf16.gmra.mrb[0].mxu0 %v481
        %v563 = vpop.f32.mrb[0].mxu0
        %v564 = vadd.f32 %v416, %v563
        %v565 = vpop.f32.mrb[0].mxu0
        %v566 = vpop.f32.mrb[0].mxu0
        %v567 = vadd.f32 %v416, %v566
        %v568 = vpop.f32.mrb[0].mxu0
        %569 = vmatprep.mubr.bf16.mxu0 0
        %570 = vmatmul.mubr.bf16.gmra.mrb[0].mxu0 %v484
        %v571 = vpop.f32.mrb[0].mxu0
        %v572 = vadd.f32 %v416, %v571
        %v573 = vpop.f32.mrb[0].mxu0
        %v574 = vpop.f32.mrb[0].mxu0
        %v575 = vadd.f32 %v416, %v574
        %v576 = vpop.f32.mrb[0].mxu0
        %577 = vmatprep.mubr.bf16.mxu0 0
        %578 = vmatmul.mubr.bf16.gmra.mrb[0].mxu0 %v487
        %v579 = vpop.f32.mrb[0].mxu0
        %v580 = vadd.f32 %v416, %v579
        %v581 = vpop.f32.mrb[0].mxu0
        %v582 = vpop.f32.mrb[0].mxu0
        %v583 = vadd.f32 %v416, %v582
        %v584 = vpop.f32.mrb[0].mxu0
        %585 = vdwg.mxu0
        %v586 = vpack.c.bf16 %v527, %v524
        %v587 = vpack.c.bf16 %v535, %v532
        %v588 = vpack.c.bf16 %v543, %v540
        %v589 = vpack.c.bf16 %v551, %v548
        %v590 = vpack.c.bf16 %v559, %v556
        %v591 = vpack.c.bf16 %v567, %v564
        %v592 = vpack.c.bf16 %v575, %v572
        %v593 = vpack.c.bf16 %v583, %v580
        %v594 = vld [vmem:[%s317] sm:$0xff]
        %v595 = vld [vmem:[%s317 + $0x8] sm:$0xff]
        %v596 = vld [vmem:[%s317 + $0x10] sm:$0xff]
        %v597 = vld [vmem:[%s317 + $0x18] sm:$0xff]
        %v598 = vld [vmem:[%s317 + $0x20] sm:$0xff]
        %v599 = vld [vmem:[%s317 + $0x28] sm:$0xff]
        %v600 = vld [vmem:[%s317 + $0x30] sm:$0xff]
        %v601 = vld [vmem:[%s317 + $0x38] sm:$0xff]
        %v602 = vld [vmem:[%s317 + $0x40] sm:$0xff]
        %v603 = vld [vmem:[%s317 + $0x48] sm:$0xff]
        %v604 = vld [vmem:[%s317 + $0x50] sm:$0xff]
        %v605 = vld [vmem:[%s317 + $0x58] sm:$0xff]
        %v606 = vld [vmem:[%s317 + $0x60] sm:$0xff]
        %v607 = vld [vmem:[%s317 + $0x68] sm:$0xff]
        %v608 = vld [vmem:[%s317 + $0x70] sm:$0xff]
        %v609 = vld [vmem:[%s317 + $0x78] sm:$0xff]
        %v610 = vunpack.c.l.s8.bf16 %v594
        %v611 = vunpack.c.l.s8.bf16 %v595
        %v612 = vunpack.c.l.s8.bf16 %v596
        %v613 = vunpack.c.l.s8.bf16 %v597
        %v614 = vunpack.c.h.s8.bf16 %v594
        %v615 = vunpack.c.h.s8.bf16 %v595
        %v616 = vunpack.c.h.s8.bf16 %v596
        %v617 = vunpack.c.h.s8.bf16 %v597
        %v618 = vunpack.c.l.s8.bf16 %v598
        %v619 = vunpack.c.l.s8.bf16 %v599
        %v620 = vunpack.c.l.s8.bf16 %v600
        %v621 = vunpack.c.l.s8.bf16 %v601
        %v622 = vunpack.c.h.s8.bf16 %v598
        %v623 = vunpack.c.h.s8.bf16 %v599
        %v624 = vunpack.c.h.s8.bf16 %v600
        %v625 = vunpack.c.h.s8.bf16 %v601
        %v626 = vunpack.c.l.s8.bf16 %v602
        %v627 = vunpack.c.l.s8.bf16 %v603
        %v628 = vunpack.c.l.s8.bf16 %v604
        %v629 = vunpack.c.l.s8.bf16 %v605
        %v630 = vunpack.c.h.s8.bf16 %v602
        %v631 = vunpack.c.h.s8.bf16 %v603
        %v632 = vunpack.c.h.s8.bf16 %v604
        %v633 = vunpack.c.h.s8.bf16 %v605
        %v634 = vunpack.c.l.s8.bf16 %v606
        %v635 = vunpack.c.l.s8.bf16 %v607
        %v636 = vunpack.c.l.s8.bf16 %v608
        %v637 = vunpack.c.l.s8.bf16 %v609
        %v638 = vunpack.c.h.s8.bf16 %v606
        %v639 = vunpack.c.h.s8.bf16 %v607
        %v640 = vunpack.c.h.s8.bf16 %v608
        %v641 = vunpack.c.h.s8.bf16 %v609
        %v646 = vunpack.c.l.b16 %v337
        %v647 = vunpack.c.h.b16 %v337
        %v648 = vunpack.c.l.b16 %v338
        %v649 = vunpack.c.h.b16 %v338
        %v650 = vunpack.c.l.b16 %v339
        %v651 = vunpack.c.h.b16 %v339
        %v652 = vunpack.c.l.b16 %v340
        %v653 = vunpack.c.h.b16 %v340
        %v654 = vpack.c.b16 %v650, %v646
        %v655 = vpack.c.b16 %v651, %v647
        %v656 = vpack.c.b16 %v652, %v648
        %v657 = vpack.c.b16 %v653, %v649
        %v663 = vsel %vm464, %v586, 0
        %v666 = vsel %vm464, %v587, 0
        %v669 = vsel %vm464, %v588, 0
        %v672 = vsel %vm464, %v589, 0
        %v675 = vsel %vm464, %v590, 0
        %v678 = vsel %vm464, %v591, 0
        %v681 = vsel %vm464, %v592, 0
        %v684 = vsel %vm464, %v593, 0
        %686 = vmatprep.subr.bf16.mxu0 %v655
        %687 = vmatpush1.bf16.msra.mxu0 %v654
        %688 = vmatprep.subr.bf16.mxu0 0
        %689 = vmatpush1.bf16.msra.mxu0 0
        %690 = vmatprep.subr.bf16.mxu0 0
        %691 = vmatpush1.bf16.msra.mxu0 0
        %692 = vmatprep.subr.bf16.mxu0 0
        %693 = vmatpush1.bf16.msra.mxu0 0
        %694 = vmatprep.subr.bf16.mxu0 0
        %695 = vmatpush1.bf16.msra.mxu0 0
        %696 = vmatprep.subr.bf16.mxu0 0
        %697 = vmatpush1.bf16.msra.mxu0 0
        %698 = vmatprep.subr.bf16.mxu0 0
        %699 = vmatpush1.bf16.msra.mxu0 0
        %700 = vmatprep.subr.bf16.mxu0 0
        %701 = vmatpush1.bf16.msra.mxu0 0
        %702 = vmatprep.subr.bf16.mxu0 0
        %703 = vmatpush1.bf16.msra.mxu0 0
        %704 = vmatprep.subr.bf16.mxu0 0
        %705 = vmatpush1.bf16.msra.mxu0 0
        %706 = vmatprep.subr.bf16.mxu0 0
        %707 = vmatpush1.bf16.msra.mxu0 0
        %708 = vmatprep.subr.bf16.mxu0 0
        %709 = vmatpush1.bf16.msra.mxu0 0
        %710 = vmatprep.subr.bf16.mxu0 0
        %711 = vmatpush1.bf16.msra.mxu0 0
        %712 = vmatprep.subr.bf16.mxu0 0
        %713 = vmatpush1.bf16.msra.mxu0 0
        %714 = vmatprep.subr.bf16.mxu0 0
        %715 = vmatpush1.bf16.msra.mxu0 0
        %716 = vmatprep.subr.bf16.mxu0 0
        %717 = vmatpush1.bf16.msra.mxu0 0
        %718 = vmatprep.mubr.bf16.mxu0 0
        %719 = vmatmul.mubr.bf16.gmra.mrb[0].mxu0 %v663
        %v720 = vpop.f32.mrb[0].mxu0
        %v721 = vadd.f32 0.0, %v720
        %v722 = vpop.f32.mrb[0].mxu0
        %v723 = vadd.f32 0.0, %v722
        %v724 = vpop.f32.mrb[0].mxu0
        %v725 = vadd.f32 0.0, %v724
        %v726 = vpop.f32.mrb[0].mxu0
        %v727 = vadd.f32 0.0, %v726
        %728 = vmatprep.mubr.bf16.mxu0 0
        %729 = vmatmul.mubr.bf16.gmra.mrb[0].mxu0 %v666
        %v730 = vpop.f32.mrb[0].mxu0
        %v731 = vadd.f32 0.0, %v730
        %v732 = vpop.f32.mrb[0].mxu0
        %v733 = vadd.f32 0.0, %v732
        %v734 = vpop.f32.mrb[0].mxu0
        %v735 = vadd.f32 0.0, %v734
        %v736 = vpop.f32.mrb[0].mxu0
        %v737 = vadd.f32 0.0, %v736
        %738 = vmatprep.mubr.bf16.mxu0 0
        %739 = vmatmul.mubr.bf16.gmra.mrb[0].mxu0 %v669
        %v740 = vpop.f32.mrb[0].mxu0
        %v741 = vadd.f32 0.0, %v740
        %v742 = vpop.f32.mrb[0].mxu0
        %v743 = vadd.f32 0.0, %v742
        %v744 = vpop.f32.mrb[0].mxu0
        %v745 = vadd.f32 0.0, %v744
        %v746 = vpop.f32.mrb[0].mxu0
        %v747 = vadd.f32 0.0, %v746
        %748 = vmatprep.mubr.bf16.mxu0 0
        %749 = vmatmul.mubr.bf16.gmra.mrb[0].mxu0 %v672
        %v750 = vpop.f32.mrb[0].mxu0
        %v751 = vadd.f32 0.0, %v750
        %v752 = vpop.f32.mrb[0].mxu0
        %v753 = vadd.f32 0.0, %v752
        %v754 = vpop.f32.mrb[0].mxu0
        %v755 = vadd.f32 0.0, %v754
        %v756 = vpop.f32.mrb[0].mxu0
        %v757 = vadd.f32 0.0, %v756
        %758 = vmatprep.mubr.bf16.mxu0 0
        %759 = vmatmul.mubr.bf16.gmra.mrb[0].mxu0 %v675
        %v760 = vpop.f32.mrb[0].mxu0
        %v761 = vadd.f32 0.0, %v760
        %v762 = vpop.f32.mrb[0].mxu0
        %v763 = vadd.f32 0.0, %v762
        %v764 = vpop.f32.mrb[0].mxu0
        %v765 = vadd.f32 0.0, %v764
        %v766 = vpop.f32.mrb[0].mxu0
        %v767 = vadd.f32 0.0, %v766
        %768 = vmatprep.mubr.bf16.mxu0 0
        %769 = vmatmul.mubr.bf16.gmra.mrb[0].mxu0 %v678
        %v770 = vpop.f32.mrb[0].mxu0
        %v771 = vadd.f32 0.0, %v770
        %v772 = vpop.f32.mrb[0].mxu0
        %v773 = vadd.f32 0.0, %v772
        %v774 = vpop.f32.mrb[0].mxu0
        %v775 = vadd.f32 0.0, %v774
        %v776 = vpop.f32.mrb[0].mxu0
        %v777 = vadd.f32 0.0, %v776
        %778 = vmatprep.mubr.bf16.mxu0 0
        %779 = vmatmul.mubr.bf16.gmra.mrb[0].mxu0 %v681
        %v780 = vpop.f32.mrb[0].mxu0
        %v781 = vadd.f32 0.0, %v780
        %v782 = vpop.f32.mrb[0].mxu0
        %v783 = vadd.f32 0.0, %v782
        %v784 = vpop.f32.mrb[0].mxu0
        %v785 = vadd.f32 0.0, %v784
        %v786 = vpop.f32.mrb[0].mxu0
        %v787 = vadd.f32 0.0, %v786
        %788 = vmatprep.mubr.bf16.mxu0 0
        %789 = vmatmul.mubr.bf16.gmra.mrb[0].mxu0 %v684
        %v790 = vpop.f32.mrb[0].mxu0
        %v791 = vadd.f32 0.0, %v790
        %v792 = vpop.f32.mrb[0].mxu0
        %v793 = vadd.f32 0.0, %v792
        %v794 = vpop.f32.mrb[0].mxu0
        %v795 = vadd.f32 0.0, %v794
        %v796 = vpop.f32.mrb[0].mxu0
        %v797 = vadd.f32 0.0, %v796
        %798 = vdwg.mxu0
        %799 = vmatprep.subr.bf16.mxu0 %v657
        %800 = vmatpush1.bf16.msra.mxu0 %v656
        %801 = vmatprep.subr.bf16.mxu0 0
        %802 = vmatpush1.bf16.msra.mxu0 0
        %803 = vmatprep.subr.bf16.mxu0 0
        %804 = vmatpush1.bf16.msra.mxu0 0
        %805 = vmatprep.subr.bf16.mxu0 0
        %806 = vmatpush1.bf16.msra.mxu0 0
        %807 = vmatprep.subr.bf16.mxu0 0
        %808 = vmatpush1.bf16.msra.mxu0 0
        %809 = vmatprep.subr.bf16.mxu0 0
        %810 = vmatpush1.bf16.msra.mxu0 0
        %811 = vmatprep.subr.bf16.mxu0 0
        %812 = vmatpush1.bf16.msra.mxu0 0
        %813 = vmatprep.subr.bf16.mxu0 0
        %814 = vmatpush1.bf16.msra.mxu0 0
        %815 = vmatprep.subr.bf16.mxu0 0
        %816 = vmatpush1.bf16.msra.mxu0 0
        %817 = vmatprep.subr.bf16.mxu0 0
        %818 = vmatpush1.bf16.msra.mxu0 0
        %819 = vmatprep.subr.bf16.mxu0 0
        %820 = vmatpush1.bf16.msra.mxu0 0
        %821 = vmatprep.subr.bf16.mxu0 0
        %822 = vmatpush1.bf16.msra.mxu0 0
        %823 = vmatprep.subr.bf16.mxu0 0
        %824 = vmatpush1.bf16.msra.mxu0 0
        %825 = vmatprep.subr.bf16.mxu0 0
        %826 = vmatpush1.bf16.msra.mxu0 0
        %827 = vmatprep.subr.bf16.mxu0 0
        %828 = vmatpush1.bf16.msra.mxu0 0
        %829 = vmatprep.subr.bf16.mxu0 0
        %830 = vmatpush1.bf16.msra.mxu0 0
        %831 = vmatprep.mubr.bf16.mxu0 0
        %832 = vmatmul.mubr.bf16.gmra.mrb[0].mxu0 %v663
        %v833 = vpop.f32.mrb[0].mxu0
        %v834 = vadd.f32 0.0, %v833
        %v835 = vpop.f32.mrb[0].mxu0
        %v836 = vadd.f32 0.0, %v835
        %v837 = vpop.f32.mrb[0].mxu0
        %v838 = vadd.f32 0.0, %v837
        %v839 = vpop.f32.mrb[0].mxu0
        %v840 = vadd.f32 0.0, %v839
        %841 = vmatprep.mubr.bf16.mxu0 0
        %842 = vmatmul.mubr.bf16.gmra.mrb[0].mxu0 %v666
        %v843 = vpop.f32.mrb[0].mxu0
        %v844 = vadd.f32 0.0, %v843
        %v845 = vpop.f32.mrb[0].mxu0
        %v846 = vadd.f32 0.0, %v845
        %v847 = vpop.f32.mrb[0].mxu0
        %v848 = vadd.f32 0.0, %v847
        %v849 = vpop.f32.mrb[0].mxu0
        %v850 = vadd.f32 0.0, %v849
        %851 = vmatprep.mubr.bf16.mxu0 0
        %852 = vmatmul.mubr.bf16.gmra.mrb[0].mxu0 %v669
        %v853 = vpop.f32.mrb[0].mxu0
        %v854 = vadd.f32 0.0, %v853
        %v855 = vpop.f32.mrb[0].mxu0
        %v856 = vadd.f32 0.0, %v855
        %v857 = vpop.f32.mrb[0].mxu0
        %v858 = vadd.f32 0.0, %v857
        %v859 = vpop.f32.mrb[0].mxu0
        %v860 = vadd.f32 0.0, %v859
        %861 = vmatprep.mubr.bf16.mxu0 0
        %862 = vmatmul.mubr.bf16.gmra.mrb[0].mxu0 %v672
        %v863 = vpop.f32.mrb[0].mxu0
        %v864 = vadd.f32 0.0, %v863
        %v865 = vpop.f32.mrb[0].mxu0
        %v866 = vadd.f32 0.0, %v865
        %v867 = vpop.f32.mrb[0].mxu0
        %v868 = vadd.f32 0.0, %v867
        %v869 = vpop.f32.mrb[0].mxu0
        %v870 = vadd.f32 0.0, %v869
        %871 = vmatprep.mubr.bf16.mxu0 0
        %872 = vmatmul.mubr.bf16.gmra.mrb[0].mxu0 %v675
        %v873 = vpop.f32.mrb[0].mxu0
        %v874 = vadd.f32 0.0, %v873
        %v875 = vpop.f32.mrb[0].mxu0
        %v876 = vadd.f32 0.0, %v875
        %v877 = vpop.f32.mrb[0].mxu0
        %v878 = vadd.f32 0.0, %v877
        %v879 = vpop.f32.mrb[0].mxu0
        %v880 = vadd.f32 0.0, %v879
        %881 = vmatprep.mubr.bf16.mxu0 0
        %882 = vmatmul.mubr.bf16.gmra.mrb[0].mxu0 %v678
        %v883 = vpop.f32.mrb[0].mxu0
        %v884 = vadd.f32 0.0, %v883
        %v885 = vpop.f32.mrb[0].mxu0
        %v886 = vadd.f32 0.0, %v885
        %v887 = vpop.f32.mrb[0].mxu0
        %v888 = vadd.f32 0.0, %v887
        %v889 = vpop.f32.mrb[0].mxu0
        %v890 = vadd.f32 0.0, %v889
        %891 = vmatprep.mubr.bf16.mxu0 0
        %892 = vmatmul.mubr.bf16.gmra.mrb[0].mxu0 %v681
        %v893 = vpop.f32.mrb[0].mxu0
        %v894 = vadd.f32 0.0, %v893
        %v895 = vpop.f32.mrb[0].mxu0
        %v896 = vadd.f32 0.0, %v895
        %v897 = vpop.f32.mrb[0].mxu0
        %v898 = vadd.f32 0.0, %v897
        %v899 = vpop.f32.mrb[0].mxu0
        %v900 = vadd.f32 0.0, %v899
        %901 = vmatprep.mubr.bf16.mxu0 0
        %902 = vmatmul.mubr.bf16.gmra.mrb[0].mxu0 %v684
        %v903 = vpop.f32.mrb[0].mxu0
        %v904 = vadd.f32 0.0, %v903
        %v905 = vpop.f32.mrb[0].mxu0
        %v906 = vadd.f32 0.0, %v905
        %v907 = vpop.f32.mrb[0].mxu0
        %v908 = vadd.f32 0.0, %v907
        %v909 = vpop.f32.mrb[0].mxu0
        %v910 = vadd.f32 0.0, %v909
        %911 = vdwg.mxu0
        %v912 = vmax.f32 %v721, %v723
        %v913 = vmax.f32 %v912, %v834
        %v914 = vmax.f32 %v913, %v836
        %915 = vmax.xlane.f32.xlu0 %v914
        %v916 = vpop.xlane.xlu0 %915
        %v917 = vmax.f32 %v725, %v727
        %v918 = vmax.f32 %v917, %v838
        %v919 = vmax.f32 %v918, %v840
        %920 = vmax.xlane.f32.xlu0 %v919
        %v921 = vpop.xlane.xlu0 %920
        %v922 = vmax.f32 %v731, %v733
        %v923 = vmax.f32 %v922, %v844
        %v924 = vmax.f32 %v923, %v846
        %925 = vmax.xlane.f32.xlu0 %v924
        %v926 = vpop.xlane.xlu0 %925
        %v927 = vmax.f32 %v735, %v737
        %v928 = vmax.f32 %v927, %v848
        %v929 = vmax.f32 %v928, %v850
        %930 = vmax.xlane.f32.xlu0 %v929
        %v931 = vpop.xlane.xlu0 %930
        %v932 = vmax.f32 %v741, %v743
        %v933 = vmax.f32 %v932, %v854
        %v934 = vmax.f32 %v933, %v856
        %935 = vmax.xlane.f32.xlu0 %v934
        %v936 = vpop.xlane.xlu0 %935
        %v937 = vmax.f32 %v745, %v747
        %v938 = vmax.f32 %v937, %v858
        %v939 = vmax.f32 %v938, %v860
        %940 = vmax.xlane.f32.xlu0 %v939
        %v941 = vpop.xlane.xlu0 %940
        %v942 = vmax.f32 %v751, %v753
        %v943 = vmax.f32 %v942, %v864
        %v944 = vmax.f32 %v943, %v866
        %945 = vmax.xlane.f32.xlu0 %v944
        %v946 = vpop.xlane.xlu0 %945
        %v947 = vmax.f32 %v755, %v757
        %v948 = vmax.f32 %v947, %v868
        %v949 = vmax.f32 %v948, %v870
        %950 = vmax.xlane.f32.xlu0 %v949
        %v951 = vpop.xlane.xlu0 %950
        %v952 = vmax.f32 %v761, %v763
        %v953 = vmax.f32 %v952, %v874
        %v954 = vmax.f32 %v953, %v876
        %955 = vmax.xlane.f32.xlu0 %v954
        %v956 = vpop.xlane.xlu0 %955
        %v957 = vmax.f32 %v765, %v767
        %v958 = vmax.f32 %v957, %v878
        %v959 = vmax.f32 %v958, %v880
        %960 = vmax.xlane.f32.xlu0 %v959
        %v961 = vpop.xlane.xlu0 %960
        %v962 = vmax.f32 %v771, %v773
        %v963 = vmax.f32 %v962, %v884
        %v964 = vmax.f32 %v963, %v886
        %965 = vmax.xlane.f32.xlu0 %v964
        %v966 = vpop.xlane.xlu0 %965
        %v967 = vmax.f32 %v775, %v777
        %v968 = vmax.f32 %v967, %v888
        %v969 = vmax.f32 %v968, %v890
        %970 = vmax.xlane.f32.xlu0 %v969
        %v971 = vpop.xlane.xlu0 %970
        %v972 = vmax.f32 %v781, %v783
        %v973 = vmax.f32 %v972, %v894
        %v974 = vmax.f32 %v973, %v896
        %975 = vmax.xlane.f32.xlu0 %v974
        %v976 = vpop.xlane.xlu0 %975
        %v977 = vmax.f32 %v785, %v787
        %v978 = vmax.f32 %v977, %v898
        %v979 = vmax.f32 %v978, %v900
        %980 = vmax.xlane.f32.xlu0 %v979
        %v981 = vpop.xlane.xlu0 %980
        %v982 = vmax.f32 %v791, %v793
        %v983 = vmax.f32 %v982, %v904
        %v984 = vmax.f32 %v983, %v906
        %985 = vmax.xlane.f32.xlu0 %v984
        %v986 = vpop.xlane.xlu0 %985
        %v987 = vmax.f32 %v795, %v797
        %v988 = vmax.f32 %v987, %v908
        %v989 = vmax.f32 %v988, %v910
        %990 = vmax.xlane.f32.xlu0 %v989
        %v991 = vpop.xlane.xlu0 %990
        %v992 = vsub.f32 %v721, %v916
        %v993 = vsub.f32 %v723, %v916
        %v994 = vsub.f32 %v834, %v916
        %v995 = vsub.f32 %v836, %v916
        %v996 = vsub.f32 %v725, %v921
        %v997 = vsub.f32 %v727, %v921
        %v998 = vsub.f32 %v838, %v921
        %v999 = vsub.f32 %v840, %v921
        %v1000 = vsub.f32 %v731, %v926
        %v1001 = vsub.f32 %v733, %v926
        %v1002 = vsub.f32 %v844, %v926
        %v1003 = vsub.f32 %v846, %v926
        %v1004 = vsub.f32 %v735, %v931
        %v1005 = vsub.f32 %v737, %v931
        %v1006 = vsub.f32 %v848, %v931
        %v1007 = vsub.f32 %v850, %v931
        %v1008 = vsub.f32 %v741, %v936
        %v1009 = vsub.f32 %v743, %v936
        %v1010 = vsub.f32 %v854, %v936
        %v1011 = vsub.f32 %v856, %v936
        %v1012 = vsub.f32 %v745, %v941
        %v1013 = vsub.f32 %v747, %v941
        %v1014 = vsub.f32 %v858, %v941
        %v1015 = vsub.f32 %v860, %v941
        %v1016 = vsub.f32 %v751, %v946
        %v1017 = vsub.f32 %v753, %v946
        %v1018 = vsub.f32 %v864, %v946
        %v1019 = vsub.f32 %v866, %v946
        %v1020 = vsub.f32 %v755, %v951
        %v1021 = vsub.f32 %v757, %v951
        %v1022 = vsub.f32 %v868, %v951
        %v1023 = vsub.f32 %v870, %v951
        %v1024 = vsub.f32 %v761, %v956
        %v1025 = vsub.f32 %v763, %v956
        %v1026 = vsub.f32 %v874, %v956
        %v1027 = vsub.f32 %v876, %v956
        %v1028 = vsub.f32 %v765, %v961
        %v1029 = vsub.f32 %v767, %v961
        %v1030 = vsub.f32 %v878, %v961
        %v1031 = vsub.f32 %v880, %v961
        %v1032 = vsub.f32 %v771, %v966
        %v1033 = vsub.f32 %v773, %v966
        %v1034 = vsub.f32 %v884, %v966
        %v1035 = vsub.f32 %v886, %v966
        %v1036 = vsub.f32 %v775, %v971
        %v1037 = vsub.f32 %v777, %v971
        %v1038 = vsub.f32 %v888, %v971
        %v1039 = vsub.f32 %v890, %v971
        %v1040 = vsub.f32 %v781, %v976
        %v1041 = vsub.f32 %v783, %v976
        %v1042 = vsub.f32 %v894, %v976
        %v1043 = vsub.f32 %v896, %v976
        %v1044 = vsub.f32 %v785, %v981
        %v1045 = vsub.f32 %v787, %v981
        %v1046 = vsub.f32 %v898, %v981
        %v1047 = vsub.f32 %v900, %v981
        %v1048 = vsub.f32 %v791, %v986
        %v1049 = vsub.f32 %v793, %v986
        %v1050 = vsub.f32 %v904, %v986
        %v1051 = vsub.f32 %v906, %v986
        %v1052 = vsub.f32 %v795, %v991
        %v1053 = vsub.f32 %v797, %v991
        %v1054 = vsub.f32 %v908, %v991
        %v1055 = vsub.f32 %v910, %v991
        %v1056 = vpack.c.bf16 %v996, %v992
        %v1057 = vpack.c.bf16 %v997, %v993
        %v1058 = vpack.c.bf16 %v998, %v994
        %v1059 = vpack.c.bf16 %v999, %v995
        %v1060 = vpack.c.bf16 %v1004, %v1000
        %v1061 = vpack.c.bf16 %v1005, %v1001
        %v1062 = vpack.c.bf16 %v1006, %v1002
        %v1063 = vpack.c.bf16 %v1007, %v1003
        %v1064 = vpack.c.bf16 %v1012, %v1008
        %v1065 = vpack.c.bf16 %v1013, %v1009
        %v1066 = vpack.c.bf16 %v1014, %v1010
        %v1067 = vpack.c.bf16 %v1015, %v1011
        %v1068 = vpack.c.bf16 %v1020, %v1016
        %v1069 = vpack.c.bf16 %v1021, %v1017
        %v1070 = vpack.c.bf16 %v1022, %v1018
        %v1071 = vpack.c.bf16 %v1023, %v1019
        %v1072 = vpack.c.bf16 %v1028, %v1024
        %v1073 = vpack.c.bf16 %v1029, %v1025
        %v1074 = vpack.c.bf16 %v1030, %v1026
        %v1075 = vpack.c.bf16 %v1031, %v1027
        %v1076 = vpack.c.bf16 %v1036, %v1032
        %v1077 = vpack.c.bf16 %v1037, %v1033
        %v1078 = vpack.c.bf16 %v1038, %v1034
        %v1079 = vpack.c.bf16 %v1039, %v1035
        %v1080 = vpack.c.bf16 %v1044, %v1040
        %v1081 = vpack.c.bf16 %v1045, %v1041
        %v1082 = vpack.c.bf16 %v1046, %v1042
        %v1083 = vpack.c.bf16 %v1047, %v1043
        %v1084 = vpack.c.bf16 %v1052, %v1048
        %v1085 = vpack.c.bf16 %v1053, %v1049
        %v1086 = vpack.c.bf16 %v1054, %v1050
        %v1087 = vpack.c.bf16 %v1055, %v1051
        %v1089 = vmul.bf16 %v1056, 1069105081
        %v1090 = vpow.bf16.pop %v1089
        %v1092 = vmul.bf16 %v1057, 1069105081
        %v1093 = vpow.bf16.pop %v1092
        %v1095 = vmul.bf16 %v1058, 1069105081
        %v1096 = vpow.bf16.pop %v1095
        %v1098 = vmul.bf16 %v1059, 1069105081
        %v1099 = vpow.bf16.pop %v1098
        %v1101 = vmul.bf16 %v1060, 1069105081
        %v1102 = vpow.bf16.pop %v1101
        %v1104 = vmul.bf16 %v1061, 1069105081
        %v1105 = vpow.bf16.pop %v1104
        %v1107 = vmul.bf16 %v1062, 1069105081
        %v1108 = vpow.bf16.pop %v1107
        %v1110 = vmul.bf16 %v1063, 1069105081
        %v1111 = vpow.bf16.pop %v1110
        %v1113 = vmul.bf16 %v1064, 1069105081
        %v1114 = vpow.bf16.pop %v1113
        %v1116 = vmul.bf16 %v1065, 1069105081
        %v1117 = vpow.bf16.pop %v1116
        %v1119 = vmul.bf16 %v1066, 1069105081
        %v1120 = vpow.bf16.pop %v1119
        %v1122 = vmul.bf16 %v1067, 1069105081
        %v1123 = vpow.bf16.pop %v1122
        %v1125 = vmul.bf16 %v1068, 1069105081
        %v1126 = vpow.bf16.pop %v1125
        %v1128 = vmul.bf16 %v1069, 1069105081
        %v1129 = vpow.bf16.pop %v1128
        %v1131 = vmul.bf16 %v1070, 1069105081
        %v1132 = vpow.bf16.pop %v1131
        %v1134 = vmul.bf16 %v1071, 1069105081
        %v1135 = vpow.bf16.pop %v1134
        %v1137 = vmul.bf16 %v1072, 1069105081
        %v1138 = vpow.bf16.pop %v1137
        %v1140 = vmul.bf16 %v1073, 1069105081
        %v1141 = vpow.bf16.pop %v1140
        %v1143 = vmul.bf16 %v1074, 1069105081
        %v1144 = vpow.bf16.pop %v1143
        %v1146 = vmul.bf16 %v1075, 1069105081
        %v1147 = vpow.bf16.pop %v1146
        %v1149 = vmul.bf16 %v1076, 1069105081
        %v1150 = vpow.bf16.pop %v1149
        %v1152 = vmul.bf16 %v1077, 1069105081
        %v1153 = vpow.bf16.pop %v1152
        %v1155 = vmul.bf16 %v1078, 1069105081
        %v1156 = vpow.bf16.pop %v1155
        %v1158 = vmul.bf16 %v1079, 1069105081
        %v1159 = vpow.bf16.pop %v1158
        %v1161 = vmul.bf16 %v1080, 1069105081
        %v1162 = vpow.bf16.pop %v1161
        %v1164 = vmul.bf16 %v1081, 1069105081
        %v1165 = vpow.bf16.pop %v1164
        %v1167 = vmul.bf16 %v1082, 1069105081
        %v1168 = vpow.bf16.pop %v1167
        %v1170 = vmul.bf16 %v1083, 1069105081
        %v1171 = vpow.bf16.pop %v1170
        %v1173 = vmul.bf16 %v1084, 1069105081
        %v1174 = vpow.bf16.pop %v1173
        %v1176 = vmul.bf16 %v1085, 1069105081
        %v1177 = vpow.bf16.pop %v1176
        %v1179 = vmul.bf16 %v1086, 1069105081
        %v1180 = vpow.bf16.pop %v1179
        %v1182 = vmul.bf16 %v1087, 1069105081
        %v1183 = vpow.bf16.pop %v1182
        %v1184 = vmul.bf16 %v610, %v1090
        %v1185 = vmul.bf16 %v611, %v1093
        %v1186 = vmul.bf16 %v612, %v1096
        %v1187 = vmul.bf16 %v613, %v1099
        %v1188 = vmul.bf16 %v614, %v1102
        %v1189 = vmul.bf16 %v615, %v1105
        %v1190 = vmul.bf16 %v616, %v1108
        %v1191 = vmul.bf16 %v617, %v1111
        %v1192 = vmul.bf16 %v618, %v1114
        %v1193 = vmul.bf16 %v619, %v1117
        %v1194 = vmul.bf16 %v620, %v1120
        %v1195 = vmul.bf16 %v621, %v1123
        %v1196 = vmul.bf16 %v622, %v1126
        %v1197 = vmul.bf16 %v623, %v1129
        %v1198 = vmul.bf16 %v624, %v1132
        %v1199 = vmul.bf16 %v625, %v1135
        %v1200 = vmul.bf16 %v626, %v1138
        %v1201 = vmul.bf16 %v627, %v1141
        %v1202 = vmul.bf16 %v628, %v1144
        %v1203 = vmul.bf16 %v629, %v1147
        %v1204 = vmul.bf16 %v630, %v1150
        %v1205 = vmul.bf16 %v631, %v1153
        %v1206 = vmul.bf16 %v632, %v1156
        %v1207 = vmul.bf16 %v633, %v1159
        %v1208 = vmul.bf16 %v634, %v1162
        %v1209 = vmul.bf16 %v635, %v1165
        %v1210 = vmul.bf16 %v636, %v1168
        %v1211 = vmul.bf16 %v637, %v1171
        %v1212 = vmul.bf16 %v638, %v1174
        %v1213 = vmul.bf16 %v639, %v1177
        %v1214 = vmul.bf16 %v640, %v1180
        %v1215 = vmul.bf16 %v641, %v1183
        %v1216 = vunpack.c.l.bf16 %v1184
        %v1217 = vunpack.c.l.bf16 %v1185
        %v1218 = vunpack.c.l.bf16 %v1186
        %v1219 = vunpack.c.l.bf16 %v1187
        %v1220 = vunpack.c.h.bf16 %v1184
        %v1221 = vunpack.c.h.bf16 %v1185
        %v1222 = vunpack.c.h.bf16 %v1186
        %v1223 = vunpack.c.h.bf16 %v1187
        %v1224 = vunpack.c.l.bf16 %v1188
        %v1225 = vunpack.c.l.bf16 %v1189
        %v1226 = vunpack.c.l.bf16 %v1190
        %v1227 = vunpack.c.l.bf16 %v1191
        %v1228 = vunpack.c.h.bf16 %v1188
        %v1229 = vunpack.c.h.bf16 %v1189
        %v1230 = vunpack.c.h.bf16 %v1190
        %v1231 = vunpack.c.h.bf16 %v1191
        %v1232 = vunpack.c.l.bf16 %v1192
        %v1233 = vunpack.c.l.bf16 %v1193
        %v1234 = vunpack.c.l.bf16 %v1194
        %v1235 = vunpack.c.l.bf16 %v1195
        %v1236 = vunpack.c.h.bf16 %v1192
        %v1237 = vunpack.c.h.bf16 %v1193
        %v1238 = vunpack.c.h.bf16 %v1194
        %v1239 = vunpack.c.h.bf16 %v1195
        %v1240 = vunpack.c.l.bf16 %v1196
        %v1241 = vunpack.c.l.bf16 %v1197
        %v1242 = vunpack.c.l.bf16 %v1198
        %v1243 = vunpack.c.l.bf16 %v1199
        %v1244 = vunpack.c.h.bf16 %v1196
        %v1245 = vunpack.c.h.bf16 %v1197
        %v1246 = vunpack.c.h.bf16 %v1198
        %v1247 = vunpack.c.h.bf16 %v1199
        %v1248 = vunpack.c.l.bf16 %v1200
        %v1249 = vunpack.c.l.bf16 %v1201
        %v1250 = vunpack.c.l.bf16 %v1202
        %v1251 = vunpack.c.l.bf16 %v1203
        %v1252 = vunpack.c.h.bf16 %v1200
        %v1253 = vunpack.c.h.bf16 %v1201
        %v1254 = vunpack.c.h.bf16 %v1202
        %v1255 = vunpack.c.h.bf16 %v1203
        %v1256 = vunpack.c.l.bf16 %v1204
        %v1257 = vunpack.c.l.bf16 %v1205
        %v1258 = vunpack.c.l.bf16 %v1206
        %v1259 = vunpack.c.l.bf16 %v1207
        %v1260 = vunpack.c.h.bf16 %v1204
        %v1261 = vunpack.c.h.bf16 %v1205
        %v1262 = vunpack.c.h.bf16 %v1206
        %v1263 = vunpack.c.h.bf16 %v1207
        %v1264 = vunpack.c.l.bf16 %v1208
        %v1265 = vunpack.c.l.bf16 %v1209
        %v1266 = vunpack.c.l.bf16 %v1210
        %v1267 = vunpack.c.l.bf16 %v1211
        %v1268 = vunpack.c.h.bf16 %v1208
        %v1269 = vunpack.c.h.bf16 %v1209
        %v1270 = vunpack.c.h.bf16 %v1210
        %v1271 = vunpack.c.h.bf16 %v1211
        %v1272 = vunpack.c.l.bf16 %v1212
        %v1273 = vunpack.c.l.bf16 %v1213
        %v1274 = vunpack.c.l.bf16 %v1214
        %v1275 = vunpack.c.l.bf16 %v1215
        %v1276 = vunpack.c.h.bf16 %v1212
        %v1277 = vunpack.c.h.bf16 %v1213
        %v1278 = vunpack.c.h.bf16 %v1214
        %v1279 = vunpack.c.h.bf16 %v1215
        %v1280 = vadd.f32 %v1216, %v1217
        %v1281 = vadd.f32 %v1280, %v1218
        %v1282 = vadd.f32 %v1281, %v1219
        %1283 = vadd.xlane.f32.xlu0 %v1282
        %v1284 = vpop.xlane.xlu0 %1283
        %v1285 = vadd.f32 %v1220, %v1221
        %v1286 = vadd.f32 %v1285, %v1222
        %v1287 = vadd.f32 %v1286, %v1223
        %1288 = vadd.xlane.f32.xlu0 %v1287
        %v1289 = vpop.xlane.xlu0 %1288
        %v1290 = vadd.f32 %v1224, %v1225
        %v1291 = vadd.f32 %v1290, %v1226
        %v1292 = vadd.f32 %v1291, %v1227
        %1293 = vadd.xlane.f32.xlu0 %v1292
        %v1294 = vpop.xlane.xlu0 %1293
        %v1295 = vadd.f32 %v1228, %v1229
        %v1296 = vadd.f32 %v1295, %v1230
        %v1297 = vadd.f32 %v1296, %v1231
        %1298 = vadd.xlane.f32.xlu0 %v1297
        %v1299 = vpop.xlane.xlu0 %1298
        %v1300 = vadd.f32 %v1232, %v1233
        %v1301 = vadd.f32 %v1300, %v1234
        %v1302 = vadd.f32 %v1301, %v1235
        %1303 = vadd.xlane.f32.xlu0 %v1302
        %v1304 = vpop.xlane.xlu0 %1303
        %v1305 = vadd.f32 %v1236, %v1237
        %v1306 = vadd.f32 %v1305, %v1238
        %v1307 = vadd.f32 %v1306, %v1239
        %1308 = vadd.xlane.f32.xlu0 %v1307
        %v1309 = vpop.xlane.xlu0 %1308
        %v1310 = vadd.f32 %v1240, %v1241
        %v1311 = vadd.f32 %v1310, %v1242
        %v1312 = vadd.f32 %v1311, %v1243
        %1313 = vadd.xlane.f32.xlu0 %v1312
        %v1314 = vpop.xlane.xlu0 %1313
        %v1315 = vadd.f32 %v1244, %v1245
        %v1316 = vadd.f32 %v1315, %v1246
        %v1317 = vadd.f32 %v1316, %v1247
        %1318 = vadd.xlane.f32.xlu0 %v1317
        %v1319 = vpop.xlane.xlu0 %1318
        %v1320 = vadd.f32 %v1248, %v1249
        %v1321 = vadd.f32 %v1320, %v1250
        %v1322 = vadd.f32 %v1321, %v1251
        %1323 = vadd.xlane.f32.xlu0 %v1322
        %v1324 = vpop.xlane.xlu0 %1323
        %v1325 = vadd.f32 %v1252, %v1253
        %v1326 = vadd.f32 %v1325, %v1254
        %v1327 = vadd.f32 %v1326, %v1255
        %1328 = vadd.xlane.f32.xlu0 %v1327
        %v1329 = vpop.xlane.xlu0 %1328
        %v1330 = vadd.f32 %v1256, %v1257
        %v1331 = vadd.f32 %v1330, %v1258
        %v1332 = vadd.f32 %v1331, %v1259
        %1333 = vadd.xlane.f32.xlu0 %v1332
        %v1334 = vpop.xlane.xlu0 %1333
        %v1335 = vadd.f32 %v1260, %v1261
        %v1336 = vadd.f32 %v1335, %v1262
        %v1337 = vadd.f32 %v1336, %v1263
        %1338 = vadd.xlane.f32.xlu0 %v1337
        %v1339 = vpop.xlane.xlu0 %1338
        %v1340 = vadd.f32 %v1264, %v1265
        %v1341 = vadd.f32 %v1340, %v1266
        %v1342 = vadd.f32 %v1341, %v1267
        %1343 = vadd.xlane.f32.xlu0 %v1342
        %v1344 = vpop.xlane.xlu0 %1343
        %v1345 = vadd.f32 %v1268, %v1269
        %v1346 = vadd.f32 %v1345, %v1270
        %v1347 = vadd.f32 %v1346, %v1271
        %1348 = vadd.xlane.f32.xlu0 %v1347
        %v1349 = vpop.xlane.xlu0 %1348
        %v1350 = vadd.f32 %v1272, %v1273
        %v1351 = vadd.f32 %v1350, %v1274
        %v1352 = vadd.f32 %v1351, %v1275
        %1353 = vadd.xlane.f32.xlu0 %v1352
        %v1354 = vpop.xlane.xlu0 %1353
        %v1355 = vadd.f32 %v1276, %v1277
        %v1356 = vadd.f32 %v1355, %v1278
        %v1357 = vadd.f32 %v1356, %v1279
        %1358 = vadd.xlane.f32.xlu0 %v1357
        %v1359 = vpop.xlane.xlu0 %1358
        %vm1360 = vcmp.gt.f32.partialorder %v1284, 0.0
        %vm1361 = vcmp.gt.f32.partialorder %v1289, 0.0
        %vm1362 = vcmp.gt.f32.partialorder %v1294, 0.0
        %vm1363 = vcmp.gt.f32.partialorder %v1299, 0.0
        %vm1364 = vcmp.gt.f32.partialorder %v1304, 0.0
        %vm1365 = vcmp.gt.f32.partialorder %v1309, 0.0
        %vm1366 = vcmp.gt.f32.partialorder %v1314, 0.0
        %vm1367 = vcmp.gt.f32.partialorder %v1319, 0.0
        %vm1368 = vcmp.gt.f32.partialorder %v1324, 0.0
        %vm1369 = vcmp.gt.f32.partialorder %v1329, 0.0
        %vm1370 = vcmp.gt.f32.partialorder %v1334, 0.0
        %vm1371 = vcmp.gt.f32.partialorder %v1339, 0.0
        %vm1372 = vcmp.gt.f32.partialorder %v1344, 0.0
        %vm1373 = vcmp.gt.f32.partialorder %v1349, 0.0
        %vm1374 = vcmp.gt.f32.partialorder %v1354, 0.0
        %vm1375 = vcmp.gt.f32.partialorder %v1359, 0.0
        %v1376 = vsel %vm1360, %v1284, 1.0
        %v1377 = vsel %vm1361, %v1289, 1.0
        %v1378 = vsel %vm1362, %v1294, 1.0
        %v1379 = vsel %vm1363, %v1299, 1.0
        %v1380 = vsel %vm1364, %v1304, 1.0
        %v1381 = vsel %vm1365, %v1309, 1.0
        %v1382 = vsel %vm1366, %v1314, 1.0
        %v1383 = vsel %vm1367, %v1319, 1.0
        %v1384 = vsel %vm1368, %v1324, 1.0
        %v1385 = vsel %vm1369, %v1329, 1.0
        %v1386 = vsel %vm1370, %v1334, 1.0
        %v1387 = vsel %vm1371, %v1339, 1.0
        %v1388 = vsel %vm1372, %v1344, 1.0
        %v1389 = vsel %vm1373, %v1349, 1.0
        %v1390 = vsel %vm1374, %v1354, 1.0
        %v1391 = vsel %vm1375, %v1359, 1.0
        %v1392 = vrcp.pop %v1376
        %v1393 = vrcp.pop %v1377
        %v1394 = vrcp.pop %v1378
        %v1395 = vrcp.pop %v1379
        %v1396 = vrcp.pop %v1380
        %v1397 = vrcp.pop %v1381
        %v1398 = vrcp.pop %v1382
        %v1399 = vrcp.pop %v1383
        %v1400 = vrcp.pop %v1384
        %v1401 = vrcp.pop %v1385
        %v1402 = vrcp.pop %v1386
        %v1403 = vrcp.pop %v1387
        %v1404 = vrcp.pop %v1388
        %v1405 = vrcp.pop %v1389
        %v1406 = vrcp.pop %v1390
        %v1407 = vrcp.pop %v1391
        %v1472 = vunpack.c.l.b16 %v345
        %v1473 = vunpack.c.l.b16 %v346
        %v1474 = vunpack.c.l.b16 %v347
        %v1475 = vunpack.c.l.b16 %v348
        %v1476 = vunpack.c.l.b16 %v349
        %v1477 = vunpack.c.l.b16 %v350
        %v1478 = vunpack.c.l.b16 %v351
        %v1479 = vunpack.c.l.b16 %v352
        %v1480 = vunpack.c.l.b16 %v353
        %v1481 = vunpack.c.l.b16 %v354
        %v1482 = vunpack.c.l.b16 %v355
        %v1483 = vunpack.c.l.b16 %v356
        %v1484 = vunpack.c.l.b16 %v357
        %v1485 = vunpack.c.l.b16 %v358
        %v1486 = vunpack.c.l.b16 %v359
        %v1487 = vunpack.c.l.b16 %v360
        %v1488 = vunpack.c.l.b16 %v361
        %v1489 = vunpack.c.l.b16 %v362
        %v1490 = vunpack.c.l.b16 %v363
        %v1491 = vunpack.c.l.b16 %v364
        %v1492 = vunpack.c.l.b16 %v365
        %v1493 = vunpack.c.l.b16 %v366
        %v1494 = vunpack.c.l.b16 %v367
        %v1495 = vunpack.c.l.b16 %v368
        %v1496 = vunpack.c.l.b16 %v369
        %v1497 = vunpack.c.l.b16 %v370
        %v1498 = vunpack.c.l.b16 %v371
        %v1499 = vunpack.c.l.b16 %v372
        %v1500 = vunpack.c.l.b16 %v373
        %v1501 = vunpack.c.l.b16 %v374
        %v1502 = vunpack.c.l.b16 %v375
        %v1503 = vunpack.c.l.b16 %v376
        %v1504 = vunpack.c.l.b16 %v377
        %v1505 = vunpack.c.l.b16 %v378
        %v1506 = vunpack.c.l.b16 %v379
        %v1507 = vunpack.c.l.b16 %v380
        %v1508 = vunpack.c.l.b16 %v381
        %v1509 = vunpack.c.l.b16 %v382
        %v1510 = vunpack.c.l.b16 %v383
        %v1511 = vunpack.c.l.b16 %v384
        %v1512 = vunpack.c.l.b16 %v385
        %v1513 = vunpack.c.l.b16 %v386
        %v1514 = vunpack.c.l.b16 %v387
        %v1515 = vunpack.c.l.b16 %v388
        %v1516 = vunpack.c.l.b16 %v389
        %v1517 = vunpack.c.l.b16 %v390
        %v1518 = vunpack.c.l.b16 %v391
        %v1519 = vunpack.c.l.b16 %v392
        %v1520 = vunpack.c.l.b16 %v393
        %v1521 = vunpack.c.l.b16 %v394
        %v1522 = vunpack.c.l.b16 %v395
        %v1523 = vunpack.c.l.b16 %v396
        %v1524 = vunpack.c.l.b16 %v397
        %v1525 = vunpack.c.l.b16 %v398
        %v1526 = vunpack.c.l.b16 %v399
        %v1527 = vunpack.c.l.b16 %v400
        %v1528 = vunpack.c.l.b16 %v401
        %v1529 = vunpack.c.l.b16 %v402
        %v1530 = vunpack.c.l.b16 %v403
        %v1531 = vunpack.c.l.b16 %v404
        %v1532 = vunpack.c.l.b16 %v405
        %v1533 = vunpack.c.l.b16 %v406
        %v1534 = vunpack.c.l.b16 %v407
        %v1535 = vunpack.c.l.b16 %v408
        %v1536 = vpack.c.b16 %v1473, %v1472
        %v1537 = vpack.c.b16 %v1475, %v1474
        %v1538 = vpack.c.b16 %v1477, %v1476
        %v1539 = vpack.c.b16 %v1479, %v1478
        %v1540 = vpack.c.b16 %v1481, %v1480
        %v1541 = vpack.c.b16 %v1483, %v1482
        %v1542 = vpack.c.b16 %v1485, %v1484
        %v1543 = vpack.c.b16 %v1487, %v1486
        %v1544 = vpack.c.b16 %v1489, %v1488
        %v1545 = vpack.c.b16 %v1491, %v1490
        %v1546 = vpack.c.b16 %v1493, %v1492
        %v1547 = vpack.c.b16 %v1495, %v1494
        %v1548 = vpack.c.b16 %v1497, %v1496
        %v1549 = vpack.c.b16 %v1499, %v1498
        %v1550 = vpack.c.b16 %v1501, %v1500
        %v1551 = vpack.c.b16 %v1503, %v1502
        %v1552 = vpack.c.b16 %v1505, %v1504
        %v1553 = vpack.c.b16 %v1507, %v1506
        %v1554 = vpack.c.b16 %v1509, %v1508
        %v1555 = vpack.c.b16 %v1511, %v1510
        %v1556 = vpack.c.b16 %v1513, %v1512
        %v1557 = vpack.c.b16 %v1515, %v1514
        %v1558 = vpack.c.b16 %v1517, %v1516
        %v1559 = vpack.c.b16 %v1519, %v1518
        %v1560 = vpack.c.b16 %v1521, %v1520
        %v1561 = vpack.c.b16 %v1523, %v1522
        %v1562 = vpack.c.b16 %v1525, %v1524
        %v1563 = vpack.c.b16 %v1527, %v1526
        %v1564 = vpack.c.b16 %v1529, %v1528
        %v1565 = vpack.c.b16 %v1531, %v1530
        %v1566 = vpack.c.b16 %v1533, %v1532
        %v1567 = vpack.c.b16 %v1535, %v1534
        %1600 = vmatprep.subr.bf16.mxu0 0
        %1601 = vmatpush1.bf16.msra.mxu0 %v1536
        %1602 = vmatprep.subr.bf16.mxu0 0
        %1603 = vmatpush1.bf16.msra.mxu0 %v1537
        %1604 = vmatprep.subr.bf16.mxu0 0
        %1605 = vmatpush1.bf16.msra.mxu0 %v1538
        %1606 = vmatprep.subr.bf16.mxu0 0
        %1607 = vmatpush1.bf16.msra.mxu0 %v1539
        %1608 = vmatprep.subr.bf16.mxu0 0
        %1609 = vmatpush1.bf16.msra.mxu0 %v1540
        %1610 = vmatprep.subr.bf16.mxu0 0
        %1611 = vmatpush1.bf16.msra.mxu0 %v1541
        %1612 = vmatprep.subr.bf16.mxu0 0
        %1613 = vmatpush1.bf16.msra.mxu0 %v1542
        %1614 = vmatprep.subr.bf16.mxu0 0
        %1615 = vmatpush1.bf16.msra.mxu0 %v1543
        %1616 = vmatprep.subr.bf16.mxu0 0
        %1617 = vmatpush1.bf16.msra.mxu0 %v1544
        %1618 = vmatprep.subr.bf16.mxu0 0
        %1619 = vmatpush1.bf16.msra.mxu0 %v1545
        %1620 = vmatprep.subr.bf16.mxu0 0
        %1621 = vmatpush1.bf16.msra.mxu0 %v1546
        %1622 = vmatprep.subr.bf16.mxu0 0
        %1623 = vmatpush1.bf16.msra.mxu0 %v1547
        %1624 = vmatprep.subr.bf16.mxu0 0
        %1625 = vmatpush1.bf16.msra.mxu0 %v1548
        %1626 = vmatprep.subr.bf16.mxu0 0
        %1627 = vmatpush1.bf16.msra.mxu0 %v1549
        %1628 = vmatprep.subr.bf16.mxu0 0
        %1629 = vmatpush1.bf16.msra.mxu0 %v1550
        %1630 = vmatprep.subr.bf16.mxu0 0
        %1631 = vmatpush1.bf16.msra.mxu0 %v1551
        %1632 = vmatprep.mubr.bf16.mxu0 %v1185
        %1633 = vmatmul.mubr.bf16.gmra.mrb[0].mxu0 %v1184
        %v1634 = vpop.f32.mrb[0].mxu0
        %v1635 = vadd.f32 0.0, %v1634
        %v1636 = vpop.f32.mrb[0].mxu0
        %v1637 = vpop.f32.mrb[0].mxu0
        %v1638 = vadd.f32 0.0, %v1637
        %v1639 = vpop.f32.mrb[0].mxu0
        %1640 = vmatprep.mubr.bf16.mxu0 %v1189
        %1641 = vmatmul.mubr.bf16.gmra.mrb[0].mxu0 %v1188
        %v1642 = vpop.f32.mrb[0].mxu0
        %v1643 = vadd.f32 0.0, %v1642
        %v1644 = vpop.f32.mrb[0].mxu0
        %v1645 = vpop.f32.mrb[0].mxu0
        %v1646 = vadd.f32 0.0, %v1645
        %v1647 = vpop.f32.mrb[0].mxu0
        %1648 = vmatprep.mubr.bf16.mxu0 %v1193
        %1649 = vmatmul.mubr.bf16.gmra.mrb[0].mxu0 %v1192
        %v1650 = vpop.f32.mrb[0].mxu0
        %v1651 = vadd.f32 0.0, %v1650
        %v1652 = vpop.f32.mrb[0].mxu0
        %v1653 = vpop.f32.mrb[0].mxu0
        %v1654 = vadd.f32 0.0, %v1653
        %v1655 = vpop.f32.mrb[0].mxu0
        %1656 = vmatprep.mubr.bf16.mxu0 %v1197
        %1657 = vmatmul.mubr.bf16.gmra.mrb[0].mxu0 %v1196
        %v1658 = vpop.f32.mrb[0].mxu0
        %v1659 = vadd.f32 0.0, %v1658
        %v1660 = vpop.f32.mrb[0].mxu0
        %v1661 = vpop.f32.mrb[0].mxu0
        %v1662 = vadd.f32 0.0, %v1661
        %v1663 = vpop.f32.mrb[0].mxu0
        %1664 = vmatprep.mubr.bf16.mxu0 %v1201
        %1665 = vmatmul.mubr.bf16.gmra.mrb[0].mxu0 %v1200
        %v1666 = vpop.f32.mrb[0].mxu0
        %v1667 = vadd.f32 0.0, %v1666
        %v1668 = vpop.f32.mrb[0].mxu0
        %v1669 = vpop.f32.mrb[0].mxu0
        %v1670 = vadd.f32 0.0, %v1669
        %v1671 = vpop.f32.mrb[0].mxu0
        %1672 = vmatprep.mubr.bf16.mxu0 %v1205
        %1673 = vmatmul.mubr.bf16.gmra.mrb[0].mxu0 %v1204
        %v1674 = vpop.f32.mrb[0].mxu0
        %v1675 = vadd.f32 0.0, %v1674
        %v1676 = vpop.f32.mrb[0].mxu0
        %v1677 = vpop.f32.mrb[0].mxu0
        %v1678 = vadd.f32 0.0, %v1677
        %v1679 = vpop.f32.mrb[0].mxu0
        %1680 = vmatprep.mubr.bf16.mxu0 %v1209
        %1681 = vmatmul.mubr.bf16.gmra.mrb[0].mxu0 %v1208
        %v1682 = vpop.f32.mrb[0].mxu0
        %v1683 = vadd.f32 0.0, %v1682
        %v1684 = vpop.f32.mrb[0].mxu0
        %v1685 = vpop.f32.mrb[0].mxu0
        %v1686 = vadd.f32 0.0, %v1685
        %v1687 = vpop.f32.mrb[0].mxu0
        %1688 = vmatprep.mubr.bf16.mxu0 %v1213
        %1689 = vmatmul.mubr.bf16.gmra.mrb[0].mxu0 %v1212
        %v1690 = vpop.f32.mrb[0].mxu0
        %v1691 = vadd.f32 0.0, %v1690
        %v1692 = vpop.f32.mrb[0].mxu0
        %v1693 = vpop.f32.mrb[0].mxu0
        %v1694 = vadd.f32 0.0, %v1693
        %v1695 = vpop.f32.mrb[0].mxu0
        %1696 = vdwg.mxu0
        %1697 = vmatprep.subr.bf16.mxu0 0
        %1698 = vmatpush1.bf16.msra.mxu0 %v1552
        %1699 = vmatprep.subr.bf16.mxu0 0
        %1700 = vmatpush1.bf16.msra.mxu0 %v1553
        %1701 = vmatprep.subr.bf16.mxu0 0
        %1702 = vmatpush1.bf16.msra.mxu0 %v1554
        %1703 = vmatprep.subr.bf16.mxu0 0
        %1704 = vmatpush1.bf16.msra.mxu0 %v1555
        %1705 = vmatprep.subr.bf16.mxu0 0
        %1706 = vmatpush1.bf16.msra.mxu0 %v1556
        %1707 = vmatprep.subr.bf16.mxu0 0
        %1708 = vmatpush1.bf16.msra.mxu0 %v1557
        %1709 = vmatprep.subr.bf16.mxu0 0
        %1710 = vmatpush1.bf16.msra.mxu0 %v1558
        %1711 = vmatprep.subr.bf16.mxu0 0
        %1712 = vmatpush1.bf16.msra.mxu0 %v1559
        %1713 = vmatprep.subr.bf16.mxu0 0
        %1714 = vmatpush1.bf16.msra.mxu0 %v1560
        %1715 = vmatprep.subr.bf16.mxu0 0
        %1716 = vmatpush1.bf16.msra.mxu0 %v1561
        %1717 = vmatprep.subr.bf16.mxu0 0
        %1718 = vmatpush1.bf16.msra.mxu0 %v1562
        %1719 = vmatprep.subr.bf16.mxu0 0
        %1720 = vmatpush1.bf16.msra.mxu0 %v1563
        %1721 = vmatprep.subr.bf16.mxu0 0
        %1722 = vmatpush1.bf16.msra.mxu0 %v1564
        %1723 = vmatprep.subr.bf16.mxu0 0
        %1724 = vmatpush1.bf16.msra.mxu0 %v1565
        %1725 = vmatprep.subr.bf16.mxu0 0
        %1726 = vmatpush1.bf16.msra.mxu0 %v1566
        %1727 = vmatprep.subr.bf16.mxu0 0
        %1728 = vmatpush1.bf16.msra.mxu0 %v1567
        %1729 = vmatprep.mubr.bf16.mxu0 %v1187
        %1730 = vmatmul.mubr.bf16.gmra.mrb[0].mxu0 %v1186
        %v1731 = vpop.f32.mrb[0].mxu0
        %v1732 = vadd.f32 %v1635, %v1731
        %v1733 = vpop.f32.mrb[0].mxu0
        %v1734 = vpop.f32.mrb[0].mxu0
        %v1735 = vadd.f32 %v1638, %v1734
        %v1736 = vpop.f32.mrb[0].mxu0
        %1737 = vmatprep.mubr.bf16.mxu0 %v1191
        %1738 = vmatmul.mubr.bf16.gmra.mrb[0].mxu0 %v1190
        %v1739 = vpop.f32.mrb[0].mxu0
        %v1740 = vadd.f32 %v1643, %v1739
        %v1741 = vpop.f32.mrb[0].mxu0
        %v1742 = vpop.f32.mrb[0].mxu0
        %v1743 = vadd.f32 %v1646, %v1742
        %v1744 = vpop.f32.mrb[0].mxu0
        %1745 = vmatprep.mubr.bf16.mxu0 %v1195
        %1746 = vmatmul.mubr.bf16.gmra.mrb[0].mxu0 %v1194
        %v1747 = vpop.f32.mrb[0].mxu0
        %v1748 = vadd.f32 %v1651, %v1747
        %v1749 = vpop.f32.mrb[0].mxu0
        %v1750 = vpop.f32.mrb[0].mxu0
        %v1751 = vadd.f32 %v1654, %v1750
        %v1752 = vpop.f32.mrb[0].mxu0
        %1753 = vmatprep.mubr.bf16.mxu0 %v1199
        %1754 = vmatmul.mubr.bf16.gmra.mrb[0].mxu0 %v1198
        %v1755 = vpop.f32.mrb[0].mxu0
        %v1756 = vadd.f32 %v1659, %v1755
        %v1757 = vpop.f32.mrb[0].mxu0
        %v1758 = vpop.f32.mrb[0].mxu0
        %v1759 = vadd.f32 %v1662, %v1758
        %v1760 = vpop.f32.mrb[0].mxu0
        %1761 = vmatprep.mubr.bf16.mxu0 %v1203
        %1762 = vmatmul.mubr.bf16.gmra.mrb[0].mxu0 %v1202
        %v1763 = vpop.f32.mrb[0].mxu0
        %v1764 = vadd.f32 %v1667, %v1763
        %v1765 = vpop.f32.mrb[0].mxu0
        %v1766 = vpop.f32.mrb[0].mxu0
        %v1767 = vadd.f32 %v1670, %v1766
        %v1768 = vpop.f32.mrb[0].mxu0
        %1769 = vmatprep.mubr.bf16.mxu0 %v1207
        %1770 = vmatmul.mubr.bf16.gmra.mrb[0].mxu0 %v1206
        %v1771 = vpop.f32.mrb[0].mxu0
        %v1772 = vadd.f32 %v1675, %v1771
        %v1773 = vpop.f32.mrb[0].mxu0
        %v1774 = vpop.f32.mrb[0].mxu0
        %v1775 = vadd.f32 %v1678, %v1774
        %v1776 = vpop.f32.mrb[0].mxu0
        %1777 = vmatprep.mubr.bf16.mxu0 %v1211
        %1778 = vmatmul.mubr.bf16.gmra.mrb[0].mxu0 %v1210
        %v1779 = vpop.f32.mrb[0].mxu0
        %v1780 = vadd.f32 %v1683, %v1779
        %v1781 = vpop.f32.mrb[0].mxu0
        %v1782 = vpop.f32.mrb[0].mxu0
        %v1783 = vadd.f32 %v1686, %v1782
        %v1784 = vpop.f32.mrb[0].mxu0
        %1785 = vmatprep.mubr.bf16.mxu0 %v1215
        %1786 = vmatmul.mubr.bf16.gmra.mrb[0].mxu0 %v1214
        %v1787 = vpop.f32.mrb[0].mxu0
        %v1788 = vadd.f32 %v1691, %v1787
        %v1789 = vpop.f32.mrb[0].mxu0
        %v1790 = vpop.f32.mrb[0].mxu0
        %v1791 = vadd.f32 %v1694, %v1790
        %v1792 = vpop.f32.mrb[0].mxu0
        %1793 = vdwg.mxu0
        %v1794 = vmul.f32 %v1732, %v1392
        %v1795 = vmul.f32 %v1735, %v1393
        %v1796 = vmul.f32 %v1740, %v1394
        %v1797 = vmul.f32 %v1743, %v1395
        %v1798 = vmul.f32 %v1748, %v1396
        %v1799 = vmul.f32 %v1751, %v1397
        %v1800 = vmul.f32 %v1756, %v1398
        %v1801 = vmul.f32 %v1759, %v1399
        %v1802 = vmul.f32 %v1764, %v1400
        %v1803 = vmul.f32 %v1767, %v1401
        %v1804 = vmul.f32 %v1772, %v1402
        %v1805 = vmul.f32 %v1775, %v1403
        %v1806 = vmul.f32 %v1780, %v1404
        %v1807 = vmul.f32 %v1783, %v1405
        %v1808 = vmul.f32 %v1788, %v1406
        %v1809 = vmul.f32 %v1791, %v1407
        %1818 = vrot.lane.b32.xlu0 %v586, 112
        %v1819 = vpop.permute.xlu0 %1818
        %1820 = vrot.lane.b32.xlu0 %v587, 112
        %v1821 = vpop.permute.xlu0 %1820
        %1822 = vrot.lane.b32.xlu0 %v588, 112
        %v1823 = vpop.permute.xlu0 %1822
        %1824 = vrot.lane.b32.xlu0 %v589, 112
        %v1825 = vpop.permute.xlu0 %1824
        %1826 = vrot.lane.b32.xlu0 %v590, 112
        %v1827 = vpop.permute.xlu0 %1826
        %1828 = vrot.lane.b32.xlu0 %v591, 112
        %v1829 = vpop.permute.xlu0 %1828
        %1830 = vrot.lane.b32.xlu0 %v592, 112
        %v1831 = vpop.permute.xlu0 %1830
        %1832 = vrot.lane.b32.xlu0 %v593, 112
        %v1833 = vpop.permute.xlu0 %1832
        %v1838 = vunpack.c.l.b16 %v341
        %v1839 = vunpack.c.h.b16 %v341
        %v1840 = vunpack.c.l.b16 %v342
        %v1841 = vunpack.c.h.b16 %v342
        %v1842 = vunpack.c.l.b16 %v343
        %v1843 = vunpack.c.h.b16 %v343
        %v1844 = vunpack.c.l.b16 %v344
        %v1845 = vunpack.c.h.b16 %v344
        %v1846 = vpack.c.b16 %v1842, %v1838
        %v1847 = vpack.c.b16 %v1843, %v1839
        %v1848 = vpack.c.b16 %v1844, %v1840
        %v1849 = vpack.c.b16 %v1845, %v1841
        %v1855 = vsel %vm464, %v1819, 0
        %v1858 = vsel %vm464, %v1821, 0
        %v1861 = vsel %vm464, %v1823, 0
        %v1864 = vsel %vm464, %v1825, 0
        %v1867 = vsel %vm464, %v1827, 0
        %v1870 = vsel %vm464, %v1829, 0
        %v1873 = vsel %vm464, %v1831, 0
        %v1876 = vsel %vm464, %v1833, 0
        %1878 = vmatprep.subr.bf16.mxu0 %v1847
        %1879 = vmatpush1.bf16.msra.mxu0 %v1846
        %1880 = vmatprep.subr.bf16.mxu0 0
        %1881 = vmatpush1.bf16.msra.mxu0 0
        %1882 = vmatprep.subr.bf16.mxu0 0
        %1883 = vmatpush1.bf16.msra.mxu0 0
        %1884 = vmatprep.subr.bf16.mxu0 0
        %1885 = vmatpush1.bf16.msra.mxu0 0
        %1886 = vmatprep.subr.bf16.mxu0 0
        %1887 = vmatpush1.bf16.msra.mxu0 0
        %1888 = vmatprep.subr.bf16.mxu0 0
        %1889 = vmatpush1.bf16.msra.mxu0 0
        %1890 = vmatprep.subr.bf16.mxu0 0
        %1891 = vmatpush1.bf16.msra.mxu0 0
        %1892 = vmatprep.subr.bf16.mxu0 0
        %1893 = vmatpush1.bf16.msra.mxu0 0
        %1894 = vmatprep.subr.bf16.mxu0 0
        %1895 = vmatpush1.bf16.msra.mxu0 0
        %1896 = vmatprep.subr.bf16.mxu0 0
        %1897 = vmatpush1.bf16.msra.mxu0 0
        %1898 = vmatprep.subr.bf16.mxu0 0
        %1899 = vmatpush1.bf16.msra.mxu0 0
        %1900 = vmatprep.subr.bf16.mxu0 0
        %1901 = vmatpush1.bf16.msra.mxu0 0
        %1902 = vmatprep.subr.bf16.mxu0 0
        %1903 = vmatpush1.bf16.msra.mxu0 0
        %1904 = vmatprep.subr.bf16.mxu0 0
        %1905 = vmatpush1.bf16.msra.mxu0 0
        %1906 = vmatprep.subr.bf16.mxu0 0
        %1907 = vmatpush1.bf16.msra.mxu0 0
        %1908 = vmatprep.subr.bf16.mxu0 0
        %1909 = vmatpush1.bf16.msra.mxu0 0
        %1910 = vmatprep.mubr.bf16.mxu0 0
        %1911 = vmatmul.mubr.bf16.gmra.mrb[0].mxu0 %v1855
        %v1912 = vpop.f32.mrb[0].mxu0
        %v1913 = vadd.f32 0.0, %v1912
        %v1914 = vpop.f32.mrb[0].mxu0
        %v1915 = vadd.f32 0.0, %v1914
        %v1916 = vpop.f32.mrb[0].mxu0
        %v1917 = vadd.f32 0.0, %v1916
        %v1918 = vpop.f32.mrb[0].mxu0
        %v1919 = vadd.f32 0.0, %v1918
        %1920 = vmatprep.mubr.bf16.mxu0 0
        %1921 = vmatmul.mubr.bf16.gmra.mrb[0].mxu0 %v1858
        %v1922 = vpop.f32.mrb[0].mxu0
        %v1923 = vadd.f32 0.0, %v1922
        %v1924 = vpop.f32.mrb[0].mxu0
        %v1925 = vadd.f32 0.0, %v1924
        %v1926 = vpop.f32.mrb[0].mxu0
        %v1927 = vadd.f32 0.0, %v1926
        %v1928 = vpop.f32.mrb[0].mxu0
        %v1929 = vadd.f32 0.0, %v1928
        %1930 = vmatprep.mubr.bf16.mxu0 0
        %1931 = vmatmul.mubr.bf16.gmra.mrb[0].mxu0 %v1861
        %v1932 = vpop.f32.mrb[0].mxu0
        %v1933 = vadd.f32 0.0, %v1932
        %v1934 = vpop.f32.mrb[0].mxu0
        %v1935 = vadd.f32 0.0, %v1934
        %v1936 = vpop.f32.mrb[0].mxu0
        %v1937 = vadd.f32 0.0, %v1936
        %v1938 = vpop.f32.mrb[0].mxu0
        %v1939 = vadd.f32 0.0, %v1938
        %1940 = vmatprep.mubr.bf16.mxu0 0
        %1941 = vmatmul.mubr.bf16.gmra.mrb[0].mxu0 %v1864
        %v1942 = vpop.f32.mrb[0].mxu0
        %v1943 = vadd.f32 0.0, %v1942
        %v1944 = vpop.f32.mrb[0].mxu0
        %v1945 = vadd.f32 0.0, %v1944
        %v1946 = vpop.f32.mrb[0].mxu0
        %v1947 = vadd.f32 0.0, %v1946
        %v1948 = vpop.f32.mrb[0].mxu0
        %v1949 = vadd.f32 0.0, %v1948
        %1950 = vmatprep.mubr.bf16.mxu0 0
        %1951 = vmatmul.mubr.bf16.gmra.mrb[0].mxu0 %v1867
        %v1952 = vpop.f32.mrb[0].mxu0
        %v1953 = vadd.f32 0.0, %v1952
        %v1954 = vpop.f32.mrb[0].mxu0
        %v1955 = vadd.f32 0.0, %v1954
        %v1956 = vpop.f32.mrb[0].mxu0
        %v1957 = vadd.f32 0.0, %v1956
        %v1958 = vpop.f32.mrb[0].mxu0
        %v1959 = vadd.f32 0.0, %v1958
        %1960 = vmatprep.mubr.bf16.mxu0 0
        %1961 = vmatmul.mubr.bf16.gmra.mrb[0].mxu0 %v1870
        %v1962 = vpop.f32.mrb[0].mxu0
        %v1963 = vadd.f32 0.0, %v1962
        %v1964 = vpop.f32.mrb[0].mxu0
        %v1965 = vadd.f32 0.0, %v1964
        %v1966 = vpop.f32.mrb[0].mxu0
        %v1967 = vadd.f32 0.0, %v1966
        %v1968 = vpop.f32.mrb[0].mxu0
        %v1969 = vadd.f32 0.0, %v1968
        %1970 = vmatprep.mubr.bf16.mxu0 0
        %1971 = vmatmul.mubr.bf16.gmra.mrb[0].mxu0 %v1873
        %v1972 = vpop.f32.mrb[0].mxu0
        %v1973 = vadd.f32 0.0, %v1972
        %v1974 = vpop.f32.mrb[0].mxu0
        %v1975 = vadd.f32 0.0, %v1974
        %v1976 = vpop.f32.mrb[0].mxu0
        %v1977 = vadd.f32 0.0, %v1976
        %v1978 = vpop.f32.mrb[0].mxu0
        %v1979 = vadd.f32 0.0, %v1978
        %1980 = vmatprep.mubr.bf16.mxu0 0
        %1981 = vmatmul.mubr.bf16.gmra.mrb[0].mxu0 %v1876
        %v1982 = vpop.f32.mrb[0].mxu0
        %v1983 = vadd.f32 0.0, %v1982
        %v1984 = vpop.f32.mrb[0].mxu0
        %v1985 = vadd.f32 0.0, %v1984
        %v1986 = vpop.f32.mrb[0].mxu0
        %v1987 = vadd.f32 0.0, %v1986
        %v1988 = vpop.f32.mrb[0].mxu0
        %v1989 = vadd.f32 0.0, %v1988
        %1990 = vdwg.mxu0
        %1991 = vmatprep.subr.bf16.mxu0 %v1849
        %1992 = vmatpush1.bf16.msra.mxu0 %v1848
        %1993 = vmatprep.subr.bf16.mxu0 0
        %1994 = vmatpush1.bf16.msra.mxu0 0
        %1995 = vmatprep.subr.bf16.mxu0 0
        %1996 = vmatpush1.bf16.msra.mxu0 0
        %1997 = vmatprep.subr.bf16.mxu0 0
        %1998 = vmatpush1.bf16.msra.mxu0 0
        %1999 = vmatprep.subr.bf16.mxu0 0
        %2000 = vmatpush1.bf16.msra.mxu0 0
        %2001 = vmatprep.subr.bf16.mxu0 0
        %2002 = vmatpush1.bf16.msra.mxu0 0
        %2003 = vmatprep.subr.bf16.mxu0 0
        %2004 = vmatpush1.bf16.msra.mxu0 0
        %2005 = vmatprep.subr.bf16.mxu0 0
        %2006 = vmatpush1.bf16.msra.mxu0 0
        %2007 = vmatprep.subr.bf16.mxu0 0
        %2008 = vmatpush1.bf16.msra.mxu0 0
        %2009 = vmatprep.subr.bf16.mxu0 0
        %2010 = vmatpush1.bf16.msra.mxu0 0
        %2011 = vmatprep.subr.bf16.mxu0 0
        %2012 = vmatpush1.bf16.msra.mxu0 0
        %2013 = vmatprep.subr.bf16.mxu0 0
        %2014 = vmatpush1.bf16.msra.mxu0 0
        %2015 = vmatprep.subr.bf16.mxu0 0
        %2016 = vmatpush1.bf16.msra.mxu0 0
        %2017 = vmatprep.subr.bf16.mxu0 0
        %2018 = vmatpush1.bf16.msra.mxu0 0
        %2019 = vmatprep.subr.bf16.mxu0 0
        %2020 = vmatpush1.bf16.msra.mxu0 0
        %2021 = vmatprep.subr.bf16.mxu0 0
        %2022 = vmatpush1.bf16.msra.mxu0 0
        %2023 = vmatprep.mubr.bf16.mxu0 0
        %2024 = vmatmul.mubr.bf16.gmra.mrb[0].mxu0 %v1855
        %v2025 = vpop.f32.mrb[0].mxu0
        %v2026 = vadd.f32 0.0, %v2025
        %v2027 = vpop.f32.mrb[0].mxu0
        %v2028 = vadd.f32 0.0, %v2027
        %v2029 = vpop.f32.mrb[0].mxu0
        %v2030 = vadd.f32 0.0, %v2029
        %v2031 = vpop.f32.mrb[0].mxu0
        %v2032 = vadd.f32 0.0, %v2031
        %2033 = vmatprep.mubr.bf16.mxu0 0
        %2034 = vmatmul.mubr.bf16.gmra.mrb[0].mxu0 %v1858
        %v2035 = vpop.f32.mrb[0].mxu0
        %v2036 = vadd.f32 0.0, %v2035
        %v2037 = vpop.f32.mrb[0].mxu0
        %v2038 = vadd.f32 0.0, %v2037
        %v2039 = vpop.f32.mrb[0].mxu0
        %v2040 = vadd.f32 0.0, %v2039
        %v2041 = vpop.f32.mrb[0].mxu0
        %v2042 = vadd.f32 0.0, %v2041
        %2043 = vmatprep.mubr.bf16.mxu0 0
        %2044 = vmatmul.mubr.bf16.gmra.mrb[0].mxu0 %v1861
        %v2045 = vpop.f32.mrb[0].mxu0
        %v2046 = vadd.f32 0.0, %v2045
        %v2047 = vpop.f32.mrb[0].mxu0
        %v2048 = vadd.f32 0.0, %v2047
        %v2049 = vpop.f32.mrb[0].mxu0
        %v2050 = vadd.f32 0.0, %v2049
        %v2051 = vpop.f32.mrb[0].mxu0
        %v2052 = vadd.f32 0.0, %v2051
        %2053 = vmatprep.mubr.bf16.mxu0 0
        %2054 = vmatmul.mubr.bf16.gmra.mrb[0].mxu0 %v1864
        %v2055 = vpop.f32.mrb[0].mxu0
        %v2056 = vadd.f32 0.0, %v2055
        %v2057 = vpop.f32.mrb[0].mxu0
        %v2058 = vadd.f32 0.0, %v2057
        %v2059 = vpop.f32.mrb[0].mxu0
        %v2060 = vadd.f32 0.0, %v2059
        %v2061 = vpop.f32.mrb[0].mxu0
        %v2062 = vadd.f32 0.0, %v2061
        %2063 = vmatprep.mubr.bf16.mxu0 0
        %2064 = vmatmul.mubr.bf16.gmra.mrb[0].mxu0 %v1867
        %v2065 = vpop.f32.mrb[0].mxu0
        %v2066 = vadd.f32 0.0, %v2065
        %v2067 = vpop.f32.mrb[0].mxu0
        %v2068 = vadd.f32 0.0, %v2067
        %v2069 = vpop.f32.mrb[0].mxu0
        %v2070 = vadd.f32 0.0, %v2069
        %v2071 = vpop.f32.mrb[0].mxu0
        %v2072 = vadd.f32 0.0, %v2071
        %2073 = vmatprep.mubr.bf16.mxu0 0
        %2074 = vmatmul.mubr.bf16.gmra.mrb[0].mxu0 %v1870
        %v2075 = vpop.f32.mrb[0].mxu0
        %v2076 = vadd.f32 0.0, %v2075
        %v2077 = vpop.f32.mrb[0].mxu0
        %v2078 = vadd.f32 0.0, %v2077
        %v2079 = vpop.f32.mrb[0].mxu0
        %v2080 = vadd.f32 0.0, %v2079
        %v2081 = vpop.f32.mrb[0].mxu0
        %v2082 = vadd.f32 0.0, %v2081
        %2083 = vmatprep.mubr.bf16.mxu0 0
        %2084 = vmatmul.mubr.bf16.gmra.mrb[0].mxu0 %v1873
        %v2085 = vpop.f32.mrb[0].mxu0
        %v2086 = vadd.f32 0.0, %v2085
        %v2087 = vpop.f32.mrb[0].mxu0
        %v2088 = vadd.f32 0.0, %v2087
        %v2089 = vpop.f32.mrb[0].mxu0
        %v2090 = vadd.f32 0.0, %v2089
        %v2091 = vpop.f32.mrb[0].mxu0
        %v2092 = vadd.f32 0.0, %v2091
        %2093 = vmatprep.mubr.bf16.mxu0 0
        %2094 = vmatmul.mubr.bf16.gmra.mrb[0].mxu0 %v1876
        %v2095 = vpop.f32.mrb[0].mxu0
        %v2096 = vadd.f32 0.0, %v2095
        %v2097 = vpop.f32.mrb[0].mxu0
        %v2098 = vadd.f32 0.0, %v2097
        %v2099 = vpop.f32.mrb[0].mxu0
        %v2100 = vadd.f32 0.0, %v2099
        %v2101 = vpop.f32.mrb[0].mxu0
        %v2102 = vadd.f32 0.0, %v2101
        %2103 = vdwg.mxu0
        %v2104 = vmax.f32 %v1913, %v1915
        %v2105 = vmax.f32 %v2104, %v2026
        %v2106 = vmax.f32 %v2105, %v2028
        %2107 = vmax.xlane.f32.xlu0 %v2106
        %v2108 = vpop.xlane.xlu0 %2107
        %v2109 = vmax.f32 %v1917, %v1919
        %v2110 = vmax.f32 %v2109, %v2030
        %v2111 = vmax.f32 %v2110, %v2032
        %2112 = vmax.xlane.f32.xlu0 %v2111
        %v2113 = vpop.xlane.xlu0 %2112
        %v2114 = vmax.f32 %v1923, %v1925
        %v2115 = vmax.f32 %v2114, %v2036
        %v2116 = vmax.f32 %v2115, %v2038
        %2117 = vmax.xlane.f32.xlu0 %v2116
        %v2118 = vpop.xlane.xlu0 %2117
        %v2119 = vmax.f32 %v1927, %v1929
        %v2120 = vmax.f32 %v2119, %v2040
        %v2121 = vmax.f32 %v2120, %v2042
        %2122 = vmax.xlane.f32.xlu0 %v2121
        %v2123 = vpop.xlane.xlu0 %2122
        %v2124 = vmax.f32 %v1933, %v1935
        %v2125 = vmax.f32 %v2124, %v2046
        %v2126 = vmax.f32 %v2125, %v2048
        %2127 = vmax.xlane.f32.xlu0 %v2126
        %v2128 = vpop.xlane.xlu0 %2127
        %v2129 = vmax.f32 %v1937, %v1939
        %v2130 = vmax.f32 %v2129, %v2050
        %v2131 = vmax.f32 %v2130, %v2052
        %2132 = vmax.xlane.f32.xlu0 %v2131
        %v2133 = vpop.xlane.xlu0 %2132
        %v2134 = vmax.f32 %v1943, %v1945
        %v2135 = vmax.f32 %v2134, %v2056
        %v2136 = vmax.f32 %v2135, %v2058
        %2137 = vmax.xlane.f32.xlu0 %v2136
        %v2138 = vpop.xlane.xlu0 %2137
        %v2139 = vmax.f32 %v1947, %v1949
        %v2140 = vmax.f32 %v2139, %v2060
        %v2141 = vmax.f32 %v2140, %v2062
        %2142 = vmax.xlane.f32.xlu0 %v2141
        %v2143 = vpop.xlane.xlu0 %2142
        %v2144 = vmax.f32 %v1953, %v1955
        %v2145 = vmax.f32 %v2144, %v2066
        %v2146 = vmax.f32 %v2145, %v2068
        %2147 = vmax.xlane.f32.xlu0 %v2146
        %v2148 = vpop.xlane.xlu0 %2147
        %v2149 = vmax.f32 %v1957, %v1959
        %v2150 = vmax.f32 %v2149, %v2070
        %v2151 = vmax.f32 %v2150, %v2072
        %2152 = vmax.xlane.f32.xlu0 %v2151
        %v2153 = vpop.xlane.xlu0 %2152
        %v2154 = vmax.f32 %v1963, %v1965
        %v2155 = vmax.f32 %v2154, %v2076
        %v2156 = vmax.f32 %v2155, %v2078
        %2157 = vmax.xlane.f32.xlu0 %v2156
        %v2158 = vpop.xlane.xlu0 %2157
        %v2159 = vmax.f32 %v1967, %v1969
        %v2160 = vmax.f32 %v2159, %v2080
        %v2161 = vmax.f32 %v2160, %v2082
        %2162 = vmax.xlane.f32.xlu0 %v2161
        %v2163 = vpop.xlane.xlu0 %2162
        %v2164 = vmax.f32 %v1973, %v1975
        %v2165 = vmax.f32 %v2164, %v2086
        %v2166 = vmax.f32 %v2165, %v2088
        %2167 = vmax.xlane.f32.xlu0 %v2166
        %v2168 = vpop.xlane.xlu0 %2167
        %v2169 = vmax.f32 %v1977, %v1979
        %v2170 = vmax.f32 %v2169, %v2090
        %v2171 = vmax.f32 %v2170, %v2092
        %2172 = vmax.xlane.f32.xlu0 %v2171
        %v2173 = vpop.xlane.xlu0 %2172
        %v2174 = vmax.f32 %v1983, %v1985
        %v2175 = vmax.f32 %v2174, %v2096
        %v2176 = vmax.f32 %v2175, %v2098
        %2177 = vmax.xlane.f32.xlu0 %v2176
        %v2178 = vpop.xlane.xlu0 %2177
        %v2179 = vmax.f32 %v1987, %v1989
        %v2180 = vmax.f32 %v2179, %v2100
        %v2181 = vmax.f32 %v2180, %v2102
        %2182 = vmax.xlane.f32.xlu0 %v2181
        %v2183 = vpop.xlane.xlu0 %2182
        %v2184 = vsub.f32 %v1913, %v2108
        %v2185 = vsub.f32 %v1915, %v2108
        %v2186 = vsub.f32 %v2026, %v2108
        %v2187 = vsub.f32 %v2028, %v2108
        %v2188 = vsub.f32 %v1917, %v2113
        %v2189 = vsub.f32 %v1919, %v2113
        %v2190 = vsub.f32 %v2030, %v2113
        %v2191 = vsub.f32 %v2032, %v2113
        %v2192 = vsub.f32 %v1923, %v2118
        %v2193 = vsub.f32 %v1925, %v2118
        %v2194 = vsub.f32 %v2036, %v2118
        %v2195 = vsub.f32 %v2038, %v2118
        %v2196 = vsub.f32 %v1927, %v2123
        %v2197 = vsub.f32 %v1929, %v2123
        %v2198 = vsub.f32 %v2040, %v2123
        %v2199 = vsub.f32 %v2042, %v2123
        %v2200 = vsub.f32 %v1933, %v2128
        %v2201 = vsub.f32 %v1935, %v2128
        %v2202 = vsub.f32 %v2046, %v2128
        %v2203 = vsub.f32 %v2048, %v2128
        %v2204 = vsub.f32 %v1937, %v2133
        %v2205 = vsub.f32 %v1939, %v2133
        %v2206 = vsub.f32 %v2050, %v2133
        %v2207 = vsub.f32 %v2052, %v2133
        %v2208 = vsub.f32 %v1943, %v2138
        %v2209 = vsub.f32 %v1945, %v2138
        %v2210 = vsub.f32 %v2056, %v2138
        %v2211 = vsub.f32 %v2058, %v2138
        %v2212 = vsub.f32 %v1947, %v2143
        %v2213 = vsub.f32 %v1949, %v2143
        %v2214 = vsub.f32 %v2060, %v2143
        %v2215 = vsub.f32 %v2062, %v2143
        %v2216 = vsub.f32 %v1953, %v2148
        %v2217 = vsub.f32 %v1955, %v2148
        %v2218 = vsub.f32 %v2066, %v2148
        %v2219 = vsub.f32 %v2068, %v2148
        %v2220 = vsub.f32 %v1957, %v2153
        %v2221 = vsub.f32 %v1959, %v2153
        %v2222 = vsub.f32 %v2070, %v2153
        %v2223 = vsub.f32 %v2072, %v2153
        %v2224 = vsub.f32 %v1963, %v2158
        %v2225 = vsub.f32 %v1965, %v2158
        %v2226 = vsub.f32 %v2076, %v2158
        %v2227 = vsub.f32 %v2078, %v2158
        %v2228 = vsub.f32 %v1967, %v2163
        %v2229 = vsub.f32 %v1969, %v2163
        %v2230 = vsub.f32 %v2080, %v2163
        %v2231 = vsub.f32 %v2082, %v2163
        %v2232 = vsub.f32 %v1973, %v2168
        %v2233 = vsub.f32 %v1975, %v2168
        %v2234 = vsub.f32 %v2086, %v2168
        %v2235 = vsub.f32 %v2088, %v2168
        %v2236 = vsub.f32 %v1977, %v2173
        %v2237 = vsub.f32 %v1979, %v2173
        %v2238 = vsub.f32 %v2090, %v2173
        %v2239 = vsub.f32 %v2092, %v2173
        %v2240 = vsub.f32 %v1983, %v2178
        %v2241 = vsub.f32 %v1985, %v2178
        %v2242 = vsub.f32 %v2096, %v2178
        %v2243 = vsub.f32 %v2098, %v2178
        %v2244 = vsub.f32 %v1987, %v2183
        %v2245 = vsub.f32 %v1989, %v2183
        %v2246 = vsub.f32 %v2100, %v2183
        %v2247 = vsub.f32 %v2102, %v2183
        %v2248 = vpack.c.bf16 %v2188, %v2184
        %v2249 = vpack.c.bf16 %v2189, %v2185
        %v2250 = vpack.c.bf16 %v2190, %v2186
        %v2251 = vpack.c.bf16 %v2191, %v2187
        %v2252 = vpack.c.bf16 %v2196, %v2192
        %v2253 = vpack.c.bf16 %v2197, %v2193
        %v2254 = vpack.c.bf16 %v2198, %v2194
        %v2255 = vpack.c.bf16 %v2199, %v2195
        %v2256 = vpack.c.bf16 %v2204, %v2200
        %v2257 = vpack.c.bf16 %v2205, %v2201
        %v2258 = vpack.c.bf16 %v2206, %v2202
        %v2259 = vpack.c.bf16 %v2207, %v2203
        %v2260 = vpack.c.bf16 %v2212, %v2208
        %v2261 = vpack.c.bf16 %v2213, %v2209
        %v2262 = vpack.c.bf16 %v2214, %v2210
        %v2263 = vpack.c.bf16 %v2215, %v2211
        %v2264 = vpack.c.bf16 %v2220, %v2216
        %v2265 = vpack.c.bf16 %v2221, %v2217
        %v2266 = vpack.c.bf16 %v2222, %v2218
        %v2267 = vpack.c.bf16 %v2223, %v2219
        %v2268 = vpack.c.bf16 %v2228, %v2224
        %v2269 = vpack.c.bf16 %v2229, %v2225
        %v2270 = vpack.c.bf16 %v2230, %v2226
        %v2271 = vpack.c.bf16 %v2231, %v2227
        %v2272 = vpack.c.bf16 %v2236, %v2232
        %v2273 = vpack.c.bf16 %v2237, %v2233
        %v2274 = vpack.c.bf16 %v2238, %v2234
        %v2275 = vpack.c.bf16 %v2239, %v2235
        %v2276 = vpack.c.bf16 %v2244, %v2240
        %v2277 = vpack.c.bf16 %v2245, %v2241
        %v2278 = vpack.c.bf16 %v2246, %v2242
        %v2279 = vpack.c.bf16 %v2247, %v2243
        %v2281 = vmul.bf16 %v2248, 1069105081
        %v2282 = vpow.bf16.pop %v2281
        %v2284 = vmul.bf16 %v2249, 1069105081
        %v2285 = vpow.bf16.pop %v2284
        %v2287 = vmul.bf16 %v2250, 1069105081
        %v2288 = vpow.bf16.pop %v2287
        %v2290 = vmul.bf16 %v2251, 1069105081
        %v2291 = vpow.bf16.pop %v2290
        %v2293 = vmul.bf16 %v2252, 1069105081
        %v2294 = vpow.bf16.pop %v2293
        %v2296 = vmul.bf16 %v2253, 1069105081
        %v2297 = vpow.bf16.pop %v2296
        %v2299 = vmul.bf16 %v2254, 1069105081
        %v2300 = vpow.bf16.pop %v2299
        %v2302 = vmul.bf16 %v2255, 1069105081
        %v2303 = vpow.bf16.pop %v2302
        %v2305 = vmul.bf16 %v2256, 1069105081
        %v2306 = vpow.bf16.pop %v2305
        %v2308 = vmul.bf16 %v2257, 1069105081
        %v2309 = vpow.bf16.pop %v2308
        %v2311 = vmul.bf16 %v2258, 1069105081
        %v2312 = vpow.bf16.pop %v2311
        %v2314 = vmul.bf16 %v2259, 1069105081
        %v2315 = vpow.bf16.pop %v2314
        %v2317 = vmul.bf16 %v2260, 1069105081
        %v2318 = vpow.bf16.pop %v2317
        %v2320 = vmul.bf16 %v2261, 1069105081
        %v2321 = vpow.bf16.pop %v2320
        %v2323 = vmul.bf16 %v2262, 1069105081
        %v2324 = vpow.bf16.pop %v2323
        %v2326 = vmul.bf16 %v2263, 1069105081
        %v2327 = vpow.bf16.pop %v2326
        %v2329 = vmul.bf16 %v2264, 1069105081
        %v2330 = vpow.bf16.pop %v2329
        %v2332 = vmul.bf16 %v2265, 1069105081
        %v2333 = vpow.bf16.pop %v2332
        %v2335 = vmul.bf16 %v2266, 1069105081
        %v2336 = vpow.bf16.pop %v2335
        %v2338 = vmul.bf16 %v2267, 1069105081
        %v2339 = vpow.bf16.pop %v2338
        %v2341 = vmul.bf16 %v2268, 1069105081
        %v2342 = vpow.bf16.pop %v2341
        %v2344 = vmul.bf16 %v2269, 1069105081
        %v2345 = vpow.bf16.pop %v2344
        %v2347 = vmul.bf16 %v2270, 1069105081
        %v2348 = vpow.bf16.pop %v2347
        %v2350 = vmul.bf16 %v2271, 1069105081
        %v2351 = vpow.bf16.pop %v2350
        %v2353 = vmul.bf16 %v2272, 1069105081
        %v2354 = vpow.bf16.pop %v2353
        %v2356 = vmul.bf16 %v2273, 1069105081
        %v2357 = vpow.bf16.pop %v2356
        %v2359 = vmul.bf16 %v2274, 1069105081
        %v2360 = vpow.bf16.pop %v2359
        %v2362 = vmul.bf16 %v2275, 1069105081
        %v2363 = vpow.bf16.pop %v2362
        %v2365 = vmul.bf16 %v2276, 1069105081
        %v2366 = vpow.bf16.pop %v2365
        %v2368 = vmul.bf16 %v2277, 1069105081
        %v2369 = vpow.bf16.pop %v2368
        %v2371 = vmul.bf16 %v2278, 1069105081
        %v2372 = vpow.bf16.pop %v2371
        %v2374 = vmul.bf16 %v2279, 1069105081
        %v2375 = vpow.bf16.pop %v2374
        %v2376 = vmul.bf16 %v610, %v2282
        %v2377 = vmul.bf16 %v611, %v2285
        %v2378 = vmul.bf16 %v612, %v2288
        %v2379 = vmul.bf16 %v613, %v2291
        %v2380 = vmul.bf16 %v614, %v2294
        %v2381 = vmul.bf16 %v615, %v2297
        %v2382 = vmul.bf16 %v616, %v2300
        %v2383 = vmul.bf16 %v617, %v2303
        %v2384 = vmul.bf16 %v618, %v2306
        %v2385 = vmul.bf16 %v619, %v2309
        %v2386 = vmul.bf16 %v620, %v2312
        %v2387 = vmul.bf16 %v621, %v2315
        %v2388 = vmul.bf16 %v622, %v2318
        %v2389 = vmul.bf16 %v623, %v2321
        %v2390 = vmul.bf16 %v624, %v2324
        %v2391 = vmul.bf16 %v625, %v2327
        %v2392 = vmul.bf16 %v626, %v2330
        %v2393 = vmul.bf16 %v627, %v2333
        %v2394 = vmul.bf16 %v628, %v2336
        %v2395 = vmul.bf16 %v629, %v2339
        %v2396 = vmul.bf16 %v630, %v2342
        %v2397 = vmul.bf16 %v631, %v2345
        %v2398 = vmul.bf16 %v632, %v2348
        %v2399 = vmul.bf16 %v633, %v2351
        %v2400 = vmul.bf16 %v634, %v2354
        %v2401 = vmul.bf16 %v635, %v2357
        %v2402 = vmul.bf16 %v636, %v2360
        %v2403 = vmul.bf16 %v637, %v2363
        %v2404 = vmul.bf16 %v638, %v2366
        %v2405 = vmul.bf16 %v639, %v2369
        %v2406 = vmul.bf16 %v640, %v2372
        %v2407 = vmul.bf16 %v641, %v2375
        %v2408 = vunpack.c.l.bf16 %v2376
        %v2409 = vunpack.c.l.bf16 %v2377
        %v2410 = vunpack.c.l.bf16 %v2378
        %v2411 = vunpack.c.l.bf16 %v2379
        %v2412 = vunpack.c.h.bf16 %v2376
        %v2413 = vunpack.c.h.bf16 %v2377
        %v2414 = vunpack.c.h.bf16 %v2378
        %v2415 = vunpack.c.h.bf16 %v2379
        %v2416 = vunpack.c.l.bf16 %v2380
        %v2417 = vunpack.c.l.bf16 %v2381
        %v2418 = vunpack.c.l.bf16 %v2382
        %v2419 = vunpack.c.l.bf16 %v2383
        %v2420 = vunpack.c.h.bf16 %v2380
        %v2421 = vunpack.c.h.bf16 %v2381
        %v2422 = vunpack.c.h.bf16 %v2382
        %v2423 = vunpack.c.h.bf16 %v2383
        %v2424 = vunpack.c.l.bf16 %v2384
        %v2425 = vunpack.c.l.bf16 %v2385
        %v2426 = vunpack.c.l.bf16 %v2386
        %v2427 = vunpack.c.l.bf16 %v2387
        %v2428 = vunpack.c.h.bf16 %v2384
        %v2429 = vunpack.c.h.bf16 %v2385
        %v2430 = vunpack.c.h.bf16 %v2386
        %v2431 = vunpack.c.h.bf16 %v2387
        %v2432 = vunpack.c.l.bf16 %v2388
        %v2433 = vunpack.c.l.bf16 %v2389
        %v2434 = vunpack.c.l.bf16 %v2390
        %v2435 = vunpack.c.l.bf16 %v2391
        %v2436 = vunpack.c.h.bf16 %v2388
        %v2437 = vunpack.c.h.bf16 %v2389
        %v2438 = vunpack.c.h.bf16 %v2390
        %v2439 = vunpack.c.h.bf16 %v2391
        %v2440 = vunpack.c.l.bf16 %v2392
        %v2441 = vunpack.c.l.bf16 %v2393
        %v2442 = vunpack.c.l.bf16 %v2394
        %v2443 = vunpack.c.l.bf16 %v2395
        %v2444 = vunpack.c.h.bf16 %v2392
        %v2445 = vunpack.c.h.bf16 %v2393
        %v2446 = vunpack.c.h.bf16 %v2394
        %v2447 = vunpack.c.h.bf16 %v2395
        %v2448 = vunpack.c.l.bf16 %v2396
        %v2449 = vunpack.c.l.bf16 %v2397
        %v2450 = vunpack.c.l.bf16 %v2398
        %v2451 = vunpack.c.l.bf16 %v2399
        %v2452 = vunpack.c.h.bf16 %v2396
        %v2453 = vunpack.c.h.bf16 %v2397
        %v2454 = vunpack.c.h.bf16 %v2398
        %v2455 = vunpack.c.h.bf16 %v2399
        %v2456 = vunpack.c.l.bf16 %v2400
        %v2457 = vunpack.c.l.bf16 %v2401
        %v2458 = vunpack.c.l.bf16 %v2402
        %v2459 = vunpack.c.l.bf16 %v2403
        %v2460 = vunpack.c.h.bf16 %v2400
        %v2461 = vunpack.c.h.bf16 %v2401
        %v2462 = vunpack.c.h.bf16 %v2402
        %v2463 = vunpack.c.h.bf16 %v2403
        %v2464 = vunpack.c.l.bf16 %v2404
        %v2465 = vunpack.c.l.bf16 %v2405
        %v2466 = vunpack.c.l.bf16 %v2406
        %v2467 = vunpack.c.l.bf16 %v2407
        %v2468 = vunpack.c.h.bf16 %v2404
        %v2469 = vunpack.c.h.bf16 %v2405
        %v2470 = vunpack.c.h.bf16 %v2406
        %v2471 = vunpack.c.h.bf16 %v2407
        %v2472 = vadd.f32 %v2408, %v2409
        %v2473 = vadd.f32 %v2472, %v2410
        %v2474 = vadd.f32 %v2473, %v2411
        %2475 = vadd.xlane.f32.xlu0 %v2474
        %v2476 = vpop.xlane.xlu0 %2475
        %v2477 = vadd.f32 %v2412, %v2413
        %v2478 = vadd.f32 %v2477, %v2414
        %v2479 = vadd.f32 %v2478, %v2415
        %2480 = vadd.xlane.f32.xlu0 %v2479
        %v2481 = vpop.xlane.xlu0 %2480
        %v2482 = vadd.f32 %v2416, %v2417
        %v2483 = vadd.f32 %v2482, %v2418
        %v2484 = vadd.f32 %v2483, %v2419
        %2485 = vadd.xlane.f32.xlu0 %v2484
        %v2486 = vpop.xlane.xlu0 %2485
        %v2487 = vadd.f32 %v2420, %v2421
        %v2488 = vadd.f32 %v2487, %v2422
        %v2489 = vadd.f32 %v2488, %v2423
        %2490 = vadd.xlane.f32.xlu0 %v2489
        %v2491 = vpop.xlane.xlu0 %2490
        %v2492 = vadd.f32 %v2424, %v2425
        %v2493 = vadd.f32 %v2492, %v2426
        %v2494 = vadd.f32 %v2493, %v2427
        %2495 = vadd.xlane.f32.xlu0 %v2494
        %v2496 = vpop.xlane.xlu0 %2495
        %v2497 = vadd.f32 %v2428, %v2429
        %v2498 = vadd.f32 %v2497, %v2430
        %v2499 = vadd.f32 %v2498, %v2431
        %2500 = vadd.xlane.f32.xlu0 %v2499
        %v2501 = vpop.xlane.xlu0 %2500
        %v2502 = vadd.f32 %v2432, %v2433
        %v2503 = vadd.f32 %v2502, %v2434
        %v2504 = vadd.f32 %v2503, %v2435
        %2505 = vadd.xlane.f32.xlu0 %v2504
        %v2506 = vpop.xlane.xlu0 %2505
        %v2507 = vadd.f32 %v2436, %v2437
        %v2508 = vadd.f32 %v2507, %v2438
        %v2509 = vadd.f32 %v2508, %v2439
        %2510 = vadd.xlane.f32.xlu0 %v2509
        %v2511 = vpop.xlane.xlu0 %2510
        %v2512 = vadd.f32 %v2440, %v2441
        %v2513 = vadd.f32 %v2512, %v2442
        %v2514 = vadd.f32 %v2513, %v2443
        %2515 = vadd.xlane.f32.xlu0 %v2514
        %v2516 = vpop.xlane.xlu0 %2515
        %v2517 = vadd.f32 %v2444, %v2445
        %v2518 = vadd.f32 %v2517, %v2446
        %v2519 = vadd.f32 %v2518, %v2447
        %2520 = vadd.xlane.f32.xlu0 %v2519
        %v2521 = vpop.xlane.xlu0 %2520
        %v2522 = vadd.f32 %v2448, %v2449
        %v2523 = vadd.f32 %v2522, %v2450
        %v2524 = vadd.f32 %v2523, %v2451
        %2525 = vadd.xlane.f32.xlu0 %v2524
        %v2526 = vpop.xlane.xlu0 %2525
        %v2527 = vadd.f32 %v2452, %v2453
        %v2528 = vadd.f32 %v2527, %v2454
        %v2529 = vadd.f32 %v2528, %v2455
        %2530 = vadd.xlane.f32.xlu0 %v2529
        %v2531 = vpop.xlane.xlu0 %2530
        %v2532 = vadd.f32 %v2456, %v2457
        %v2533 = vadd.f32 %v2532, %v2458
        %v2534 = vadd.f32 %v2533, %v2459
        %2535 = vadd.xlane.f32.xlu0 %v2534
        %v2536 = vpop.xlane.xlu0 %2535
        %v2537 = vadd.f32 %v2460, %v2461
        %v2538 = vadd.f32 %v2537, %v2462
        %v2539 = vadd.f32 %v2538, %v2463
        %2540 = vadd.xlane.f32.xlu0 %v2539
        %v2541 = vpop.xlane.xlu0 %2540
        %v2542 = vadd.f32 %v2464, %v2465
        %v2543 = vadd.f32 %v2542, %v2466
        %v2544 = vadd.f32 %v2543, %v2467
        %2545 = vadd.xlane.f32.xlu0 %v2544
        %v2546 = vpop.xlane.xlu0 %2545
        %v2547 = vadd.f32 %v2468, %v2469
        %v2548 = vadd.f32 %v2547, %v2470
        %v2549 = vadd.f32 %v2548, %v2471
        %2550 = vadd.xlane.f32.xlu0 %v2549
        %v2551 = vpop.xlane.xlu0 %2550
        %vm2552 = vcmp.gt.f32.partialorder %v2476, 0.0
        %vm2553 = vcmp.gt.f32.partialorder %v2481, 0.0
        %vm2554 = vcmp.gt.f32.partialorder %v2486, 0.0
        %vm2555 = vcmp.gt.f32.partialorder %v2491, 0.0
        %vm2556 = vcmp.gt.f32.partialorder %v2496, 0.0
        %vm2557 = vcmp.gt.f32.partialorder %v2501, 0.0
        %vm2558 = vcmp.gt.f32.partialorder %v2506, 0.0
        %vm2559 = vcmp.gt.f32.partialorder %v2511, 0.0
        %vm2560 = vcmp.gt.f32.partialorder %v2516, 0.0
        %vm2561 = vcmp.gt.f32.partialorder %v2521, 0.0
        %vm2562 = vcmp.gt.f32.partialorder %v2526, 0.0
        %vm2563 = vcmp.gt.f32.partialorder %v2531, 0.0
        %vm2564 = vcmp.gt.f32.partialorder %v2536, 0.0
        %vm2565 = vcmp.gt.f32.partialorder %v2541, 0.0
        %vm2566 = vcmp.gt.f32.partialorder %v2546, 0.0
        %vm2567 = vcmp.gt.f32.partialorder %v2551, 0.0
        %v2568 = vsel %vm2552, %v2476, 1.0
        %v2569 = vsel %vm2553, %v2481, 1.0
        %v2570 = vsel %vm2554, %v2486, 1.0
        %v2571 = vsel %vm2555, %v2491, 1.0
        %v2572 = vsel %vm2556, %v2496, 1.0
        %v2573 = vsel %vm2557, %v2501, 1.0
        %v2574 = vsel %vm2558, %v2506, 1.0
        %v2575 = vsel %vm2559, %v2511, 1.0
        %v2576 = vsel %vm2560, %v2516, 1.0
        %v2577 = vsel %vm2561, %v2521, 1.0
        %v2578 = vsel %vm2562, %v2526, 1.0
        %v2579 = vsel %vm2563, %v2531, 1.0
        %v2580 = vsel %vm2564, %v2536, 1.0
        %v2581 = vsel %vm2565, %v2541, 1.0
        %v2582 = vsel %vm2566, %v2546, 1.0
        %v2583 = vsel %vm2567, %v2551, 1.0
        %v2584 = vrcp.pop %v2568
        %v2585 = vrcp.pop %v2569
        %v2586 = vrcp.pop %v2570
        %v2587 = vrcp.pop %v2571
        %v2588 = vrcp.pop %v2572
        %v2589 = vrcp.pop %v2573
        %v2590 = vrcp.pop %v2574
        %v2591 = vrcp.pop %v2575
        %v2592 = vrcp.pop %v2576
        %v2593 = vrcp.pop %v2577
        %v2594 = vrcp.pop %v2578
        %v2595 = vrcp.pop %v2579
        %v2596 = vrcp.pop %v2580
        %v2597 = vrcp.pop %v2581
        %v2598 = vrcp.pop %v2582
        %v2599 = vrcp.pop %v2583
        %2600 = vrot.lane.b32.xlu0 %v1536, 112
        %v2601 = vpop.permute.xlu0 %2600
        %2602 = vrot.lane.b32.xlu0 %v1537, 112
        %v2603 = vpop.permute.xlu0 %2602
        %2604 = vrot.lane.b32.xlu0 %v1538, 112
        %v2605 = vpop.permute.xlu0 %2604
        %2606 = vrot.lane.b32.xlu0 %v1539, 112
        %v2607 = vpop.permute.xlu0 %2606
        %2608 = vrot.lane.b32.xlu0 %v1540, 112
        %v2609 = vpop.permute.xlu0 %2608
        %2610 = vrot.lane.b32.xlu0 %v1541, 112
        %v2611 = vpop.permute.xlu0 %2610
        %2612 = vrot.lane.b32.xlu0 %v1542, 112
        %v2613 = vpop.permute.xlu0 %2612
        %2614 = vrot.lane.b32.xlu0 %v1543, 112
        %v2615 = vpop.permute.xlu0 %2614
        %2616 = vrot.lane.b32.xlu0 %v1544, 112
        %v2617 = vpop.permute.xlu0 %2616
        %2618 = vrot.lane.b32.xlu0 %v1545, 112
        %v2619 = vpop.permute.xlu0 %2618
        %2620 = vrot.lane.b32.xlu0 %v1546, 112
        %v2621 = vpop.permute.xlu0 %2620
        %2622 = vrot.lane.b32.xlu0 %v1547, 112
        %v2623 = vpop.permute.xlu0 %2622
        %2624 = vrot.lane.b32.xlu0 %v1548, 112
        %v2625 = vpop.permute.xlu0 %2624
        %2626 = vrot.lane.b32.xlu0 %v1549, 112
        %v2627 = vpop.permute.xlu0 %2626
        %2628 = vrot.lane.b32.xlu0 %v1550, 112
        %v2629 = vpop.permute.xlu0 %2628
        %2630 = vrot.lane.b32.xlu0 %v1551, 112
        %v2631 = vpop.permute.xlu0 %2630
        %2632 = vrot.lane.b32.xlu0 %v1552, 112
        %v2633 = vpop.permute.xlu0 %2632
        %2634 = vrot.lane.b32.xlu0 %v1553, 112
        %v2635 = vpop.permute.xlu0 %2634
        %2636 = vrot.lane.b32.xlu0 %v1554, 112
        %v2637 = vpop.permute.xlu0 %2636
        %2638 = vrot.lane.b32.xlu0 %v1555, 112
        %v2639 = vpop.permute.xlu0 %2638
        %2640 = vrot.lane.b32.xlu0 %v1556, 112
        %v2641 = vpop.permute.xlu0 %2640
        %2642 = vrot.lane.b32.xlu0 %v1557, 112
        %v2643 = vpop.permute.xlu0 %2642
        %2644 = vrot.lane.b32.xlu0 %v1558, 112
        %v2645 = vpop.permute.xlu0 %2644
        %2646 = vrot.lane.b32.xlu0 %v1559, 112
        %v2647 = vpop.permute.xlu0 %2646
        %2648 = vrot.lane.b32.xlu0 %v1560, 112
        %v2649 = vpop.permute.xlu0 %2648
        %2650 = vrot.lane.b32.xlu0 %v1561, 112
        %v2651 = vpop.permute.xlu0 %2650
        %2652 = vrot.lane.b32.xlu0 %v1562, 112
        %v2653 = vpop.permute.xlu0 %2652
        %2654 = vrot.lane.b32.xlu0 %v1563, 112
        %v2655 = vpop.permute.xlu0 %2654
        %2656 = vrot.lane.b32.xlu0 %v1564, 112
        %v2657 = vpop.permute.xlu0 %2656
        %2658 = vrot.lane.b32.xlu0 %v1565, 112
        %v2659 = vpop.permute.xlu0 %2658
        %2660 = vrot.lane.b32.xlu0 %v1566, 112
        %v2661 = vpop.permute.xlu0 %2660
        %2662 = vrot.lane.b32.xlu0 %v1567, 112
        %v2663 = vpop.permute.xlu0 %2662
        %2696 = vmatprep.subr.bf16.mxu0 0
        %2697 = vmatpush1.bf16.msra.mxu0 %v2601
        %2698 = vmatprep.subr.bf16.mxu0 0
        %2699 = vmatpush1.bf16.msra.mxu0 %v2603
        %2700 = vmatprep.subr.bf16.mxu0 0
        %2701 = vmatpush1.bf16.msra.mxu0 %v2605
        %2702 = vmatprep.subr.bf16.mxu0 0
        %2703 = vmatpush1.bf16.msra.mxu0 %v2607
        %2704 = vmatprep.subr.bf16.mxu0 0
        %2705 = vmatpush1.bf16.msra.mxu0 %v2609
        %2706 = vmatprep.subr.bf16.mxu0 0
        %2707 = vmatpush1.bf16.msra.mxu0 %v2611
        %2708 = vmatprep.subr.bf16.mxu0 0
        %2709 = vmatpush1.bf16.msra.mxu0 %v2613
        %2710 = vmatprep.subr.bf16.mxu0 0
        %2711 = vmatpush1.bf16.msra.mxu0 %v2615
        %2712 = vmatprep.subr.bf16.mxu0 0
        %2713 = vmatpush1.bf16.msra.mxu0 %v2617
        %2714 = vmatprep.subr.bf16.mxu0 0
        %2715 = vmatpush1.bf16.msra.mxu0 %v2619
        %2716 = vmatprep.subr.bf16.mxu0 0
        %2717 = vmatpush1.bf16.msra.mxu0 %v2621
        %2718 = vmatprep.subr.bf16.mxu0 0
        %2719 = vmatpush1.bf16.msra.mxu0 %v2623
        %2720 = vmatprep.subr.bf16.mxu0 0
        %2721 = vmatpush1.bf16.msra.mxu0 %v2625
        %2722 = vmatprep.subr.bf16.mxu0 0
        %2723 = vmatpush1.bf16.msra.mxu0 %v2627
        %2724 = vmatprep.subr.bf16.mxu0 0
        %2725 = vmatpush1.bf16.msra.mxu0 %v2629
        %2726 = vmatprep.subr.bf16.mxu0 0
        %2727 = vmatpush1.bf16.msra.mxu0 %v2631
        %2728 = vmatprep.mubr.bf16.mxu0 %v2377
        %2729 = vmatmul.mubr.bf16.gmra.mrb[0].mxu0 %v2376
        %v2730 = vpop.f32.mrb[0].mxu0
        %v2731 = vadd.f32 0.0, %v2730
        %v2732 = vpop.f32.mrb[0].mxu0
        %v2733 = vpop.f32.mrb[0].mxu0
        %v2734 = vadd.f32 0.0, %v2733
        %v2735 = vpop.f32.mrb[0].mxu0
        %2736 = vmatprep.mubr.bf16.mxu0 %v2381
        %2737 = vmatmul.mubr.bf16.gmra.mrb[0].mxu0 %v2380
        %v2738 = vpop.f32.mrb[0].mxu0
        %v2739 = vadd.f32 0.0, %v2738
        %v2740 = vpop.f32.mrb[0].mxu0
        %v2741 = vpop.f32.mrb[0].mxu0
        %v2742 = vadd.f32 0.0, %v2741
        %v2743 = vpop.f32.mrb[0].mxu0
        %2744 = vmatprep.mubr.bf16.mxu0 %v2385
        %2745 = vmatmul.mubr.bf16.gmra.mrb[0].mxu0 %v2384
        %v2746 = vpop.f32.mrb[0].mxu0
        %v2747 = vadd.f32 0.0, %v2746
        %v2748 = vpop.f32.mrb[0].mxu0
        %v2749 = vpop.f32.mrb[0].mxu0
        %v2750 = vadd.f32 0.0, %v2749
        %v2751 = vpop.f32.mrb[0].mxu0
        %2752 = vmatprep.mubr.bf16.mxu0 %v2389
        %2753 = vmatmul.mubr.bf16.gmra.mrb[0].mxu0 %v2388
        %v2754 = vpop.f32.mrb[0].mxu0
        %v2755 = vadd.f32 0.0, %v2754
        %v2756 = vpop.f32.mrb[0].mxu0
        %v2757 = vpop.f32.mrb[0].mxu0
        %v2758 = vadd.f32 0.0, %v2757
        %v2759 = vpop.f32.mrb[0].mxu0
        %2760 = vmatprep.mubr.bf16.mxu0 %v2393
        %2761 = vmatmul.mubr.bf16.gmra.mrb[0].mxu0 %v2392
        %v2762 = vpop.f32.mrb[0].mxu0
        %v2763 = vadd.f32 0.0, %v2762
        %v2764 = vpop.f32.mrb[0].mxu0
        %v2765 = vpop.f32.mrb[0].mxu0
        %v2766 = vadd.f32 0.0, %v2765
        %v2767 = vpop.f32.mrb[0].mxu0
        %2768 = vmatprep.mubr.bf16.mxu0 %v2397
        %2769 = vmatmul.mubr.bf16.gmra.mrb[0].mxu0 %v2396
        %v2770 = vpop.f32.mrb[0].mxu0
        %v2771 = vadd.f32 0.0, %v2770
        %v2772 = vpop.f32.mrb[0].mxu0
        %v2773 = vpop.f32.mrb[0].mxu0
        %v2774 = vadd.f32 0.0, %v2773
        %v2775 = vpop.f32.mrb[0].mxu0
        %2776 = vmatprep.mubr.bf16.mxu0 %v2401
        %2777 = vmatmul.mubr.bf16.gmra.mrb[0].mxu0 %v2400
        %v2778 = vpop.f32.mrb[0].mxu0
        %v2779 = vadd.f32 0.0, %v2778
        %v2780 = vpop.f32.mrb[0].mxu0
        %v2781 = vpop.f32.mrb[0].mxu0
        %v2782 = vadd.f32 0.0, %v2781
        %v2783 = vpop.f32.mrb[0].mxu0
        %2784 = vmatprep.mubr.bf16.mxu0 %v2405
        %2785 = vmatmul.mubr.bf16.gmra.mrb[0].mxu0 %v2404
        %v2786 = vpop.f32.mrb[0].mxu0
        %v2787 = vadd.f32 0.0, %v2786
        %v2788 = vpop.f32.mrb[0].mxu0
        %v2789 = vpop.f32.mrb[0].mxu0
        %v2790 = vadd.f32 0.0, %v2789
        %v2791 = vpop.f32.mrb[0].mxu0
        %2792 = vdwg.mxu0
        %2793 = vmatprep.subr.bf16.mxu0 0
        %2794 = vmatpush1.bf16.msra.mxu0 %v2633
        %2795 = vmatprep.subr.bf16.mxu0 0
        %2796 = vmatpush1.bf16.msra.mxu0 %v2635
        %2797 = vmatprep.subr.bf16.mxu0 0
        %2798 = vmatpush1.bf16.msra.mxu0 %v2637
        %2799 = vmatprep.subr.bf16.mxu0 0
        %2800 = vmatpush1.bf16.msra.mxu0 %v2639
        %2801 = vmatprep.subr.bf16.mxu0 0
        %2802 = vmatpush1.bf16.msra.mxu0 %v2641
        %2803 = vmatprep.subr.bf16.mxu0 0
        %2804 = vmatpush1.bf16.msra.mxu0 %v2643
        %2805 = vmatprep.subr.bf16.mxu0 0
        %2806 = vmatpush1.bf16.msra.mxu0 %v2645
        %2807 = vmatprep.subr.bf16.mxu0 0
        %2808 = vmatpush1.bf16.msra.mxu0 %v2647
        %2809 = vmatprep.subr.bf16.mxu0 0
        %2810 = vmatpush1.bf16.msra.mxu0 %v2649
        %2811 = vmatprep.subr.bf16.mxu0 0
        %2812 = vmatpush1.bf16.msra.mxu0 %v2651
        %2813 = vmatprep.subr.bf16.mxu0 0
        %2814 = vmatpush1.bf16.msra.mxu0 %v2653
        %2815 = vmatprep.subr.bf16.mxu0 0
        %2816 = vmatpush1.bf16.msra.mxu0 %v2655
        %2817 = vmatprep.subr.bf16.mxu0 0
        %2818 = vmatpush1.bf16.msra.mxu0 %v2657
        %2819 = vmatprep.subr.bf16.mxu0 0
        %2820 = vmatpush1.bf16.msra.mxu0 %v2659
        %2821 = vmatprep.subr.bf16.mxu0 0
        %2822 = vmatpush1.bf16.msra.mxu0 %v2661
        %2823 = vmatprep.subr.bf16.mxu0 0
        %2824 = vmatpush1.bf16.msra.mxu0 %v2663
        %2825 = vmatprep.mubr.bf16.mxu0 %v2379
        %2826 = vmatmul.mubr.bf16.gmra.mrb[0].mxu0 %v2378
        %v2827 = vpop.f32.mrb[0].mxu0
        %v2828 = vadd.f32 %v2731, %v2827
        %v2829 = vpop.f32.mrb[0].mxu0
        %v2830 = vpop.f32.mrb[0].mxu0
        %v2831 = vadd.f32 %v2734, %v2830
        %v2832 = vpop.f32.mrb[0].mxu0
        %2833 = vmatprep.mubr.bf16.mxu0 %v2383
        %2834 = vmatmul.mubr.bf16.gmra.mrb[0].mxu0 %v2382
        %v2835 = vpop.f32.mrb[0].mxu0
        %v2836 = vadd.f32 %v2739, %v2835
        %v2837 = vpop.f32.mrb[0].mxu0
        %v2838 = vpop.f32.mrb[0].mxu0
        %v2839 = vadd.f32 %v2742, %v2838
        %v2840 = vpop.f32.mrb[0].mxu0
        %2841 = vmatprep.mubr.bf16.mxu0 %v2387
        %2842 = vmatmul.mubr.bf16.gmra.mrb[0].mxu0 %v2386
        %v2843 = vpop.f32.mrb[0].mxu0
        %v2844 = vadd.f32 %v2747, %v2843
        %v2845 = vpop.f32.mrb[0].mxu0
        %v2846 = vpop.f32.mrb[0].mxu0
        %v2847 = vadd.f32 %v2750, %v2846
        %v2848 = vpop.f32.mrb[0].mxu0
        %2849 = vmatprep.mubr.bf16.mxu0 %v2391
        %2850 = vmatmul.mubr.bf16.gmra.mrb[0].mxu0 %v2390
        %v2851 = vpop.f32.mrb[0].mxu0
        %v2852 = vadd.f32 %v2755, %v2851
        %v2853 = vpop.f32.mrb[0].mxu0
        %v2854 = vpop.f32.mrb[0].mxu0
        %v2855 = vadd.f32 %v2758, %v2854
        %v2856 = vpop.f32.mrb[0].mxu0
        %2857 = vmatprep.mubr.bf16.mxu0 %v2395
        %2858 = vmatmul.mubr.bf16.gmra.mrb[0].mxu0 %v2394
        %v2859 = vpop.f32.mrb[0].mxu0
        %v2860 = vadd.f32 %v2763, %v2859
        %v2861 = vpop.f32.mrb[0].mxu0
        %v2862 = vpop.f32.mrb[0].mxu0
        %v2863 = vadd.f32 %v2766, %v2862
        %v2864 = vpop.f32.mrb[0].mxu0
        %2865 = vmatprep.mubr.bf16.mxu0 %v2399
        %2866 = vmatmul.mubr.bf16.gmra.mrb[0].mxu0 %v2398
        %v2867 = vpop.f32.mrb[0].mxu0
        %v2868 = vadd.f32 %v2771, %v2867
        %v2869 = vpop.f32.mrb[0].mxu0
        %v2870 = vpop.f32.mrb[0].mxu0
        %v2871 = vadd.f32 %v2774, %v2870
        %v2872 = vpop.f32.mrb[0].mxu0
        %2873 = vmatprep.mubr.bf16.mxu0 %v2403
        %2874 = vmatmul.mubr.bf16.gmra.mrb[0].mxu0 %v2402
        %v2875 = vpop.f32.mrb[0].mxu0
        %v2876 = vadd.f32 %v2779, %v2875
        %v2877 = vpop.f32.mrb[0].mxu0
        %v2878 = vpop.f32.mrb[0].mxu0
        %v2879 = vadd.f32 %v2782, %v2878
        %v2880 = vpop.f32.mrb[0].mxu0
        %2881 = vmatprep.mubr.bf16.mxu0 %v2407
        %2882 = vmatmul.mubr.bf16.gmra.mrb[0].mxu0 %v2406
        %v2883 = vpop.f32.mrb[0].mxu0
        %v2884 = vadd.f32 %v2787, %v2883
        %v2885 = vpop.f32.mrb[0].mxu0
        %v2886 = vpop.f32.mrb[0].mxu0
        %v2887 = vadd.f32 %v2790, %v2886
        %v2888 = vpop.f32.mrb[0].mxu0
        %2889 = vdwg.mxu0
        %v2890 = vmul.f32 %v2828, %v2584
        %v2891 = vmul.f32 %v2831, %v2585
        %v2892 = vmul.f32 %v2836, %v2586
        %v2893 = vmul.f32 %v2839, %v2587
        %v2894 = vmul.f32 %v2844, %v2588
        %v2895 = vmul.f32 %v2847, %v2589
        %v2896 = vmul.f32 %v2852, %v2590
        %v2897 = vmul.f32 %v2855, %v2591
        %v2898 = vmul.f32 %v2860, %v2592
        %v2899 = vmul.f32 %v2863, %v2593
        %v2900 = vmul.f32 %v2868, %v2594
        %v2901 = vmul.f32 %v2871, %v2595
        %v2902 = vmul.f32 %v2876, %v2596
        %v2903 = vmul.f32 %v2879, %v2597
        %v2904 = vmul.f32 %v2884, %v2598
        %v2905 = vmul.f32 %v2887, %v2599
        %2922 = vrot.lane.b32.xlu0 %v2890, 16
        %v2923 = vpop.permute.xlu0 %2922
        %2924 = vrot.lane.b32.xlu0 %v2891, 16
        %v2925 = vpop.permute.xlu0 %2924
        %2926 = vrot.lane.b32.xlu0 %v2892, 16
        %v2927 = vpop.permute.xlu0 %2926
        %2928 = vrot.lane.b32.xlu0 %v2893, 16
        %v2929 = vpop.permute.xlu0 %2928
        %2930 = vrot.lane.b32.xlu0 %v2894, 16
        %v2931 = vpop.permute.xlu0 %2930
        %2932 = vrot.lane.b32.xlu0 %v2895, 16
        %v2933 = vpop.permute.xlu0 %2932
        %2934 = vrot.lane.b32.xlu0 %v2896, 16
        %v2935 = vpop.permute.xlu0 %2934
        %2936 = vrot.lane.b32.xlu0 %v2897, 16
        %v2937 = vpop.permute.xlu0 %2936
        %2938 = vrot.lane.b32.xlu0 %v2898, 16
        %v2939 = vpop.permute.xlu0 %2938
        %2940 = vrot.lane.b32.xlu0 %v2899, 16
        %v2941 = vpop.permute.xlu0 %2940
        %2942 = vrot.lane.b32.xlu0 %v2900, 16
        %v2943 = vpop.permute.xlu0 %2942
        %2944 = vrot.lane.b32.xlu0 %v2901, 16
        %v2945 = vpop.permute.xlu0 %2944
        %2946 = vrot.lane.b32.xlu0 %v2902, 16
        %v2947 = vpop.permute.xlu0 %2946
        %2948 = vrot.lane.b32.xlu0 %v2903, 16
        %v2949 = vpop.permute.xlu0 %2948
        %2950 = vrot.lane.b32.xlu0 %v2904, 16
        %v2951 = vpop.permute.xlu0 %2950
        %2952 = vrot.lane.b32.xlu0 %v2905, 16
        %v2953 = vpop.permute.xlu0 %2952
        %v2970 = vsel %vm464, %v1794, %v2923
        %v2971 = vsel %vm464, %v1795, %v2925
        %v2972 = vsel %vm464, %v1796, %v2927
        %v2973 = vsel %vm464, %v1797, %v2929
        %v2974 = vsel %vm464, %v1798, %v2931
        %v2975 = vsel %vm464, %v1799, %v2933
        %v2976 = vsel %vm464, %v1800, %v2935
        %v2977 = vsel %vm464, %v1801, %v2937
        %v2978 = vsel %vm464, %v1802, %v2939
        %v2979 = vsel %vm464, %v1803, %v2941
        %v2980 = vsel %vm464, %v1804, %v2943
        %v2981 = vsel %vm464, %v1805, %v2945
        %v2982 = vsel %vm464, %v1806, %v2947
        %v2983 = vsel %vm464, %v1807, %v2949
        %v2984 = vsel %vm464, %v1808, %v2951
        %v2985 = vsel %vm464, %v1809, %v2953
        %3002 = vrot.lane.b32.xlu0 %v524, 96
        %v3003 = vpop.permute.xlu0 %3002
        %3004 = vrot.lane.b32.xlu0 %v527, 96
        %v3005 = vpop.permute.xlu0 %3004
        %3006 = vrot.lane.b32.xlu0 %v532, 96
        %v3007 = vpop.permute.xlu0 %3006
        %3008 = vrot.lane.b32.xlu0 %v535, 96
        %v3009 = vpop.permute.xlu0 %3008
        %3010 = vrot.lane.b32.xlu0 %v540, 96
        %v3011 = vpop.permute.xlu0 %3010
        %3012 = vrot.lane.b32.xlu0 %v543, 96
        %v3013 = vpop.permute.xlu0 %3012
        %3014 = vrot.lane.b32.xlu0 %v548, 96
        %v3015 = vpop.permute.xlu0 %3014
        %3016 = vrot.lane.b32.xlu0 %v551, 96
        %v3017 = vpop.permute.xlu0 %3016
        %3018 = vrot.lane.b32.xlu0 %v556, 96
        %v3019 = vpop.permute.xlu0 %3018
        %3020 = vrot.lane.b32.xlu0 %v559, 96
        %v3021 = vpop.permute.xlu0 %3020
        %3022 = vrot.lane.b32.xlu0 %v564, 96
        %v3023 = vpop.permute.xlu0 %3022
        %3024 = vrot.lane.b32.xlu0 %v567, 96
        %v3025 = vpop.permute.xlu0 %3024
        %3026 = vrot.lane.b32.xlu0 %v572, 96
        %v3027 = vpop.permute.xlu0 %3026
        %3028 = vrot.lane.b32.xlu0 %v575, 96
        %v3029 = vpop.permute.xlu0 %3028
        %3030 = vrot.lane.b32.xlu0 %v580, 96
        %v3031 = vpop.permute.xlu0 %3030
        %3032 = vrot.lane.b32.xlu0 %v583, 96
        %v3033 = vpop.permute.xlu0 %3032
        %v3050 = vadd.f32 %v2970, %v3003
        %v3051 = vadd.f32 %v2971, %v3005
        %v3052 = vadd.f32 %v2972, %v3007
        %v3053 = vadd.f32 %v2973, %v3009
        %v3054 = vadd.f32 %v2974, %v3011
        %v3055 = vadd.f32 %v2975, %v3013
        %v3056 = vadd.f32 %v2976, %v3015
        %v3057 = vadd.f32 %v2977, %v3017
        %v3058 = vadd.f32 %v2978, %v3019
        %v3059 = vadd.f32 %v2979, %v3021
        %v3060 = vadd.f32 %v2980, %v3023
        %v3061 = vadd.f32 %v2981, %v3025
        %v3062 = vadd.f32 %v2982, %v3027
        %v3063 = vadd.f32 %v2983, %v3029
        %v3064 = vadd.f32 %v2984, %v3031
        %v3065 = vadd.f32 %v2985, %v3033
        %vm3066 = vcmask 261120
        %v3067 = vsel %vm3066, %v3050, 0.0
        %3068 = vadd.xlane.f32.xlu0 %v3067
        %v3069 = vpop.xlane.xlu0 %3068
        %v3070 = vsel %vm3066, %v3051, 0.0
        %3071 = vadd.xlane.f32.xlu0 %v3070
        %v3072 = vpop.xlane.xlu0 %3071
        %v3073 = vsel %vm3066, %v3052, 0.0
        %3074 = vadd.xlane.f32.xlu0 %v3073
        %v3075 = vpop.xlane.xlu0 %3074
        %v3076 = vsel %vm3066, %v3053, 0.0
        %3077 = vadd.xlane.f32.xlu0 %v3076
        %v3078 = vpop.xlane.xlu0 %3077
        %v3079 = vsel %vm3066, %v3054, 0.0
        %3080 = vadd.xlane.f32.xlu0 %v3079
        %v3081 = vpop.xlane.xlu0 %3080
        %v3082 = vsel %vm3066, %v3055, 0.0
        %3083 = vadd.xlane.f32.xlu0 %v3082
        %v3084 = vpop.xlane.xlu0 %3083
        %v3085 = vsel %vm3066, %v3056, 0.0
        %3086 = vadd.xlane.f32.xlu0 %v3085
        %v3087 = vpop.xlane.xlu0 %3086
        %v3088 = vsel %vm3066, %v3057, 0.0
        %3089 = vadd.xlane.f32.xlu0 %v3088
        %v3090 = vpop.xlane.xlu0 %3089
        %v3091 = vsel %vm3066, %v3058, 0.0
        %3092 = vadd.xlane.f32.xlu0 %v3091
        %v3093 = vpop.xlane.xlu0 %3092
        %v3094 = vsel %vm3066, %v3059, 0.0
        %3095 = vadd.xlane.f32.xlu0 %v3094
        %v3096 = vpop.xlane.xlu0 %3095
        %v3097 = vsel %vm3066, %v3060, 0.0
        %3098 = vadd.xlane.f32.xlu0 %v3097
        %v3099 = vpop.xlane.xlu0 %3098
        %v3100 = vsel %vm3066, %v3061, 0.0
        %3101 = vadd.xlane.f32.xlu0 %v3100
        %v3102 = vpop.xlane.xlu0 %3101
        %v3103 = vsel %vm3066, %v3062, 0.0
        %3104 = vadd.xlane.f32.xlu0 %v3103
        %v3105 = vpop.xlane.xlu0 %3104
        %v3106 = vsel %vm3066, %v3063, 0.0
        %3107 = vadd.xlane.f32.xlu0 %v3106
        %v3108 = vpop.xlane.xlu0 %3107
        %v3109 = vsel %vm3066, %v3064, 0.0
        %3110 = vadd.xlane.f32.xlu0 %v3109
        %v3111 = vpop.xlane.xlu0 %3110
        %v3112 = vsel %vm3066, %v3065, 0.0
        %3113 = vadd.xlane.f32.xlu0 %v3112
        %v3114 = vpop.xlane.xlu0 %3113
        %v3115 = vrcp.pop 32.0
        %v3116 = vmul.f32 %v3069, %v3115
        %v3117 = vmul.f32 %v3072, %v3115
        %v3118 = vmul.f32 %v3075, %v3115
        %v3119 = vmul.f32 %v3078, %v3115
        %v3120 = vmul.f32 %v3081, %v3115
        %v3121 = vmul.f32 %v3084, %v3115
        %v3122 = vmul.f32 %v3087, %v3115
        %v3123 = vmul.f32 %v3090, %v3115
        %v3124 = vmul.f32 %v3093, %v3115
        %v3125 = vmul.f32 %v3096, %v3115
        %v3126 = vmul.f32 %v3099, %v3115
        %v3127 = vmul.f32 %v3102, %v3115
        %v3128 = vmul.f32 %v3105, %v3115
        %v3129 = vmul.f32 %v3108, %v3115
        %v3130 = vmul.f32 %v3111, %v3115
        %v3131 = vmul.f32 %v3114, %v3115
        %v3132 = vsub.f32 %v3050, %v3116
        %v3133 = vsub.f32 %v3051, %v3117
        %v3134 = vsub.f32 %v3052, %v3118
        %v3135 = vsub.f32 %v3053, %v3119
        %v3136 = vsub.f32 %v3054, %v3120
        %v3137 = vsub.f32 %v3055, %v3121
        %v3138 = vsub.f32 %v3056, %v3122
        %v3139 = vsub.f32 %v3057, %v3123
        %v3140 = vsub.f32 %v3058, %v3124
        %v3141 = vsub.f32 %v3059, %v3125
        %v3142 = vsub.f32 %v3060, %v3126
        %v3143 = vsub.f32 %v3061, %v3127
        %v3144 = vsub.f32 %v3062, %v3128
        %v3145 = vsub.f32 %v3063, %v3129
        %v3146 = vsub.f32 %v3064, %v3130
        %v3147 = vsub.f32 %v3065, %v3131
        %v3148 = vmul.f32 %v3132, %v3132
        %v3149 = vmul.f32 %v3133, %v3133
        %v3150 = vmul.f32 %v3134, %v3134
        %v3151 = vmul.f32 %v3135, %v3135
        %v3152 = vmul.f32 %v3136, %v3136
        %v3153 = vmul.f32 %v3137, %v3137
        %v3154 = vmul.f32 %v3138, %v3138
        %v3155 = vmul.f32 %v3139, %v3139
        %v3156 = vmul.f32 %v3140, %v3140
        %v3157 = vmul.f32 %v3141, %v3141
        %v3158 = vmul.f32 %v3142, %v3142
        %v3159 = vmul.f32 %v3143, %v3143
        %v3160 = vmul.f32 %v3144, %v3144
        %v3161 = vmul.f32 %v3145, %v3145
        %v3162 = vmul.f32 %v3146, %v3146
        %v3163 = vmul.f32 %v3147, %v3147
        %v3164 = vsel %vm3066, %v3148, 0.0
        %3165 = vadd.xlane.f32.xlu0 %v3164
        %v3166 = vpop.xlane.xlu0 %3165
        %v3167 = vsel %vm3066, %v3149, 0.0
        %3168 = vadd.xlane.f32.xlu0 %v3167
        %v3169 = vpop.xlane.xlu0 %3168
        %v3170 = vsel %vm3066, %v3150, 0.0
        %3171 = vadd.xlane.f32.xlu0 %v3170
        %v3172 = vpop.xlane.xlu0 %3171
        %v3173 = vsel %vm3066, %v3151, 0.0
        %3174 = vadd.xlane.f32.xlu0 %v3173
        %v3175 = vpop.xlane.xlu0 %3174
        %v3176 = vsel %vm3066, %v3152, 0.0
        %3177 = vadd.xlane.f32.xlu0 %v3176
        %v3178 = vpop.xlane.xlu0 %3177
        %v3179 = vsel %vm3066, %v3153, 0.0
        %3180 = vadd.xlane.f32.xlu0 %v3179
        %v3181 = vpop.xlane.xlu0 %3180
        %v3182 = vsel %vm3066, %v3154, 0.0
        %3183 = vadd.xlane.f32.xlu0 %v3182
        %v3184 = vpop.xlane.xlu0 %3183
        %v3185 = vsel %vm3066, %v3155, 0.0
        %3186 = vadd.xlane.f32.xlu0 %v3185
        %v3187 = vpop.xlane.xlu0 %3186
        %v3188 = vsel %vm3066, %v3156, 0.0
        %3189 = vadd.xlane.f32.xlu0 %v3188
        %v3190 = vpop.xlane.xlu0 %3189
        %v3191 = vsel %vm3066, %v3157, 0.0
        %3192 = vadd.xlane.f32.xlu0 %v3191
        %v3193 = vpop.xlane.xlu0 %3192
        %v3194 = vsel %vm3066, %v3158, 0.0
        %3195 = vadd.xlane.f32.xlu0 %v3194
        %v3196 = vpop.xlane.xlu0 %3195
        %v3197 = vsel %vm3066, %v3159, 0.0
        %3198 = vadd.xlane.f32.xlu0 %v3197
        %v3199 = vpop.xlane.xlu0 %3198
        %v3200 = vsel %vm3066, %v3160, 0.0
        %3201 = vadd.xlane.f32.xlu0 %v3200
        %v3202 = vpop.xlane.xlu0 %3201
        %v3203 = vsel %vm3066, %v3161, 0.0
        %3204 = vadd.xlane.f32.xlu0 %v3203
        %v3205 = vpop.xlane.xlu0 %3204
        %v3206 = vsel %vm3066, %v3162, 0.0
        %3207 = vadd.xlane.f32.xlu0 %v3206
        %v3208 = vpop.xlane.xlu0 %3207
        %v3209 = vsel %vm3066, %v3163, 0.0
        %3210 = vadd.xlane.f32.xlu0 %v3209
        %v3211 = vpop.xlane.xlu0 %3210
        %v3212 = vmul.f32 %v3166, %v3115
        %v3213 = vmul.f32 %v3169, %v3115
        %v3214 = vmul.f32 %v3172, %v3115
        %v3215 = vmul.f32 %v3175, %v3115
        %v3216 = vmul.f32 %v3178, %v3115
        %v3217 = vmul.f32 %v3181, %v3115
        %v3218 = vmul.f32 %v3184, %v3115
        %v3219 = vmul.f32 %v3187, %v3115
        %v3220 = vmul.f32 %v3190, %v3115
        %v3221 = vmul.f32 %v3193, %v3115
        %v3222 = vmul.f32 %v3196, %v3115
        %v3223 = vmul.f32 %v3199, %v3115
        %v3224 = vmul.f32 %v3202, %v3115
        %v3225 = vmul.f32 %v3205, %v3115
        %v3226 = vmul.f32 %v3208, %v3115
        %v3227 = vmul.f32 %v3211, %v3115
        %v3228 = vadd.f32 %v3212, 1e-05
        %v3229 = vadd.f32 %v3213, 1e-05
        %v3230 = vadd.f32 %v3214, 1e-05
        %v3231 = vadd.f32 %v3215, 1e-05
        %v3232 = vadd.f32 %v3216, 1e-05
        %v3233 = vadd.f32 %v3217, 1e-05
        %v3234 = vadd.f32 %v3218, 1e-05
        %v3235 = vadd.f32 %v3219, 1e-05
        %v3236 = vadd.f32 %v3220, 1e-05
        %v3237 = vadd.f32 %v3221, 1e-05
        %v3238 = vadd.f32 %v3222, 1e-05
        %v3239 = vadd.f32 %v3223, 1e-05
        %v3240 = vadd.f32 %v3224, 1e-05
        %v3241 = vadd.f32 %v3225, 1e-05
        %v3242 = vadd.f32 %v3226, 1e-05
        %v3243 = vadd.f32 %v3227, 1e-05
        %v3244 = vrsqrt.pop %v3228
        %v3245 = vrsqrt.pop %v3229
        %v3246 = vrsqrt.pop %v3230
        %v3247 = vrsqrt.pop %v3231
        %v3248 = vrsqrt.pop %v3232
        %v3249 = vrsqrt.pop %v3233
        %v3250 = vrsqrt.pop %v3234
        %v3251 = vrsqrt.pop %v3235
        %v3252 = vrsqrt.pop %v3236
        %v3253 = vrsqrt.pop %v3237
        %v3254 = vrsqrt.pop %v3238
        %v3255 = vrsqrt.pop %v3239
        %v3256 = vrsqrt.pop %v3240
        %v3257 = vrsqrt.pop %v3241
        %v3258 = vrsqrt.pop %v3242
        %v3259 = vrsqrt.pop %v3243
        %v3260 = vmul.f32 %v3132, %v3244
        %v3261 = vmul.f32 %v3133, %v3245
        %v3262 = vmul.f32 %v3134, %v3246
        %v3263 = vmul.f32 %v3135, %v3247
        %v3264 = vmul.f32 %v3136, %v3248
        %v3265 = vmul.f32 %v3137, %v3249
        %v3266 = vmul.f32 %v3138, %v3250
        %v3267 = vmul.f32 %v3139, %v3251
        %v3268 = vmul.f32 %v3140, %v3252
        %v3269 = vmul.f32 %v3141, %v3253
        %v3270 = vmul.f32 %v3142, %v3254
        %v3271 = vmul.f32 %v3143, %v3255
        %v3272 = vmul.f32 %v3144, %v3256
        %v3273 = vmul.f32 %v3145, %v3257
        %v3274 = vmul.f32 %v3146, %v3258
        %v3275 = vmul.f32 %v3147, %v3259
        %v3276 = vld [vmem:[%s6] sm:$0x1]
        %v3277 = vlaneseq
        %v3278 = vshrl.u32 %v3277, 7
        %v3279 = vsub.s32 0, %v3278
        %v3280 = vrot.slane %v3276, %v3279
        %v3281 = vmul.f32 %v3260, %v3280
        %v3282 = vmul.f32 %v3261, %v3280
        %v3283 = vmul.f32 %v3262, %v3280
        %v3284 = vmul.f32 %v3263, %v3280
        %v3285 = vmul.f32 %v3264, %v3280
        %v3286 = vmul.f32 %v3265, %v3280
        %v3287 = vmul.f32 %v3266, %v3280
        %v3288 = vmul.f32 %v3267, %v3280
        %v3289 = vmul.f32 %v3268, %v3280
        %v3290 = vmul.f32 %v3269, %v3280
        %v3291 = vmul.f32 %v3270, %v3280
        %v3292 = vmul.f32 %v3271, %v3280
        %v3293 = vmul.f32 %v3272, %v3280
        %v3294 = vmul.f32 %v3273, %v3280
        %v3295 = vmul.f32 %v3274, %v3280
        %v3296 = vmul.f32 %v3275, %v3280
        %v3297 = vld [vmem:[%s6 + $0x1] sm:$0x1]
        %v3298 = vlaneseq
        %v3299 = vshrl.u32 %v3298, 7
        %v3300 = vsub.s32 0, %v3299
        %v3301 = vrot.slane %v3297, %v3300
        %v3302 = vadd.f32 %v3281, %v3301
        %v3303 = vadd.f32 %v3282, %v3301
        %v3304 = vadd.f32 %v3283, %v3301
        %v3305 = vadd.f32 %v3284, %v3301
        %v3306 = vadd.f32 %v3285, %v3301
        %v3307 = vadd.f32 %v3286, %v3301
        %v3308 = vadd.f32 %v3287, %v3301
        %v3309 = vadd.f32 %v3288, %v3301
        %v3310 = vadd.f32 %v3289, %v3301
        %v3311 = vadd.f32 %v3290, %v3301
        %v3312 = vadd.f32 %v3291, %v3301
        %v3313 = vadd.f32 %v3292, %v3301
        %v3314 = vadd.f32 %v3293, %v3301
        %v3315 = vadd.f32 %v3294, %v3301
        %v3316 = vadd.f32 %v3295, %v3301
        %v3317 = vadd.f32 %v3296, %v3301
        %v3318 = vmax.f32 %v3302, 0.0
        %v3319 = vmax.f32 %v3303, 0.0
        %v3320 = vmax.f32 %v3304, 0.0
        %v3321 = vmax.f32 %v3305, 0.0
        %v3322 = vmax.f32 %v3306, 0.0
        %v3323 = vmax.f32 %v3307, 0.0
        %v3324 = vmax.f32 %v3308, 0.0
        %v3325 = vmax.f32 %v3309, 0.0
        %v3326 = vmax.f32 %v3310, 0.0
        %v3327 = vmax.f32 %v3311, 0.0
        %v3328 = vmax.f32 %v3312, 0.0
        %v3329 = vmax.f32 %v3313, 0.0
        %v3330 = vmax.f32 %v3314, 0.0
        %v3331 = vmax.f32 %v3315, 0.0
        %v3332 = vmax.f32 %v3316, 0.0
        %v3333 = vmax.f32 %v3317, 0.0
        %v3334 = vsel %vm3066, %v3318, 0.0
        %v3335 = vsel %vm3066, %v3319, 0.0
        %v3336 = vsel %vm3066, %v3320, 0.0
        %v3337 = vsel %vm3066, %v3321, 0.0
        %v3338 = vsel %vm3066, %v3322, 0.0
        %v3339 = vsel %vm3066, %v3323, 0.0
        %v3340 = vsel %vm3066, %v3324, 0.0
        %v3341 = vsel %vm3066, %v3325, 0.0
        %v3342 = vsel %vm3066, %v3326, 0.0
        %v3343 = vsel %vm3066, %v3327, 0.0
        %v3344 = vsel %vm3066, %v3328, 0.0
        %v3345 = vsel %vm3066, %v3329, 0.0
        %v3346 = vsel %vm3066, %v3330, 0.0
        %v3347 = vsel %vm3066, %v3331, 0.0
        %v3348 = vsel %vm3066, %v3332, 0.0
        %v3349 = vsel %vm3066, %v3333, 0.0
        %3350 = vst [vmem:[%s305] sm:$0xff] %v3334
        %3351 = vst [vmem:[%s305 + $0x8] sm:$0xff] %v3335
        %3352 = vst [vmem:[%s305 + $0x10] sm:$0xff] %v3336
        %3353 = vst [vmem:[%s305 + $0x18] sm:$0xff] %v3337
        %3354 = vst [vmem:[%s305 + $0x20] sm:$0xff] %v3338
        %3355 = vst [vmem:[%s305 + $0x28] sm:$0xff] %v3339
        %3356 = vst [vmem:[%s305 + $0x30] sm:$0xff] %v3340
        %3357 = vst [vmem:[%s305 + $0x38] sm:$0xff] %v3341
        %3358 = vst [vmem:[%s305 + $0x40] sm:$0xff] %v3342
        %3359 = vst [vmem:[%s305 + $0x48] sm:$0xff] %v3343
        %3360 = vst [vmem:[%s305 + $0x50] sm:$0xff] %v3344
        %3361 = vst [vmem:[%s305 + $0x58] sm:$0xff] %v3345
        %3362 = vst [vmem:[%s305 + $0x60] sm:$0xff] %v3346
        %3363 = vst [vmem:[%s305 + $0x68] sm:$0xff] %v3347
        %3364 = vst [vmem:[%s305 + $0x70] sm:$0xff] %v3348
        %3365 = vst [vmem:[%s305 + $0x78] sm:$0xff] %v3349
        %s3366 = sand.u32 %s187, 1
        %s3367 = scalar_lea.sflag [#allocation4], %s3366
        %s3368 = sand.u32 %s187, 1
        %s3369 = smul.addr %s3368, 128
        %s3370 = scalar_lea.vmem [#allocation5], %s3369
        // Predicated region
        $region53: #{tpu_custom_call.1} parent=47 // pred_check
          %p3371 = pneg %p197
        $region54: #{tpu_custom_call.1} parent=47 // pred_check_branch
          %3373 = sbr.rel (%p3371) target = $region56
        $region55: #{tpu_custom_call.1} parent=47 // pred_region
          %s3374 = smul.u32 16, %s22
          %s3376 = ssub.s32 2048, 2048
          %3377 = vsyncadd %s3367, %s3376
          %s3378 = smul.addr %s3374, 128
          %s3379 = scalar_lea.hbm %s7, %s3378
          %s3380 = sshll.u32 %s3370, 4
          %s3381 = int_to_ptr.vmem [resolvable:$true] %s3380
          %3386 = dma.vmem_to_hbm [thread:$0]  %s3381, 2048, %s3379, %s3367, 128, 128, 8
        $region56: #{tpu_custom_call.1} parent=47 // pred_fallthru
          _
      $region48: #{tpu_custom_call.1} parent=5 // pred_fallthru
        _
      %p3387 = scmp.le.s32.totalorder 2, %s17
      // Predicated region
      $region57: #{tpu_custom_call.1} parent=5 // pred_check
        %p3388 = pneg %p3387
      $region58: #{tpu_custom_call.1} parent=5 // pred_check_branch
        %3390 = sbr.rel (%p3388) target = $region60
      $region59: #{tpu_custom_call.1} parent=5 // pred_region
        %s3391 = ssub.s32 %s17, 2
        // Predicated region
        $region61: #{tpu_custom_call.1} parent=59 // pred_check
          %p3392 = pneg %p203
        $region62: #{tpu_custom_call.1} parent=59 // pred_check_branch
          %3394 = sbr.rel (%p3392) target = $region64
        $region63: #{tpu_custom_call.1} parent=59 // pred_region
          %s3395 = sand.u32 %s188, 1
          %s3396 = scalar_lea.sflag [#allocation4], %s3395
          %s3397 = sand.u32 %s188, 1
          %s3398 = smul.addr %s3397, 128
          %s3399 = scalar_lea.vmem [#allocation5], %s3398
          %3400 = dma.done %s3396, 2048
        $region64: #{tpu_custom_call.1} parent=59 // pred_fallthru
          _
      $region60: #{tpu_custom_call.1} parent=5 // pred_fallthru
        _
    $region6: #{tpu_custom_call.1} parent=1 // loop_footer
      %s21 = sadd.s32 1, %s17
    $region7: #{tpu_custom_call.1} parent=1 // loop_footer_branch
      %16 = sbr.rel target = $region3
    $region8: #{tpu_custom_call.1} parent=1 // loop_exit
      _
    %3401 = vsyncpa [#allocation3], 1
    %s3402 = scalar_lea.sflag [#allocation3], 1
    %3403 = vsyncpa %s3402, 1
    %3404 = vsyncpa [#allocation4], 1
    %s3405 = scalar_lea.sflag [#allocation4], 1
    %3406 = vsyncpa %s3405, 1

</llo_original>
